<compile_context>
chip_gen: v7x
topology: tpu7x:2x2x1
jax: 0.10.0
libtpu: 0.0.40
codegen_flags: <defaults>
</compile_context>

<pallas_src>
import functools

import jax
import jax.numpy as jnp
from jax import lax
from jax.experimental import pallas as pl
from jax.experimental.pallas import tpu as pltpu


def _round_up(x, m):
    return (x + m - 1) // m * m


def _vmem_capacity_bytes():
    """Generation-aware VMEM capacity (falls back to a conservative 64 MiB)."""
    try:
        cap = int(pltpu.get_tpu_info().vmem_capacity_bytes)
        if cap >= (32 << 20):
            return cap
    except Exception:
        pass
    return 64 << 20


def _gin_conv_kernel(x_ref, src_ref, idx_ref, w_ref, b_ref, eps_ref,
                     o_ref, acc_ref, *ws_scratch,
                     K, mc, num_chunks, mxu_bf16, reassociate):
    # x_ref   : (1, C, tn)     center-node features for this node tile (N on lanes)
    # src_ref : (1, C, M)      full per-batch gather source (single-buffered)
    # idx_ref : (1, K, tn)     int32 neighbor indices for this node tile
    # w_ref   : (Cout, C)      1x1 conv weight
    # b_ref   : (Cout, 1)      bias
    # eps_ref : (1,)           eps parameter (SMEM scalar)
    # o_ref   : (1, Cout, tn)
    # acc_ref : (C or Cout, tn) f32 accumulator scratch
    # ws_scratch[0] (only when reassociate): (Cout, M) per-batch W @ src cache
    ws_ref = ws_scratch[0] if reassociate else None
    mxu_dtype = jnp.bfloat16 if mxu_bf16 else jnp.float32
    # One-hot counts are <= K < 256, exactly representable in bf16: when the MXU
    # operands are bf16, build AT directly in bf16 (halves the VALU work and the
    # vreg/VMEM footprint of the AT build; no extra cast sweep before the matmul).
    at_dtype = mxu_dtype

    x = x_ref[0].astype(jnp.float32)                 # (C, tn)
    idx = idx_ref[0]                                 # (K, tn) int32
    w_mx = w_ref[...].astype(mxu_dtype)              # (Cout, C)
    eps = eps_ref[0].astype(jnp.float32)             # scalar from SMEM
    tn = x.shape[1]

    if reassociate:
        # Cout < C: cache  ws = W @ src  once per batch (j == 0) so the big
        # scatter contraction runs in the smaller Cout space.  Requires the j
        # grid axis to be "arbitrary" (set by the wrapper).
        @pl.when(pl.program_id(1) == 0)
        def _():
            ws_ref[...] = jnp.dot(
                w_mx, src_ref[0].astype(mxu_dtype),
                preferred_element_type=jnp.float32).astype(ws_ref.dtype)

        # Center-node term, already in output-channel space.
        acc_ref[...] = (1.0 + eps) * jnp.dot(
            w_mx, x.astype(mxu_dtype), preferred_element_type=jnp.float32)
    else:
        acc_ref[...] = (1.0 + eps) * x

    def chunk_step(c):
        base = c * mc
        if not isinstance(base, int):
            base = pl.multiple_of(base, mc)
        # One-hot scatter slab: AT[m, n] = #{k : idx[k, n] == base + m}.
        # Out-of-range neighbor indices simply contribute zero.
        # TODO(synk): a stride-0 sublane-broadcast load of each idx row could
        # move the per-k broadcast from VALU into vector-load slots.
        iota_m = lax.broadcasted_iota(jnp.int32, (mc, tn), 0) + base
        at = jnp.zeros((mc, tn), at_dtype)
        for k in range(K):                           # K is static and small
            at = at + (iota_m == idx[k:k + 1, :]).astype(at_dtype)
        if reassociate:
            slab = ws_ref[:, pl.ds(base, mc)]        # (Cout, mc), already MXU dtype
        else:
            slab = src_ref[0, :, pl.ds(base, mc)].astype(mxu_dtype)  # (C, mc)
        acc_ref[...] += jnp.dot(slab, at, preferred_element_type=jnp.float32)

    if num_chunks <= 16:
        # Unrolled static loop: the VPU AT-build of slab c+1 can co-issue with
        # the MXU consuming slab c (different VLIW slots).
        for c in range(num_chunks):
            chunk_step(c)
    else:
        @pl.loop(0, num_chunks)
        def _(c):
            chunk_step(c)

    if reassociate:
        out = acc_ref[...]
    else:
        out = jnp.dot(w_mx, acc_ref[...].astype(mxu_dtype),
                      preferred_element_type=jnp.float32)
    out = out + b_ref[...].astype(jnp.float32)       # (Cout, tn)
    o_ref[0] = jnp.maximum(out, 0.0).astype(o_ref.dtype)   # ReLU, lane-dense store


def gin_conv(x_bcn, src_bcm, idx_bkn, weight, bias, eps, *, mxu_bf16=False):
    B, C, N = x_bcn.shape
    M = src_bcm.shape[2]
    K = idx_bkn.shape[1]
    Cout = weight.shape[0]
    out_dtype = x_bcn.dtype
    if mxu_bf16:
        assert K < 256, "bf16 AT build requires K < 256 for exact counts"

    vmem_cap = _vmem_capacity_bytes()

    # Lane-dense node tiles: pad N (and pick the node tile) to multiples of 128.
    n_pad = _round_up(N, 128)
    tn = 512 if n_pad % 512 == 0 else (256 if n_pad % 256 == 0 else 128)

    # Chunk the M contraction so the (mc, tn) scatter slab stays small
    # (tighter cap on the 64 MiB-VMEM v7x, looser on 128 MiB v5e/v6e).
    m_pad = _round_up(M, 128)
    at_itemsize = 2 if mxu_bf16 else 4
    at_budget = (2 << 20) if vmem_cap <= (64 << 20) else (4 << 20)
    mc = 128
    for cand in (512, 256, 128):
        if m_pad % cand == 0 and cand * tn * at_itemsize <= at_budget:
            mc = cand
            break
    num_chunks = m_pad // mc

    # When Cout < C, reassociate: out = (W@src)@AT + (1+eps)*(W@x) + b, with
    # W@src cached once per batch -> dominant contraction shrinks to Cout*M*tn.
    reassociate = Cout < C

    if n_pad != N:
        x_bcn = jnp.pad(x_bcn, ((0, 0), (0, 0), (0, n_pad - N)))
        idx_bkn = jnp.pad(idx_bkn, ((0, 0), (0, 0), (0, n_pad - N)))
    if m_pad != M:
        src_bcm = jnp.pad(src_bcm, ((0, 0), (0, 0), (0, m_pad - M)))

    c_eff = Cout if reassociate else C
    scratch_shapes = [pltpu.VMEM((c_eff, tn), jnp.float32)]
    if reassociate:
        ws_dtype = jnp.bfloat16 if mxu_bf16 else jnp.float32
        scratch_shapes.append(pltpu.VMEM((Cout, m_pad), ws_dtype))

    grid = (B, n_pad // tn)
    kern = functools.partial(_gin_conv_kernel, K=K, mc=mc, num_chunks=num_chunks,
                             mxu_bf16=mxu_bf16, reassociate=reassociate)

    flops = 2 * B * (c_eff * m_pad * n_pad + Cout * C * n_pad)
    if reassociate:
        flops += 2 * B * Cout * C * m_pad
    bytes_accessed = (x_bcn.size * x_bcn.dtype.itemsize
                      + src_bcm.size * src_bcm.dtype.itemsize
                      + idx_bkn.size * idx_bkn.dtype.itemsize
                      + B * Cout * n_pad * out_dtype.itemsize
                      + weight.size * weight.dtype.itemsize
                      + bias.size * bias.dtype.itemsize)
    cost = pl.CostEstimate(flops=int(flops), transcendentals=0,
                           bytes_accessed=int(bytes_accessed))

    out = pl.pallas_call(
        kern,
        out_shape=jax.ShapeDtypeStruct((B, Cout, n_pad), out_dtype),
        grid_spec=pltpu.PrefetchScalarGridSpec(
            num_scalar_prefetch=0,
            grid=grid,
            in_specs=[
                pl.BlockSpec((1, C, tn), lambda b, j: (b, 0, j)),
                # Full per-batch gather source; block index only changes with b,
                # so a single buffer suffices (halves its VMEM footprint).
                pl.BlockSpec((1, C, m_pad), lambda b, j: (b, 0, 0),
                             pipeline_mode=pl.Buffered(1)),
                pl.BlockSpec((1, K, tn), lambda b, j: (b, 0, j)),
                pl.BlockSpec((Cout, C), lambda b, j: (0, 0)),
                pl.BlockSpec((Cout, 1), lambda b, j: (0, 0)),
                pl.BlockSpec(memory_space=pltpu.MemorySpace.SMEM),  # eps scalar
            ],
            out_specs=pl.BlockSpec((1, Cout, tn), lambda b, j: (b, 0, j)),
            scratch_shapes=scratch_shapes,
        ),
        compiler_params=pltpu.CompilerParams(
            dimension_semantics=("parallel",
                                 "arbitrary" if reassociate else "parallel"),
            vmem_limit_bytes=min(int(vmem_cap * 3 // 4), 100 << 20),
        ),
        cost_estimate=cost,
    )(x_bcn, src_bcm, idx_bkn, weight, bias, eps)

    if n_pad != N:
        out = out[:, :, :N]
    return out


class GINConv2dPallas:
    """GINConv2d (dense): out = ReLU(Conv1x1((1 + eps) * x + sum_k x_j) + b)."""

    def __init__(self, in_channels, out_channels, act='relu', norm=None,
                 bias=True, key=None, mxu_bf16=False):
        assert act == 'relu' and bias, "only the default act='relu', bias=True path"
        # TODO(synk): norm != None (BatchNorm inside BasicConv) not implemented.
        assert norm is None
        self.in_channels = in_channels
        self.out_channels = out_channels
        self.mxu_bf16 = mxu_bf16
        key = jax.random.PRNGKey(0) if key is None else key
        kw, kb = jax.random.split(key)
        limit = (1.0 / in_channels) ** 0.5
        # torch Conv2d(in, out, 1) weight (Cout, Cin, 1, 1) stored as (Cout, Cin).
        self.weight = jax.random.uniform(kw, (out_channels, in_channels),
                                         jnp.float32, -limit, limit)
        self.bias = jax.random.uniform(kb, (out_channels, 1), jnp.float32,
                                       -limit, limit)
        self.eps = jnp.zeros((1,), jnp.float32)   # eps_init = 0.0

    def __call__(self, x, edge_index, y=None):
        # x: (B, C, N, 1); edge_index: (2, B, N, K); y: optional (B, C, M, 1).
        src = x if y is None else y
        # Activation dtype passes straight through (no forced f32 casts); with
        # mxu_bf16=True, feeding bf16 activations avoids any in-kernel src cast.
        x_bcn = x[..., 0]                                             # (B, C, N)
        src_bcm = src[..., 0]                                         # (B, C, M)
        idx_bkn = jnp.transpose(edge_index[0], (0, 2, 1)).astype(jnp.int32)  # (B, K, N)
        out = gin_conv(x_bcn, src_bcm, idx_bkn, self.weight, self.bias,
                       self.eps, mxu_bf16=self.mxu_bf16)              # (B, Cout, N)
        return out[..., None]                                         # (B, Cout, N, 1)


def gin_reference(x, edge_index, weight, bias, eps, y=None):
    """Pure-JAX reference mirroring the PyTorch forward (no Pallas)."""
    src = x if y is None else y
    src_bcm = src[..., 0]                                  # (B, C, M)
    idx = edge_index[0]                                    # (B, N, K)
    x_j = jax.vmap(lambda s, i: s[:, i])(src_bcm, idx)     # (B, C, N, K)
    agg = jnp.sum(x_j, axis=-1)                            # (B, C, N)
    h = (1.0 + eps[0]) * x[..., 0] + agg                   # (B, C, N)
    out = jnp.einsum('oc,bcn->bon', weight, h,
                     precision=lax.Precision.HIGHEST) + bias[None, :, :]
    return jnp.maximum(out, 0.0)[..., None]                # (B, Cout, N, 1)


if __name__ == "__main__":
    # ---- Test 1: default f32 path (Cout > C, N a multiple of 128) ----------
    B, C, H, W = 2, 4, 16, 16
    N = H * W
    K = 9
    Cout = 8

    key = jax.random.PRNGKey(0)
    kx, ki, kp = jax.random.split(key, 3)
    x = jax.random.normal(kx, (B, C, N, 1), jnp.float32)
    nn_idx = jax.random.randint(ki, (B, N, K), 0, N, jnp.int32)
    center = jnp.broadcast_to(jnp.arange(N, dtype=jnp.int32)[None, :, None],
                              (B, N, K))
    edge_index = jnp.stack([nn_idx, center], axis=0)       # (2, B, N, K)

    mod = GINConv2dPallas(C, Cout, key=kp)
    out = jax.block_until_ready(mod(x, edge_index))
    assert out.shape == (B, Cout, N, 1), out.shape
    assert bool(jnp.all(jnp.isfinite(out)))
    ref = gin_reference(x, edge_index, mod.weight, mod.bias, mod.eps)
    # Tolerance: loose enough for MXU f32 pass decomposition / reordering,
    # tight enough to catch any structural (gather / sum / conv) error.
    err = float(jnp.max(jnp.abs(out - ref)))
    assert err < 1e-2, f"f32 path max abs err vs reference: {err}"

    # ---- Test 2: reassociated path (Cout < C), ragged N, separate y source --
    B2, C2, Cout2, N2, M2, K2 = 2, 16, 8, 300, 700, 4
    k2a, k2b, k2c, k2d = jax.random.split(jax.random.PRNGKey(0), 4)
    x2 = jax.random.normal(k2a, (B2, C2, N2, 1), jnp.float32)
    y2 = jax.random.normal(k2b, (B2, C2, M2, 1), jnp.float32)
    nb2 = jax.random.randint(k2c, (B2, N2, K2), 0, M2, jnp.int32)
    ctr2 = jnp.broadcast_to(jnp.arange(N2, dtype=jnp.int32)[None, :, None],
                            (B2, N2, K2))
    edge_index2 = jnp.stack([nb2, ctr2], axis=0)
    mod2 = GINConv2dPallas(C2, Cout2, key=k2d)
    out2 = jax.block_until_ready(mod2(x2, edge_index2, y=y2))
    assert out2.shape == (B2, Cout2, N2, 1), out2.shape
    ref2 = gin_reference(x2, edge_index2, mod2.weight, mod2.bias, mod2.eps, y=y2)
    err2 = float(jnp.max(jnp.abs(out2 - ref2)))
    assert err2 < 1e-2, f"reassociated path max abs err vs reference: {err2}"

    # ---- Test 3: bf16 MXU-operand path (exercises bf16 AT, loose tolerance) -
    mod3 = GINConv2dPallas(C, Cout, key=kp, mxu_bf16=True)
    out3 = jax.block_until_ready(mod3(x, edge_index))
    assert bool(jnp.all(jnp.isfinite(out3)))
    err3 = float(jnp.max(jnp.abs(out3 - ref)))
    assert err3 < 0.5, f"bf16 path max abs err vs reference: {err3}"

    print("KERNEL_OK")
</pallas_src>

<mosaic_0001>
module attributes {stable_mosaic.version = 11 : i64} {
  func.func @_gin_conv_kernel(%arg0: i32, %arg1: i32, %arg2: memref<1x4x256xf32, #tpu.memory_space<vmem>>, %arg3: memref<1x4x256xf32, #tpu.memory_space<vmem>>, %arg4: memref<1x9x256xi32, #tpu.memory_space<vmem>>, %arg5: memref<8x4xf32, #tpu.memory_space<vmem>>, %arg6: memref<8x1xf32, #tpu.memory_space<vmem>>, %arg7: memref<1xf32, #tpu.memory_space<smem>>, %arg8: memref<1x8x256xf32, #tpu.memory_space<vmem>>, %arg9: memref<4x256xf32, #tpu.memory_space<vmem>>) attributes {dimension_semantics = [#tpu.dimension_semantics<parallel>, #tpu.dimension_semantics<parallel>], iteration_bounds = array<i64: 2, 1>, scalar_prefetch = 0 : i64, scratch_operands = 1 : i64, tpu.core_type = #tpu.core_type<tc>, window_params = [{transform_indices = @transform_0, window_bounds = array<i64: 1, 4, 256>}, {pipeline_mode = #tpu.pipeline_mode<synchronous>, transform_indices = @transform_1, window_bounds = array<i64: 1, 4, 256>}, {transform_indices = @transform_2, window_bounds = array<i64: 1, 9, 256>}, {pipeline_mode = #tpu.pipeline_mode<synchronous>, transform_indices = @transform_3, window_bounds = array<i64: 8, 4>}, {pipeline_mode = #tpu.pipeline_mode<synchronous>, transform_indices = @transform_4, window_bounds = array<i64: 8, 1>}, {transform_indices = @transform_5, window_bounds = array<i64: 1>}, {transform_indices = @transform_6, window_bounds = array<i64: 1, 8, 256>}]} {
    %c0 = arith.constant 0 : index
    %c0_0 = arith.constant 0 : index
    %c0_1 = arith.constant 0 : index
    %0 = vector.load %arg2[%c0, %c0_0, %c0_1] : memref<1x4x256xf32, #tpu.memory_space<vmem>>, vector<1x4x256xf32>
    %1 = vector.shape_cast %0 : vector<1x4x256xf32> to vector<4x256xf32>
    %c0_2 = arith.constant 0 : index
    %c0_3 = arith.constant 0 : index
    %c0_4 = arith.constant 0 : index
    %2 = vector.load %arg4[%c0_2, %c0_3, %c0_4] : memref<1x9x256xi32, #tpu.memory_space<vmem>>, vector<1x9x256xi32>
    %3 = vector.shape_cast %2 : vector<1x9x256xi32> to vector<9x256xi32>
    %c0_5 = arith.constant 0 : index
    %c0_6 = arith.constant 0 : index
    %4 = vector.load %arg5[%c0_5, %c0_6] : memref<8x4xf32, #tpu.memory_space<vmem>>, vector<8x4xf32>
    %c0_7 = arith.constant 0 : index
    %5 = memref.load %arg7[%c0_7] : memref<1xf32, #tpu.memory_space<smem>>
    %cst = arith.constant 1.000000e+00 : f32
    %6 = arith.addf %cst, %5 : f32
    %7 = vector.broadcast %6 : f32 to vector<4x256xf32>
    %8 = arith.mulf %7, %1 : vector<4x256xf32>
    %c0_8 = arith.constant 0 : index
    %c0_9 = arith.constant 0 : index
    %9 = vector.load %arg9[%c0_8, %c0_9] : memref<4x256xf32, #tpu.memory_space<vmem>>, vector<4x256xf32>
    tpu.vector_store %arg9[%c0_8, %c0_9], %8 {strides = array<i32>} : memref<4x256xf32, #tpu.memory_space<vmem>>, vector<4x256xf32>,
    %10 = tpu.iota {dimensions = array<i32: 0>} : vector<256x256xi32>
    %c0_i32 = arith.constant 0 : i32
    %11 = vector.broadcast %c0_i32 : i32 to vector<256x256xi32>
    %12 = arith.addi %10, %11 : vector<256x256xi32>
    %cst_10 = arith.constant 0.000000e+00 : f32
    %13 = vector.broadcast %cst_10 : f32 to vector<256x256xf32>
    %14 = vector.extract_strided_slice %3 {offsets = [0, 0], sizes = [1, 256], strides = [1, 1]} : vector<9x256xi32> to vector<1x256xi32>
    %15 = vector.broadcast %14 : vector<1x256xi32> to vector<256x256xi32>
    %16 = arith.cmpi eq, %12, %15 : vector<256x256xi32>
    %17 = arith.extui %16 : vector<256x256xi1> to vector<256x256xi32>
    %18 = arith.sitofp %17 : vector<256x256xi32> to vector<256x256xf32>
    %19 = arith.addf %13, %18 : vector<256x256xf32>
    %20 = vector.extract_strided_slice %3 {offsets = [1, 0], sizes = [1, 256], strides = [1, 1]} : vector<9x256xi32> to vector<1x256xi32>
    %21 = vector.broadcast %20 : vector<1x256xi32> to vector<256x256xi32>
    %22 = arith.cmpi eq, %12, %21 : vector<256x256xi32>
    %23 = arith.extui %22 : vector<256x256xi1> to vector<256x256xi32>
    %24 = arith.sitofp %23 : vector<256x256xi32> to vector<256x256xf32>
    %25 = arith.addf %19, %24 : vector<256x256xf32>
    %26 = vector.extract_strided_slice %3 {offsets = [2, 0], sizes = [1, 256], strides = [1, 1]} : vector<9x256xi32> to vector<1x256xi32>
    %27 = vector.broadcast %26 : vector<1x256xi32> to vector<256x256xi32>
    %28 = arith.cmpi eq, %12, %27 : vector<256x256xi32>
    %29 = arith.extui %28 : vector<256x256xi1> to vector<256x256xi32>
    %30 = arith.sitofp %29 : vector<256x256xi32> to vector<256x256xf32>
    %31 = arith.addf %25, %30 : vector<256x256xf32>
    %32 = vector.extract_strided_slice %3 {offsets = [3, 0], sizes = [1, 256], strides = [1, 1]} : vector<9x256xi32> to vector<1x256xi32>
    %33 = vector.broadcast %32 : vector<1x256xi32> to vector<256x256xi32>
    %34 = arith.cmpi eq, %12, %33 : vector<256x256xi32>
    %35 = arith.extui %34 : vector<256x256xi1> to vector<256x256xi32>
    %36 = arith.sitofp %35 : vector<256x256xi32> to vector<256x256xf32>
    %37 = arith.addf %31, %36 : vector<256x256xf32>
    %38 = vector.extract_strided_slice %3 {offsets = [4, 0], sizes = [1, 256], strides = [1, 1]} : vector<9x256xi32> to vector<1x256xi32>
    %39 = vector.broadcast %38 : vector<1x256xi32> to vector<256x256xi32>
    %40 = arith.cmpi eq, %12, %39 : vector<256x256xi32>
    %41 = arith.extui %40 : vector<256x256xi1> to vector<256x256xi32>
    %42 = arith.sitofp %41 : vector<256x256xi32> to vector<256x256xf32>
    %43 = arith.addf %37, %42 : vector<256x256xf32>
    %44 = vector.extract_strided_slice %3 {offsets = [5, 0], sizes = [1, 256], strides = [1, 1]} : vector<9x256xi32> to vector<1x256xi32>
    %45 = vector.broadcast %44 : vector<1x256xi32> to vector<256x256xi32>
    %46 = arith.cmpi eq, %12, %45 : vector<256x256xi32>
    %47 = arith.extui %46 : vector<256x256xi1> to vector<256x256xi32>
    %48 = arith.sitofp %47 : vector<256x256xi32> to vector<256x256xf32>
    %49 = arith.addf %43, %48 : vector<256x256xf32>
    %50 = vector.extract_strided_slice %3 {offsets = [6, 0], sizes = [1, 256], strides = [1, 1]} : vector<9x256xi32> to vector<1x256xi32>
    %51 = vector.broadcast %50 : vector<1x256xi32> to vector<256x256xi32>
    %52 = arith.cmpi eq, %12, %51 : vector<256x256xi32>
    %53 = arith.extui %52 : vector<256x256xi1> to vector<256x256xi32>
    %54 = arith.sitofp %53 : vector<256x256xi32> to vector<256x256xf32>
    %55 = arith.addf %49, %54 : vector<256x256xf32>
    %56 = vector.extract_strided_slice %3 {offsets = [7, 0], sizes = [1, 256], strides = [1, 1]} : vector<9x256xi32> to vector<1x256xi32>
    %57 = vector.broadcast %56 : vector<1x256xi32> to vector<256x256xi32>
    %58 = arith.cmpi eq, %12, %57 : vector<256x256xi32>
    %59 = arith.extui %58 : vector<256x256xi1> to vector<256x256xi32>
    %60 = arith.sitofp %59 : vector<256x256xi32> to vector<256x256xf32>
    %61 = arith.addf %55, %60 : vector<256x256xf32>
    %62 = vector.extract_strided_slice %3 {offsets = [8, 0], sizes = [1, 256], strides = [1, 1]} : vector<9x256xi32> to vector<1x256xi32>
    %63 = vector.broadcast %62 : vector<1x256xi32> to vector<256x256xi32>
    %64 = arith.cmpi eq, %12, %63 : vector<256x256xi32>
    %65 = arith.extui %64 : vector<256x256xi1> to vector<256x256xi32>
    %66 = arith.sitofp %65 : vector<256x256xi32> to vector<256x256xf32>
    %67 = arith.addf %61, %66 : vector<256x256xf32>
    %c0_11 = arith.constant 0 : index
    %c0_12 = arith.constant 0 : index
    %c0_13 = arith.constant 0 : index
    %68 = vector.load %arg3[%c0_11, %c0_12, %c0_13] : memref<1x4x256xf32, #tpu.memory_space<vmem>>, vector<1x4x256xf32>
    %69 = vector.shape_cast %68 : vector<1x4x256xf32> to vector<4x256xf32>
    %c0_14 = arith.constant 0 : index
    %c0_15 = arith.constant 0 : index
    %70 = vector.load %arg9[%c0_14, %c0_15] : memref<4x256xf32, #tpu.memory_space<vmem>>, vector<4x256xf32>
    %cst_16 = arith.constant dense<0.000000e+00> : vector<4x256xf32>
    %71 = tpu.matmul %69, %67, %cst_16 {dimension_numbers = #tpu.dot_dimension_numbers<[1], [0], [0], [1], [0, 0, 1, 1], [], []>} : vector<4x256xf32>, vector<256x256xf32>, vector<4x256xf32> -> vector<4x256xf32>
    %72 = arith.addf %70, %71 : vector<4x256xf32>
    %c0_17 = arith.constant 0 : index
    %c0_18 = arith.constant 0 : index
    %73 = vector.load %arg9[%c0_17, %c0_18] : memref<4x256xf32, #tpu.memory_space<vmem>>, vector<4x256xf32>
    tpu.vector_store %arg9[%c0_17, %c0_18], %72 {strides = array<i32>} : memref<4x256xf32, #tpu.memory_space<vmem>>, vector<4x256xf32>,
    %c0_19 = arith.constant 0 : index
    %c0_20 = arith.constant 0 : index
    %74 = vector.load %arg9[%c0_19, %c0_20] : memref<4x256xf32, #tpu.memory_space<vmem>>, vector<4x256xf32>
    %cst_21 = arith.constant dense<0.000000e+00> : vector<8x256xf32>
    %75 = tpu.matmul %4, %74, %cst_21 {dimension_numbers = #tpu.dot_dimension_numbers<[1], [0], [0], [1], [0, 0, 1, 1], [], []>} : vector<8x4xf32>, vector<4x256xf32>, vector<8x256xf32> -> vector<8x256xf32>
    %c0_22 = arith.constant 0 : index
    %c0_23 = arith.constant 0 : index
    %76 = vector.load %arg6[%c0_22, %c0_23] : memref<8x1xf32, #tpu.memory_space<vmem>>, vector<8x1xf32>
    %77 = vector.broadcast %76 : vector<8x1xf32> to vector<8x256xf32>
    %78 = arith.addf %75, %77 : vector<8x256xf32>
    %cst_24 = arith.constant 0.000000e+00 : f32
    %79 = vector.broadcast %cst_24 : f32 to vector<8x256xf32>
    %80 = arith.maximumf %78, %79 : vector<8x256xf32>
    %c0_25 = arith.constant 0 : index
    %c0_26 = arith.constant 0 : index
    %c0_27 = arith.constant 0 : index
    %81 = vector.load %arg8[%c0_25, %c0_26, %c0_27] : memref<1x8x256xf32, #tpu.memory_space<vmem>>, vector<1x8x256xf32>
    %82 = vector.shape_cast %81 : vector<1x8x256xf32> to vector<8x256xf32>
    %83 = vector.shape_cast %80 : vector<8x256xf32> to vector<1x8x256xf32>
    tpu.vector_store %arg8[%c0_25, %c0_26, %c0_27], %83 {strides = array<i32>} : memref<1x8x256xf32, #tpu.memory_space<vmem>>, vector<1x8x256xf32>,
    return
  }
  func.func @transform_0(%arg0: i32, %arg1: i32) -> (i32, i32, i32) {
    %c0_i32 = arith.constant 0 : i32
    %c0_i32_0 = arith.constant 0 : i32
    return %arg0, %c0_i32, %arg1 : i32, i32, i32
  }
  func.func @transform_1(%arg0: i32, %arg1: i32) -> (i32, i32, i32) {
    %c0_i32 = arith.constant 0 : i32
    %c0_i32_0 = arith.constant 0 : i32
    %c0_i32_1 = arith.constant 0 : i32
    return %arg0, %c0_i32, %c0_i32_0 : i32, i32, i32
  }
  func.func @transform_2(%arg0: i32, %arg1: i32) -> (i32, i32, i32) {
    %c0_i32 = arith.constant 0 : i32
    %c0_i32_0 = arith.constant 0 : i32
    return %arg0, %c0_i32, %arg1 : i32, i32, i32
  }
  func.func @transform_3(%arg0: i32, %arg1: i32) -> (i32, i32) {
    %c0_i32 = arith.constant 0 : i32
    %c0_i32_0 = arith.constant 0 : i32
    %c0_i32_1 = arith.constant 0 : i32
    return %c0_i32, %c0_i32_0 : i32, i32
  }
  func.func @transform_4(%arg0: i32, %arg1: i32) -> (i32, i32) {
    %c0_i32 = arith.constant 0 : i32
    %c0_i32_0 = arith.constant 0 : i32
    %c0_i32_1 = arith.constant 0 : i32
    return %c0_i32, %c0_i32_0 : i32, i32
  }
  func.func @transform_5(%arg0: i32, %arg1: i32) -> i32 {
    %c0_i32 = arith.constant 0 : i32
    %c0_i32_0 = arith.constant 0 : i32
    return %c0_i32 : i32
  }
  func.func @transform_6(%arg0: i32, %arg1: i32) -> (i32, i32, i32) {
    %c0_i32 = arith.constant 0 : i32
    %c0_i32_0 = arith.constant 0 : i32
    return %arg0, %c0_i32, %arg1 : i32, i32, i32
  }
}

</mosaic_0001>

<llo_original>
// kernel: tpu_custom_call.1
$region0: #{tpu_custom_call.1}
  #allocation0 [shape = 'u32[]', space=smem, size = 0x4, offset = 0x4, fixed_abs, tag = 'smem constant byte address 0x4 - core index']
  #allocation1 [shape = 'u32[144,128]{1,0:T(1,128)}', space=vmem, size = 0x12000, scoped, tag = 'internal scratch']
  #allocation2 [shape = 'f32[4,256]{1,0:T(4,128)}', space=vmem, size = 0x1000, scoped, tag = 'scratch operand']
  #allocation3 [shape = 'f32[1]{0:T(128)S(6)}', space=smem, size = 0x200, scoped, tag = 'scoped memory for tpu_custom_call.1']
  %s0 = inlined_call_operand.vmem [shape: f32[2,4,256], index: 0, kind: input, shape index: {}]
  %s1 = inlined_call_operand.vmem [shape: f32[2,4,256], index: 1, kind: input, shape index: {}]
  %s2 = inlined_call_operand.vmem [shape: s32[2,9,256], index: 2, kind: input, shape index: {}]
  %s3 = inlined_call_operand.vmem [shape: f32[8,4], index: 3, kind: input, shape index: {}]
  %s4 = inlined_call_operand.vmem [shape: f32[8,1], index: 4, kind: input, shape index: {}]
  %s5 = inlined_call_operand.<no memory space> [shape: f32[1], index: 5, kind: input, shape index: {}]
  %s6 = inlined_call_operand.hbm [shape: f32[2,8,256], index: 6, kind: output, shape index: {}]
  %s7 = sld [smem:[#allocation0]]
  $region57: #{tpu_custom_call.1} parent=0
    _
  %s9 = ssub.s32 1, %s7
  %s10 = scalar_select 0, %s9, %s7
  %11 = sst [smem:[#allocation3]] %s5
  $region1: #{tpu_custom_call.1} parent=0
    #allocation4 [shape = 'u8[16384]{0}', space=vmem, size = 0x4000, scoped, tag = 'output window, operand 0']
    #allocation5 [shape = 's32[2]{0}', space=sflag, size = 0x8, scoped, tag = 'scoped memory for tpu_custom_call.1']
    %12 = vsyncpa [#allocation5], 0
    %s13 = scalar_lea.sflag [#allocation5], 1
    %14 = vsyncpa %s13, 0
    loop: start=0, step=1, limit=4
    $region2: #{tpu_custom_call.1} parent=1 // loop_pre_header
      _
    $region3: #{tpu_custom_call.1} parent=1 // loop_header
      %s16 = sphi 0, %s20
      %p17 = scmp.ge.s32.totalorder %s16, 4
      %s23 = sphi 0, %s35
      %s24 = sphi 0, %s31
      %s25 = sphi 0, %s23
      %s26 = sphi 0, %s24
      %s27 = sphi 0, %s25
      %s28 = sphi 0, %s26
      %s40 = sphi 0, %s42
      %s43 = sphi 0, %s40
      %s44 = sphi 0, %s43
      %s60 = sphi 0, %s44
      %s66 = sphi 0, %s68
      %s69 = sphi 0, %s66
      %s70 = sphi 0, %s69
      %s86 = sphi 0, %s70
      %s94 = sphi 0, %s96
      %s97 = sphi 0, %s94
      %s98 = sphi 0, %s97
      %s114 = sphi 0, %s98
      %s118 = sphi 0, %s118
      %s120 = sphi 0, %s118
      %s121 = sphi 0, %s120
      %s135 = sphi 0, %s121
      %s139 = sphi 0, %s139
      %s141 = sphi 0, %s139
      %s142 = sphi 0, %s141
      %s156 = sphi 0, %s142
      %s160 = sphi 0, %s160
      %s162 = sphi 0, %s160
      %s163 = sphi 0, %s162
      %s177 = sphi 0, %s163
      %s185 = sphi 0, %s187
      %s188 = sphi 0, %s185
      %s189 = sphi 0, %s188
      %s205 = sphi 0, %s189
    $region4: #{tpu_custom_call.1} parent=1 // loop_header_branch
      %19 = sbr.rel (%p17) target = $region8
    $region5: #{tpu_custom_call.1} parent=1 // loop_body
      %s21 = ssub.s32 %s16, 1
      %s22 = ssub.s32 %s16, 2
      %s29 = sadd.s32 1, %s24
      %p30 = scmp.ge.s32.totalorder %s29, 1
      %s31 = scalar_select %p30, 0, %s29
      %s32 = sadd.s32 1, %s23
      %s33 = scalar_select %p30, %s32, %s23
      %p34 = scmp.ge.s32.totalorder %s33, 2
      %s35 = scalar_select %p34, 0, %s33
      %s36 = ssub.s32 %s23, %s35
      %s37 = ssub.s32 %s24, %s31
      %s38 = sor.u32 %s36, %s37
      %p39 = scmp.eq.s32.totalorder %s38, 0
      %s41 = sadd.s32 %s40, 1
      %s42 = scalar_select %p39, %s40, %s41
      %p45 = pneg %p39
      %p46 = scmp.eq.s32.totalorder %s16, 1
      %p47 = por %p45, %p46
      %p48 = scmp.ne.s32.totalorder %s40, %s43
      %p49 = scmp.eq.s32.totalorder %s16, 0
      %p50 = por %p48, %p49
      %p51 = scmp.ne.s32.totalorder %s40, %s43
      %p52 = scmp.eq.s32.totalorder %s21, 1
      %p53 = por %p51, %p52
      %p54 = scmp.ne.s32.totalorder %s43, %s44
      %p55 = scmp.eq.s32.totalorder %s21, 0
      %p56 = por %p54, %p55
      %p57 = scmp.ne.s32.totalorder %s43, %s44
      %p58 = scmp.eq.s32.totalorder %s22, 1
      %p59 = por %p57, %p58
      %p61 = scmp.ne.s32.totalorder %s44, %s60
      %p62 = scmp.eq.s32.totalorder %s22, 0
      %p63 = por %p61, %p62
      %s64 = ssub.s32 %s23, %s35
      %p65 = scmp.eq.s32.totalorder %s64, 0
      %s67 = sadd.s32 %s66, 1
      %s68 = scalar_select %p65, %s66, %s67
      %p71 = pneg %p65
      %p72 = scmp.eq.s32.totalorder %s16, 1
      %p73 = por %p71, %p72
      %p74 = scmp.ne.s32.totalorder %s66, %s69
      %p75 = scmp.eq.s32.totalorder %s16, 0
      %p76 = por %p74, %p75
      %p77 = scmp.ne.s32.totalorder %s66, %s69
      %p78 = scmp.eq.s32.totalorder %s21, 1
      %p79 = por %p77, %p78
      %p80 = scmp.ne.s32.totalorder %s69, %s70
      %p81 = scmp.eq.s32.totalorder %s21, 0
      %p82 = por %p80, %p81
      %p83 = scmp.ne.s32.totalorder %s69, %s70
      %p84 = scmp.eq.s32.totalorder %s22, 1
      %p85 = por %p83, %p84
      %p87 = scmp.ne.s32.totalorder %s70, %s86
      %p88 = scmp.eq.s32.totalorder %s22, 0
      %p89 = por %p87, %p88
      %s90 = ssub.s32 %s23, %s35
      %s91 = ssub.s32 %s24, %s31
      %s92 = sor.u32 %s90, %s91
      %p93 = scmp.eq.s32.totalorder %s92, 0
      %s95 = sadd.s32 %s94, 1
      %s96 = scalar_select %p93, %s94, %s95
      %p99 = pneg %p93
      %p100 = scmp.eq.s32.totalorder %s16, 1
      %p101 = por %p99, %p100
      %p102 = scmp.ne.s32.totalorder %s94, %s97
      %p103 = scmp.eq.s32.totalorder %s16, 0
      %p104 = por %p102, %p103
      %p105 = scmp.ne.s32.totalorder %s94, %s97
      %p106 = scmp.eq.s32.totalorder %s21, 1
      %p107 = por %p105, %p106
      %p108 = scmp.ne.s32.totalorder %s97, %s98
      %p109 = scmp.eq.s32.totalorder %s21, 0
      %p110 = por %p108, %p109
      %p111 = scmp.ne.s32.totalorder %s97, %s98
      %p112 = scmp.eq.s32.totalorder %s22, 1
      %p113 = por %p111, %p112
      %p115 = scmp.ne.s32.totalorder %s98, %s114
      %p116 = scmp.eq.s32.totalorder %s22, 0
      %p117 = por %p115, %p116
      %s119 = sadd.s32 %s118, 1
      %p122 = scmp.eq.s32.totalorder %s16, 1
      %p123 = scmp.ne.s32.totalorder %s118, %s120
      %p124 = scmp.eq.s32.totalorder %s16, 0
      %p125 = por %p123, %p124
      %p126 = scmp.ne.s32.totalorder %s118, %s120
      %p127 = scmp.eq.s32.totalorder %s21, 1
      %p128 = por %p126, %p127
      %p129 = scmp.ne.s32.totalorder %s120, %s121
      %p130 = scmp.eq.s32.totalorder %s21, 0
      %p131 = por %p129, %p130
      %p132 = scmp.ne.s32.totalorder %s120, %s121
      %p133 = scmp.eq.s32.totalorder %s22, 1
      %p134 = por %p132, %p133
      %p136 = scmp.ne.s32.totalorder %s121, %s135
      %p137 = scmp.eq.s32.totalorder %s22, 0
      %p138 = por %p136, %p137
      %s140 = sadd.s32 %s139, 1
      %p143 = scmp.eq.s32.totalorder %s16, 1
      %p144 = scmp.ne.s32.totalorder %s139, %s141
      %p145 = scmp.eq.s32.totalorder %s16, 0
      %p146 = por %p144, %p145
      %p147 = scmp.ne.s32.totalorder %s139, %s141
      %p148 = scmp.eq.s32.totalorder %s21, 1
      %p149 = por %p147, %p148
      %p150 = scmp.ne.s32.totalorder %s141, %s142
      %p151 = scmp.eq.s32.totalorder %s21, 0
      %p152 = por %p150, %p151
      %p153 = scmp.ne.s32.totalorder %s141, %s142
      %p154 = scmp.eq.s32.totalorder %s22, 1
      %p155 = por %p153, %p154
      %p157 = scmp.ne.s32.totalorder %s142, %s156
      %p158 = scmp.eq.s32.totalorder %s22, 0
      %p159 = por %p157, %p158
      %s161 = sadd.s32 %s160, 1
      %p164 = scmp.eq.s32.totalorder %s16, 1
      %p165 = scmp.ne.s32.totalorder %s160, %s162
      %p166 = scmp.eq.s32.totalorder %s16, 0
      %p167 = por %p165, %p166
      %p168 = scmp.ne.s32.totalorder %s160, %s162
      %p169 = scmp.eq.s32.totalorder %s21, 1
      %p170 = por %p168, %p169
      %p171 = scmp.ne.s32.totalorder %s162, %s163
      %p172 = scmp.eq.s32.totalorder %s21, 0
      %p173 = por %p171, %p172
      %p174 = scmp.ne.s32.totalorder %s162, %s163
      %p175 = scmp.eq.s32.totalorder %s22, 1
      %p176 = por %p174, %p175
      %p178 = scmp.ne.s32.totalorder %s163, %s177
      %p179 = scmp.eq.s32.totalorder %s22, 0
      %p180 = por %p178, %p179
      %s181 = ssub.s32 %s23, %s35
      %s182 = ssub.s32 %s24, %s31
      %s183 = sor.u32 %s181, %s182
      %p184 = scmp.eq.s32.totalorder %s183, 0
      %s186 = sadd.s32 %s185, 1
      %s187 = scalar_select %p184, %s185, %s186
      %p190 = pneg %p184
      %p191 = scmp.eq.s32.totalorder %s16, 1
      %p192 = por %p190, %p191
      %p193 = scmp.ne.s32.totalorder %s185, %s188
      %p194 = scmp.eq.s32.totalorder %s16, 0
      %p195 = por %p193, %p194
      %p196 = scmp.ne.s32.totalorder %s185, %s188
      %p197 = scmp.eq.s32.totalorder %s21, 1
      %p198 = por %p196, %p197
      %p199 = scmp.ne.s32.totalorder %s188, %s189
      %p200 = scmp.eq.s32.totalorder %s21, 0
      %p201 = por %p199, %p200
      %p202 = scmp.ne.s32.totalorder %s188, %s189
      %p203 = scmp.eq.s32.totalorder %s22, 1
      %p204 = por %p202, %p203
      %p206 = scmp.ne.s32.totalorder %s189, %s205
      %p207 = scmp.eq.s32.totalorder %s22, 0
      %p208 = por %p206, %p207
      %p209 = scmp.le.s32.totalorder 1, %s16
      %p210 = scmp.lt.s32.totalorder %s16, 3
      %p211 = pnand %p209, %p210
      %p212 = pneg %p211
      // Predicated region
      $region9: #{tpu_custom_call.1} parent=5 // pred_check
        _
      $region10: #{tpu_custom_call.1} parent=5 // pred_check_branch
        %214 = sbr.rel (%p211) target = $region12
      $region11: #{tpu_custom_call.1} parent=5 // pred_region
        %s215 = ssub.s32 %s16, 1
        // Predicated region
        $region13: #{tpu_custom_call.1} parent=11 // pred_check
          %p216 = pneg %p82
        $region14: #{tpu_custom_call.1} parent=11 // pred_check_branch
          %218 = sbr.rel (%p216) target = $region16
        $region15: #{tpu_custom_call.1} parent=11 // pred_region
          %p219 = scmp.lt.s32.totalorder %s25, 1
          %s220 = scalar_select %p219, %s25, 1
          %s221 = smul.addr %s220, 2
          %s222 = smul.addr %s221, 4
          %s223 = scalar_lea.vmem %s1, %s222
        $region16: #{tpu_custom_call.1} parent=11 // pred_fallthru
          _
        // Predicated region
        $region17: #{tpu_custom_call.1} parent=11 // pred_check
          %p224 = pneg %p131
        $region18: #{tpu_custom_call.1} parent=11 // pred_check_branch
          %226 = sbr.rel (%p224) target = $region20
        $region19: #{tpu_custom_call.1} parent=11 // pred_region
          _
        $region20: #{tpu_custom_call.1} parent=11 // pred_fallthru
          _
        // Predicated region
        $region21: #{tpu_custom_call.1} parent=11 // pred_check
          %p227 = pneg %p152
        $region22: #{tpu_custom_call.1} parent=11 // pred_check_branch
          %229 = sbr.rel (%p227) target = $region24
        $region23: #{tpu_custom_call.1} parent=11 // pred_region
          _
        $region24: #{tpu_custom_call.1} parent=11 // pred_fallthru
          _
        // Predicated region
        $region25: #{tpu_custom_call.1} parent=11 // pred_check
          %p230 = pneg %p173
        $region26: #{tpu_custom_call.1} parent=11 // pred_check_branch
          %232 = sbr.rel (%p230) target = $region28
        $region27: #{tpu_custom_call.1} parent=11 // pred_region
          _
        $region28: #{tpu_custom_call.1} parent=11 // pred_fallthru
          _
      $region12: #{tpu_custom_call.1} parent=5 // pred_fallthru
        _
      %p233 = scmp.lt.s32.totalorder %s16, 2
      // Predicated region
      $region29: #{tpu_custom_call.1} parent=5 // pred_check
        %p234 = pneg %p233
      $region30: #{tpu_custom_call.1} parent=5 // pred_check_branch
        %236 = sbr.rel (%p234) target = $region32
      $region31: #{tpu_custom_call.1} parent=5 // pred_region
        // Predicated region
        $region33: #{tpu_custom_call.1} parent=31 // pred_check
          %p237 = pneg %p50
        $region34: #{tpu_custom_call.1} parent=31 // pred_check_branch
          %239 = sbr.rel (%p237) target = $region36
        $region35: #{tpu_custom_call.1} parent=31 // pred_region
          %s240 = smul.u32 2, %s24
          %p241 = scmp.lt.s32.totalorder %s23, 1
          %s242 = scalar_select %p241, %s23, 1
          %p243 = scmp.lt.s32.totalorder %s240, 1
          %s244 = scalar_select %p243, %s240, 1
          %s245 = smul.addr %s242, 2
          %s246 = sadd.s32 %s244, %s245
          %s247 = smul.addr %s246, 4
          %s248 = scalar_lea.vmem %s0, %s247
          %s249 = smul.u32 2, %s24
        $region36: #{tpu_custom_call.1} parent=31 // pred_fallthru
          _
        // Predicated region
        $region37: #{tpu_custom_call.1} parent=31 // pred_check
          %p250 = pneg %p104
        $region38: #{tpu_custom_call.1} parent=31 // pred_check_branch
          %252 = sbr.rel (%p250) target = $region40
        $region39: #{tpu_custom_call.1} parent=31 // pred_region
          %s253 = smul.u32 2, %s24
          %p254 = scmp.lt.s32.totalorder %s23, 1
          %s255 = scalar_select %p254, %s23, 1
          %p256 = scmp.lt.s32.totalorder %s253, 1
          %s257 = scalar_select %p256, %s253, 1
          %s258 = smul.addr %s255, 4
          %s259 = sadd.s32 %s257, %s258
          %s260 = smul.addr %s259, 8
          %s261 = scalar_lea.vmem %s2, %s260
          %s262 = smul.u32 2, %s24
        $region40: #{tpu_custom_call.1} parent=31 // pred_fallthru
          _
      $region32: #{tpu_custom_call.1} parent=5 // pred_fallthru
        _
      %p263 = scmp.le.s32.totalorder 1, %s16
      %p264 = scmp.lt.s32.totalorder %s16, 3
      %p265 = pnand %p263, %p264
      %p266 = pneg %p265
      // Predicated region
      $region41: #{tpu_custom_call.1} parent=5 // pred_check
        _
      $region42: #{tpu_custom_call.1} parent=5 // pred_check_branch
        %268 = sbr.rel (%p265) target = $region44
      $region43: #{tpu_custom_call.1} parent=5 // pred_region
        %s269 = ssub.s32 %s16, 1
        %s270 = smul.u32 2, %s26
        %p271 = scmp.lt.s32.totalorder %s25, 1
        %s272 = scalar_select %p271, %s25, 1
        %p273 = scmp.lt.s32.totalorder %s270, 1
        %s274 = scalar_select %p273, %s270, 1
        %s275 = smul.addr %s272, 2
        %s276 = sadd.s32 %s274, %s275
        %s277 = smul.addr %s276, 4
        %s278 = scalar_lea.vmem %s0, %s277
        %p279 = pneg %p56
        %p280 = pneg %p53
        %p281 = scmp.lt.s32.totalorder %s25, 1
        %s282 = scalar_select %p281, %s25, 1
        %s283 = smul.addr %s282, 2
        %s284 = smul.addr %s283, 4
        %s285 = scalar_lea.vmem %s1, %s284
        %p286 = pneg %p82
        %p287 = pneg %p79
        %s288 = smul.u32 2, %s26
        %p289 = scmp.lt.s32.totalorder %s25, 1
        %s290 = scalar_select %p289, %s25, 1
        %p291 = scmp.lt.s32.totalorder %s288, 1
        %s292 = scalar_select %p291, %s288, 1
        %s293 = smul.addr %s290, 4
        %s294 = sadd.s32 %s292, %s293
        %s295 = smul.addr %s294, 8
        %s296 = scalar_lea.vmem %s2, %s295
        %p297 = pneg %p110
        %p298 = pneg %p107
        %p299 = pneg %p131
        %p300 = pneg %p128
        %p301 = pneg %p152
        %p302 = pneg %p149
        %p303 = pneg %p173
        %p304 = pneg %p170
        %p305 = pneg %p201
        %p306 = pneg %p198
        %s307 = sand.u32 %s188, 1
        %s308 = scalar_lea.sflag [#allocation5], %s307
        %s309 = sand.u32 %s188, 1
        %s310 = smul.addr %s309, 16
        %s311 = scalar_lea.vmem [#allocation4], %s310
        %s312 = smul.u32 2, %s26
        %p313 = scmp.lt.s32.totalorder %s25, 1
        %s314 = scalar_select %p313, %s25, 1
        %p315 = scmp.lt.s32.totalorder %s312, 1
        %s316 = scalar_select %p315, %s312, 1
        %s317 = smul.addr %s314, 2
        %s318 = sadd.s32 %s316, %s317
        %s319 = smul.addr %s318, 4
        %s320 = scalar_lea.vmem %s0, %s319
        %s321 = smul.u32 2, %s26
        %p322 = scmp.lt.s32.totalorder %s25, 1
        %s323 = scalar_select %p322, %s25, 1
        %s324 = smul.addr %s323, 2
        %s325 = smul.addr %s324, 4
        %s326 = scalar_lea.vmem %s1, %s325
        %s327 = smul.u32 2, %s26
        %p328 = scmp.lt.s32.totalorder %s25, 1
        %s329 = scalar_select %p328, %s25, 1
        %p330 = scmp.lt.s32.totalorder %s327, 1
        %s331 = scalar_select %p330, %s327, 1
        %s332 = smul.addr %s329, 4
        %s333 = sadd.s32 %s331, %s332
        %s334 = smul.addr %s333, 8
        %s335 = scalar_lea.vmem %s2, %s334
        %s336 = smul.u32 2, %s26
        %s337 = smul.u32 2, %s26
        %v338 = vld [vmem:[%s320] sm:$0xff]
        %v339 = vld [vmem:[%s335] sm:$0xff]
        %v340 = vld [vmem:[%s335 + $0x8] sm:$0xff]
        %v341 = vld [vmem:[%s335 + $0x10] sm:$0x1]
        %v342 = vld [vmem:[%s335 + $0x18] sm:$0x1]
        %v343 = vld [vmem:[%s3] sm:$0xff]
        %s344 = sld [smem:[#allocation3]]
        %s345 = sadd.f32 %s344, 1.0
        %v346 = vstv %s345
        %v347 = vmul.f32 %v346, %v338
        %348 = vst [vmem:[#allocation2] sm:$0xff] %v347
        %v349 = vlaneseq
        %v350 = vshrl.u32 %v349, 7
        %v351 = vadd.s32 %v350, 8
        %v352 = vadd.s32 %v350, 16
        %v353 = vadd.s32 %v350, 24
        %v354 = vadd.s32 %v350, 32
        %v355 = vadd.s32 %v350, 40
        %v356 = vadd.s32 %v350, 48
        %v357 = vadd.s32 %v350, 56
        %v358 = vadd.s32 %v350, 64
        %v359 = vadd.s32 %v350, 72
        %v360 = vadd.s32 %v350, 80
        %v361 = vadd.s32 %v350, 88
        %v362 = vadd.s32 %v350, 96
        %v363 = vadd.s32 %v350, 104
        %v364 = vadd.s32 %v350, 112
        %v365 = vadd.s32 %v350, 120
        %v366 = vadd.s32 %v350, 128
        %v367 = vadd.s32 %v350, 136
        %v368 = vadd.s32 %v350, 144
        %v369 = vadd.s32 %v350, 152
        %v370 = vadd.s32 %v350, 160
        %v371 = vadd.s32 %v350, 168
        %v372 = vadd.s32 %v350, 176
        %v373 = vadd.s32 %v350, 184
        %v374 = vadd.s32 %v350, 192
        %v375 = vadd.s32 %v350, 200
        %v376 = vadd.s32 %v350, 208
        %v377 = vadd.s32 %v350, 216
        %v378 = vadd.s32 %v350, 224
        %v379 = vadd.s32 %v350, 232
        %v380 = vadd.s32 %v350, 240
        %v381 = vadd.s32 %v350, 248
        %v382 = vlaneseq
        %v383 = vshrl.u32 %v382, 7
        %v384 = vsub.s32 0, %v383
        %v385 = vrot.slane %v339, %v384
        %v386 = vlaneseq
        %v387 = vshrl.u32 %v386, 7
        %v388 = vsub.s32 0, %v387
        %v389 = vrot.slane %v340, %v388
        %vm390 = vcmp.eq.s32.totalorder %v350, %v385
        %vm391 = vcmp.eq.s32.totalorder %v350, %v389
        %vm392 = vcmp.eq.s32.totalorder %v351, %v385
        %vm393 = vcmp.eq.s32.totalorder %v351, %v389
        %vm394 = vcmp.eq.s32.totalorder %v352, %v385
        %vm395 = vcmp.eq.s32.totalorder %v352, %v389
        %vm396 = vcmp.eq.s32.totalorder %v353, %v385
        %vm397 = vcmp.eq.s32.totalorder %v353, %v389
        %vm398 = vcmp.eq.s32.totalorder %v354, %v385
        %vm399 = vcmp.eq.s32.totalorder %v354, %v389
        %vm400 = vcmp.eq.s32.totalorder %v355, %v385
        %vm401 = vcmp.eq.s32.totalorder %v355, %v389
        %vm402 = vcmp.eq.s32.totalorder %v356, %v385
        %vm403 = vcmp.eq.s32.totalorder %v356, %v389
        %vm404 = vcmp.eq.s32.totalorder %v357, %v385
        %vm405 = vcmp.eq.s32.totalorder %v357, %v389
        %vm406 = vcmp.eq.s32.totalorder %v358, %v385
        %vm407 = vcmp.eq.s32.totalorder %v358, %v389
        %vm408 = vcmp.eq.s32.totalorder %v359, %v385
        %vm409 = vcmp.eq.s32.totalorder %v359, %v389
        %vm410 = vcmp.eq.s32.totalorder %v360, %v385
        %vm411 = vcmp.eq.s32.totalorder %v360, %v389
        %vm412 = vcmp.eq.s32.totalorder %v361, %v385
        %vm413 = vcmp.eq.s32.totalorder %v361, %v389
        %vm414 = vcmp.eq.s32.totalorder %v362, %v385
        %vm415 = vcmp.eq.s32.totalorder %v362, %v389
        %vm416 = vcmp.eq.s32.totalorder %v363, %v385
        %vm417 = vcmp.eq.s32.totalorder %v363, %v389
        %vm418 = vcmp.eq.s32.totalorder %v364, %v385
        %vm419 = vcmp.eq.s32.totalorder %v364, %v389
        %vm420 = vcmp.eq.s32.totalorder %v365, %v385
        %vm421 = vcmp.eq.s32.totalorder %v365, %v389
        %vm422 = vcmp.eq.s32.totalorder %v366, %v385
        %vm423 = vcmp.eq.s32.totalorder %v366, %v389
        %vm424 = vcmp.eq.s32.totalorder %v367, %v385
        %vm425 = vcmp.eq.s32.totalorder %v367, %v389
        %vm426 = vcmp.eq.s32.totalorder %v368, %v385
        %vm427 = vcmp.eq.s32.totalorder %v368, %v389
        %vm428 = vcmp.eq.s32.totalorder %v369, %v385
        %vm429 = vcmp.eq.s32.totalorder %v369, %v389
        %vm430 = vcmp.eq.s32.totalorder %v370, %v385
        %vm431 = vcmp.eq.s32.totalorder %v370, %v389
        %vm432 = vcmp.eq.s32.totalorder %v371, %v385
        %vm433 = vcmp.eq.s32.totalorder %v371, %v389
        %vm434 = vcmp.eq.s32.totalorder %v372, %v385
        %vm435 = vcmp.eq.s32.totalorder %v372, %v389
        %vm436 = vcmp.eq.s32.totalorder %v373, %v385
        %vm437 = vcmp.eq.s32.totalorder %v373, %v389
        %vm438 = vcmp.eq.s32.totalorder %v374, %v385
        %vm439 = vcmp.eq.s32.totalorder %v374, %v389
        %vm440 = vcmp.eq.s32.totalorder %v375, %v385
        %vm441 = vcmp.eq.s32.totalorder %v375, %v389
        %vm442 = vcmp.eq.s32.totalorder %v376, %v385
        %vm443 = vcmp.eq.s32.totalorder %v376, %v389
        %vm444 = vcmp.eq.s32.totalorder %v377, %v385
        %vm445 = vcmp.eq.s32.totalorder %v377, %v389
        %vm446 = vcmp.eq.s32.totalorder %v378, %v385
        %vm447 = vcmp.eq.s32.totalorder %v378, %v389
        %vm448 = vcmp.eq.s32.totalorder %v379, %v385
        %vm449 = vcmp.eq.s32.totalorder %v379, %v389
        %vm450 = vcmp.eq.s32.totalorder %v380, %v385
        %vm451 = vcmp.eq.s32.totalorder %v380, %v389
        %vm452 = vcmp.eq.s32.totalorder %v381, %v385
        %vm453 = vcmp.eq.s32.totalorder %v381, %v389
        %v454 = vsel %vm390, 1, 0
        %v455 = vsel %vm391, 1, 0
        %v456 = vsel %vm392, 1, 0
        %v457 = vsel %vm393, 1, 0
        %v458 = vsel %vm394, 1, 0
        %v459 = vsel %vm395, 1, 0
        %v460 = vsel %vm396, 1, 0
        %v461 = vsel %vm397, 1, 0
        %v462 = vsel %vm398, 1, 0
        %v463 = vsel %vm399, 1, 0
        %v464 = vsel %vm400, 1, 0
        %v465 = vsel %vm401, 1, 0
        %v466 = vsel %vm402, 1, 0
        %v467 = vsel %vm403, 1, 0
        %v468 = vsel %vm404, 1, 0
        %v469 = vsel %vm405, 1, 0
        %v470 = vsel %vm406, 1, 0
        %v471 = vsel %vm407, 1, 0
        %v472 = vsel %vm408, 1, 0
        %v473 = vsel %vm409, 1, 0
        %v474 = vsel %vm410, 1, 0
        %v475 = vsel %vm411, 1, 0
        %v476 = vsel %vm412, 1, 0
        %v477 = vsel %vm413, 1, 0
        %v478 = vsel %vm414, 1, 0
        %v479 = vsel %vm415, 1, 0
        %v480 = vsel %vm416, 1, 0
        %v481 = vsel %vm417, 1, 0
        %v482 = vsel %vm418, 1, 0
        %v483 = vsel %vm419, 1, 0
        %v484 = vsel %vm420, 1, 0
        %v485 = vsel %vm421, 1, 0
        %v486 = vsel %vm422, 1, 0
        %v487 = vsel %vm423, 1, 0
        %v488 = vsel %vm424, 1, 0
        %v489 = vsel %vm425, 1, 0
        %v490 = vsel %vm426, 1, 0
        %v491 = vsel %vm427, 1, 0
        %v492 = vsel %vm428, 1, 0
        %v493 = vsel %vm429, 1, 0
        %v494 = vsel %vm430, 1, 0
        %v495 = vsel %vm431, 1, 0
        %v496 = vsel %vm432, 1, 0
        %v497 = vsel %vm433, 1, 0
        %v498 = vsel %vm434, 1, 0
        %v499 = vsel %vm435, 1, 0
        %v500 = vsel %vm436, 1, 0
        %v501 = vsel %vm437, 1, 0
        %v502 = vsel %vm438, 1, 0
        %v503 = vsel %vm439, 1, 0
        %v504 = vsel %vm440, 1, 0
        %v505 = vsel %vm441, 1, 0
        %v506 = vsel %vm442, 1, 0
        %v507 = vsel %vm443, 1, 0
        %v508 = vsel %vm444, 1, 0
        %v509 = vsel %vm445, 1, 0
        %v510 = vsel %vm446, 1, 0
        %v511 = vsel %vm447, 1, 0
        %v512 = vsel %vm448, 1, 0
        %v513 = vsel %vm449, 1, 0
        %v514 = vsel %vm450, 1, 0
        %v515 = vsel %vm451, 1, 0
        %v516 = vsel %vm452, 1, 0
        %v517 = vsel %vm453, 1, 0
        %v518 = vcvt.s32.f32 %v454
        %v519 = vcvt.s32.f32 %v455
        %v520 = vcvt.s32.f32 %v456
        %v521 = vcvt.s32.f32 %v457
        %v522 = vcvt.s32.f32 %v458
        %v523 = vcvt.s32.f32 %v459
        %v524 = vcvt.s32.f32 %v460
        %v525 = vcvt.s32.f32 %v461
        %v526 = vcvt.s32.f32 %v462
        %v527 = vcvt.s32.f32 %v463
        %v528 = vcvt.s32.f32 %v464
        %v529 = vcvt.s32.f32 %v465
        %v530 = vcvt.s32.f32 %v466
        %v531 = vcvt.s32.f32 %v467
        %v532 = vcvt.s32.f32 %v468
        %v533 = vcvt.s32.f32 %v469
        %v534 = vcvt.s32.f32 %v470
        %v535 = vcvt.s32.f32 %v471
        %v536 = vcvt.s32.f32 %v472
        %v537 = vcvt.s32.f32 %v473
        %v538 = vcvt.s32.f32 %v474
        %v539 = vcvt.s32.f32 %v475
        %v540 = vcvt.s32.f32 %v476
        %v541 = vcvt.s32.f32 %v477
        %v542 = vcvt.s32.f32 %v478
        %v543 = vcvt.s32.f32 %v479
        %v544 = vcvt.s32.f32 %v480
        %v545 = vcvt.s32.f32 %v481
        %v546 = vcvt.s32.f32 %v482
        %v547 = vcvt.s32.f32 %v483
        %v548 = vcvt.s32.f32 %v484
        %v549 = vcvt.s32.f32 %v485
        %v550 = vcvt.s32.f32 %v486
        %v551 = vcvt.s32.f32 %v487
        %v552 = vcvt.s32.f32 %v488
        %v553 = vcvt.s32.f32 %v489
        %v554 = vcvt.s32.f32 %v490
        %v555 = vcvt.s32.f32 %v491
        %v556 = vcvt.s32.f32 %v492
        %v557 = vcvt.s32.f32 %v493
        %v558 = vcvt.s32.f32 %v494
        %v559 = vcvt.s32.f32 %v495
        %v560 = vcvt.s32.f32 %v496
        %v561 = vcvt.s32.f32 %v497
        %v562 = vcvt.s32.f32 %v498
        %v563 = vcvt.s32.f32 %v499
        %v564 = vcvt.s32.f32 %v500
        %v565 = vcvt.s32.f32 %v501
        %v566 = vcvt.s32.f32 %v502
        %v567 = vcvt.s32.f32 %v503
        %v568 = vcvt.s32.f32 %v504
        %v569 = vcvt.s32.f32 %v505
        %v570 = vcvt.s32.f32 %v506
        %v571 = vcvt.s32.f32 %v507
        %v572 = vcvt.s32.f32 %v508
        %v573 = vcvt.s32.f32 %v509
        %v574 = vcvt.s32.f32 %v510
        %v575 = vcvt.s32.f32 %v511
        %v576 = vcvt.s32.f32 %v512
        %v577 = vcvt.s32.f32 %v513
        %v578 = vcvt.s32.f32 %v514
        %v579 = vcvt.s32.f32 %v515
        %v580 = vcvt.s32.f32 %v516
        %v581 = vcvt.s32.f32 %v517
        %v582 = vadd.f32 %v518, 0.0
        %v583 = vadd.f32 %v519, 0.0
        %v584 = vadd.f32 %v520, 0.0
        %v585 = vadd.f32 %v521, 0.0
        %v586 = vadd.f32 %v522, 0.0
        %v587 = vadd.f32 %v523, 0.0
        %v588 = vadd.f32 %v524, 0.0
        %v589 = vadd.f32 %v525, 0.0
        %v590 = vadd.f32 %v526, 0.0
        %v591 = vadd.f32 %v527, 0.0
        %v592 = vadd.f32 %v528, 0.0
        %v593 = vadd.f32 %v529, 0.0
        %v594 = vadd.f32 %v530, 0.0
        %v595 = vadd.f32 %v531, 0.0
        %v596 = vadd.f32 %v532, 0.0
        %v597 = vadd.f32 %v533, 0.0
        %v598 = vadd.f32 %v534, 0.0
        %v599 = vadd.f32 %v535, 0.0
        %v600 = vadd.f32 %v536, 0.0
        %v601 = vadd.f32 %v537, 0.0
        %v602 = vadd.f32 %v538, 0.0
        %v603 = vadd.f32 %v539, 0.0
        %v604 = vadd.f32 %v540, 0.0
        %v605 = vadd.f32 %v541, 0.0
        %v606 = vadd.f32 %v542, 0.0
        %v607 = vadd.f32 %v543, 0.0
        %v608 = vadd.f32 %v544, 0.0
        %v609 = vadd.f32 %v545, 0.0
        %v610 = vadd.f32 %v546, 0.0
        %v611 = vadd.f32 %v547, 0.0
        %v612 = vadd.f32 %v548, 0.0
        %v613 = vadd.f32 %v549, 0.0
        %v614 = vadd.f32 %v550, 0.0
        %v615 = vadd.f32 %v551, 0.0
        %v616 = vadd.f32 %v552, 0.0
        %v617 = vadd.f32 %v553, 0.0
        %v618 = vadd.f32 %v554, 0.0
        %v619 = vadd.f32 %v555, 0.0
        %v620 = vadd.f32 %v556, 0.0
        %v621 = vadd.f32 %v557, 0.0
        %v622 = vadd.f32 %v558, 0.0
        %v623 = vadd.f32 %v559, 0.0
        %v624 = vadd.f32 %v560, 0.0
        %v625 = vadd.f32 %v561, 0.0
        %v626 = vadd.f32 %v562, 0.0
        %v627 = vadd.f32 %v563, 0.0
        %v628 = vadd.f32 %v564, 0.0
        %v629 = vadd.f32 %v565, 0.0
        %v630 = vadd.f32 %v566, 0.0
        %v631 = vadd.f32 %v567, 0.0
        %v632 = vadd.f32 %v568, 0.0
        %v633 = vadd.f32 %v569, 0.0
        %v634 = vadd.f32 %v570, 0.0
        %v635 = vadd.f32 %v571, 0.0
        %v636 = vadd.f32 %v572, 0.0
        %v637 = vadd.f32 %v573, 0.0
        %v638 = vadd.f32 %v574, 0.0
        %v639 = vadd.f32 %v575, 0.0
        %v640 = vadd.f32 %v576, 0.0
        %v641 = vadd.f32 %v577, 0.0
        %v642 = vadd.f32 %v578, 0.0
        %v643 = vadd.f32 %v579, 0.0
        %v644 = vadd.f32 %v580, 0.0
        %v645 = vadd.f32 %v581, 0.0
        %v646 = vlaneseq
        %v647 = vshrl.u32 %v646, 7
        %v648 = vsub.s32 1, %v647
        %v649 = vrot.slane %v339, %v648
        %v650 = vlaneseq
        %v651 = vshrl.u32 %v650, 7
        %v652 = vsub.s32 1, %v651
        %v653 = vrot.slane %v340, %v652
        %vm654 = vcmp.eq.s32.totalorder %v350, %v649
        %vm655 = vcmp.eq.s32.totalorder %v350, %v653
        %vm656 = vcmp.eq.s32.totalorder %v351, %v649
        %vm657 = vcmp.eq.s32.totalorder %v351, %v653
        %vm658 = vcmp.eq.s32.totalorder %v352, %v649
        %vm659 = vcmp.eq.s32.totalorder %v352, %v653
        %vm660 = vcmp.eq.s32.totalorder %v353, %v649
        %vm661 = vcmp.eq.s32.totalorder %v353, %v653
        %vm662 = vcmp.eq.s32.totalorder %v354, %v649
        %vm663 = vcmp.eq.s32.totalorder %v354, %v653
        %vm664 = vcmp.eq.s32.totalorder %v355, %v649
        %vm665 = vcmp.eq.s32.totalorder %v355, %v653
        %vm666 = vcmp.eq.s32.totalorder %v356, %v649
        %vm667 = vcmp.eq.s32.totalorder %v356, %v653
        %vm668 = vcmp.eq.s32.totalorder %v357, %v649
        %vm669 = vcmp.eq.s32.totalorder %v357, %v653
        %vm670 = vcmp.eq.s32.totalorder %v358, %v649
        %vm671 = vcmp.eq.s32.totalorder %v358, %v653
        %vm672 = vcmp.eq.s32.totalorder %v359, %v649
        %vm673 = vcmp.eq.s32.totalorder %v359, %v653
        %vm674 = vcmp.eq.s32.totalorder %v360, %v649
        %vm675 = vcmp.eq.s32.totalorder %v360, %v653
        %vm676 = vcmp.eq.s32.totalorder %v361, %v649
        %vm677 = vcmp.eq.s32.totalorder %v361, %v653
        %vm678 = vcmp.eq.s32.totalorder %v362, %v649
        %vm679 = vcmp.eq.s32.totalorder %v362, %v653
        %vm680 = vcmp.eq.s32.totalorder %v363, %v649
        %vm681 = vcmp.eq.s32.totalorder %v363, %v653
        %vm682 = vcmp.eq.s32.totalorder %v364, %v649
        %vm683 = vcmp.eq.s32.totalorder %v364, %v653
        %vm684 = vcmp.eq.s32.totalorder %v365, %v649
        %vm685 = vcmp.eq.s32.totalorder %v365, %v653
        %vm686 = vcmp.eq.s32.totalorder %v366, %v649
        %vm687 = vcmp.eq.s32.totalorder %v366, %v653
        %vm688 = vcmp.eq.s32.totalorder %v367, %v649
        %vm689 = vcmp.eq.s32.totalorder %v367, %v653
        %vm690 = vcmp.eq.s32.totalorder %v368, %v649
        %vm691 = vcmp.eq.s32.totalorder %v368, %v653
        %vm692 = vcmp.eq.s32.totalorder %v369, %v649
        %vm693 = vcmp.eq.s32.totalorder %v369, %v653
        %vm694 = vcmp.eq.s32.totalorder %v370, %v649
        %vm695 = vcmp.eq.s32.totalorder %v370, %v653
        %vm696 = vcmp.eq.s32.totalorder %v371, %v649
        %vm697 = vcmp.eq.s32.totalorder %v371, %v653
        %vm698 = vcmp.eq.s32.totalorder %v372, %v649
        %vm699 = vcmp.eq.s32.totalorder %v372, %v653
        %vm700 = vcmp.eq.s32.totalorder %v373, %v649
        %vm701 = vcmp.eq.s32.totalorder %v373, %v653
        %vm702 = vcmp.eq.s32.totalorder %v374, %v649
        %vm703 = vcmp.eq.s32.totalorder %v374, %v653
        %vm704 = vcmp.eq.s32.totalorder %v375, %v649
        %vm705 = vcmp.eq.s32.totalorder %v375, %v653
        %vm706 = vcmp.eq.s32.totalorder %v376, %v649
        %vm707 = vcmp.eq.s32.totalorder %v376, %v653
        %vm708 = vcmp.eq.s32.totalorder %v377, %v649
        %vm709 = vcmp.eq.s32.totalorder %v377, %v653
        %vm710 = vcmp.eq.s32.totalorder %v378, %v649
        %vm711 = vcmp.eq.s32.totalorder %v378, %v653
        %vm712 = vcmp.eq.s32.totalorder %v379, %v649
        %vm713 = vcmp.eq.s32.totalorder %v379, %v653
        %vm714 = vcmp.eq.s32.totalorder %v380, %v649
        %vm715 = vcmp.eq.s32.totalorder %v380, %v653
        %vm716 = vcmp.eq.s32.totalorder %v381, %v649
        %vm717 = vcmp.eq.s32.totalorder %v381, %v653
        %v718 = vsel %vm654, 1, 0
        %v719 = vsel %vm655, 1, 0
        %v720 = vsel %vm656, 1, 0
        %v721 = vsel %vm657, 1, 0
        %v722 = vsel %vm658, 1, 0
        %v723 = vsel %vm659, 1, 0
        %v724 = vsel %vm660, 1, 0
        %v725 = vsel %vm661, 1, 0
        %v726 = vsel %vm662, 1, 0
        %v727 = vsel %vm663, 1, 0
        %v728 = vsel %vm664, 1, 0
        %v729 = vsel %vm665, 1, 0
        %v730 = vsel %vm666, 1, 0
        %v731 = vsel %vm667, 1, 0
        %v732 = vsel %vm668, 1, 0
        %v733 = vsel %vm669, 1, 0
        %v734 = vsel %vm670, 1, 0
        %v735 = vsel %vm671, 1, 0
        %v736 = vsel %vm672, 1, 0
        %v737 = vsel %vm673, 1, 0
        %v738 = vsel %vm674, 1, 0
        %v739 = vsel %vm675, 1, 0
        %v740 = vsel %vm676, 1, 0
        %v741 = vsel %vm677, 1, 0
        %v742 = vsel %vm678, 1, 0
        %v743 = vsel %vm679, 1, 0
        %v744 = vsel %vm680, 1, 0
        %v745 = vsel %vm681, 1, 0
        %v746 = vsel %vm682, 1, 0
        %v747 = vsel %vm683, 1, 0
        %v748 = vsel %vm684, 1, 0
        %v749 = vsel %vm685, 1, 0
        %v750 = vsel %vm686, 1, 0
        %v751 = vsel %vm687, 1, 0
        %v752 = vsel %vm688, 1, 0
        %v753 = vsel %vm689, 1, 0
        %v754 = vsel %vm690, 1, 0
        %v755 = vsel %vm691, 1, 0
        %v756 = vsel %vm692, 1, 0
        %v757 = vsel %vm693, 1, 0
        %v758 = vsel %vm694, 1, 0
        %v759 = vsel %vm695, 1, 0
        %v760 = vsel %vm696, 1, 0
        %v761 = vsel %vm697, 1, 0
        %v762 = vsel %vm698, 1, 0
        %v763 = vsel %vm699, 1, 0
        %v764 = vsel %vm700, 1, 0
        %v765 = vsel %vm701, 1, 0
        %v766 = vsel %vm702, 1, 0
        %v767 = vsel %vm703, 1, 0
        %v768 = vsel %vm704, 1, 0
        %v769 = vsel %vm705, 1, 0
        %v770 = vsel %vm706, 1, 0
        %v771 = vsel %vm707, 1, 0
        %v772 = vsel %vm708, 1, 0
        %v773 = vsel %vm709, 1, 0
        %v774 = vsel %vm710, 1, 0
        %v775 = vsel %vm711, 1, 0
        %v776 = vsel %vm712, 1, 0
        %v777 = vsel %vm713, 1, 0
        %v778 = vsel %vm714, 1, 0
        %v779 = vsel %vm715, 1, 0
        %v780 = vsel %vm716, 1, 0
        %v781 = vsel %vm717, 1, 0
        %v782 = vcvt.s32.f32 %v718
        %v783 = vcvt.s32.f32 %v719
        %v784 = vcvt.s32.f32 %v720
        %v785 = vcvt.s32.f32 %v721
        %v786 = vcvt.s32.f32 %v722
        %v787 = vcvt.s32.f32 %v723
        %v788 = vcvt.s32.f32 %v724
        %v789 = vcvt.s32.f32 %v725
        %v790 = vcvt.s32.f32 %v726
        %v791 = vcvt.s32.f32 %v727
        %v792 = vcvt.s32.f32 %v728
        %v793 = vcvt.s32.f32 %v729
        %v794 = vcvt.s32.f32 %v730
        %v795 = vcvt.s32.f32 %v731
        %v796 = vcvt.s32.f32 %v732
        %v797 = vcvt.s32.f32 %v733
        %v798 = vcvt.s32.f32 %v734
        %v799 = vcvt.s32.f32 %v735
        %v800 = vcvt.s32.f32 %v736
        %v801 = vcvt.s32.f32 %v737
        %v802 = vcvt.s32.f32 %v738
        %v803 = vcvt.s32.f32 %v739
        %v804 = vcvt.s32.f32 %v740
        %v805 = vcvt.s32.f32 %v741
        %v806 = vcvt.s32.f32 %v742
        %v807 = vcvt.s32.f32 %v743
        %v808 = vcvt.s32.f32 %v744
        %v809 = vcvt.s32.f32 %v745
        %v810 = vcvt.s32.f32 %v746
        %v811 = vcvt.s32.f32 %v747
        %v812 = vcvt.s32.f32 %v748
        %v813 = vcvt.s32.f32 %v749
        %v814 = vcvt.s32.f32 %v750
        %v815 = vcvt.s32.f32 %v751
        %v816 = vcvt.s32.f32 %v752
        %v817 = vcvt.s32.f32 %v753
        %v818 = vcvt.s32.f32 %v754
        %v819 = vcvt.s32.f32 %v755
        %v820 = vcvt.s32.f32 %v756
        %v821 = vcvt.s32.f32 %v757
        %v822 = vcvt.s32.f32 %v758
        %v823 = vcvt.s32.f32 %v759
        %v824 = vcvt.s32.f32 %v760
        %v825 = vcvt.s32.f32 %v761
        %v826 = vcvt.s32.f32 %v762
        %v827 = vcvt.s32.f32 %v763
        %v828 = vcvt.s32.f32 %v764
        %v829 = vcvt.s32.f32 %v765
        %v830 = vcvt.s32.f32 %v766
        %v831 = vcvt.s32.f32 %v767
        %v832 = vcvt.s32.f32 %v768
        %v833 = vcvt.s32.f32 %v769
        %v834 = vcvt.s32.f32 %v770
        %v835 = vcvt.s32.f32 %v771
        %v836 = vcvt.s32.f32 %v772
        %v837 = vcvt.s32.f32 %v773
        %v838 = vcvt.s32.f32 %v774
        %v839 = vcvt.s32.f32 %v775
        %v840 = vcvt.s32.f32 %v776
        %v841 = vcvt.s32.f32 %v777
        %v842 = vcvt.s32.f32 %v778
        %v843 = vcvt.s32.f32 %v779
        %v844 = vcvt.s32.f32 %v780
        %v845 = vcvt.s32.f32 %v781
        %v846 = vadd.f32 %v582, %v782
        %v847 = vadd.f32 %v583, %v783
        %v848 = vadd.f32 %v584, %v784
        %v849 = vadd.f32 %v585, %v785
        %v850 = vadd.f32 %v586, %v786
        %v851 = vadd.f32 %v587, %v787
        %v852 = vadd.f32 %v588, %v788
        %v853 = vadd.f32 %v589, %v789
        %v854 = vadd.f32 %v590, %v790
        %v855 = vadd.f32 %v591, %v791
        %v856 = vadd.f32 %v592, %v792
        %v857 = vadd.f32 %v593, %v793
        %v858 = vadd.f32 %v594, %v794
        %v859 = vadd.f32 %v595, %v795
        %v860 = vadd.f32 %v596, %v796
        %v861 = vadd.f32 %v597, %v797
        %v862 = vadd.f32 %v598, %v798
        %v863 = vadd.f32 %v599, %v799
        %v864 = vadd.f32 %v600, %v800
        %v865 = vadd.f32 %v601, %v801
        %v866 = vadd.f32 %v602, %v802
        %v867 = vadd.f32 %v603, %v803
        %v868 = vadd.f32 %v604, %v804
        %v869 = vadd.f32 %v605, %v805
        %v870 = vadd.f32 %v606, %v806
        %v871 = vadd.f32 %v607, %v807
        %v872 = vadd.f32 %v608, %v808
        %v873 = vadd.f32 %v609, %v809
        %v874 = vadd.f32 %v610, %v810
        %v875 = vadd.f32 %v611, %v811
        %v876 = vadd.f32 %v612, %v812
        %v877 = vadd.f32 %v613, %v813
        %v878 = vadd.f32 %v614, %v814
        %v879 = vadd.f32 %v615, %v815
        %v880 = vadd.f32 %v616, %v816
        %v881 = vadd.f32 %v617, %v817
        %v882 = vadd.f32 %v618, %v818
        %v883 = vadd.f32 %v619, %v819
        %v884 = vadd.f32 %v620, %v820
        %v885 = vadd.f32 %v621, %v821
        %v886 = vadd.f32 %v622, %v822
        %v887 = vadd.f32 %v623, %v823
        %v888 = vadd.f32 %v624, %v824
        %v889 = vadd.f32 %v625, %v825
        %v890 = vadd.f32 %v626, %v826
        %v891 = vadd.f32 %v627, %v827
        %v892 = vadd.f32 %v628, %v828
        %v893 = vadd.f32 %v629, %v829
        %v894 = vadd.f32 %v630, %v830
        %v895 = vadd.f32 %v631, %v831
        %v896 = vadd.f32 %v632, %v832
        %v897 = vadd.f32 %v633, %v833
        %v898 = vadd.f32 %v634, %v834
        %v899 = vadd.f32 %v635, %v835
        %v900 = vadd.f32 %v636, %v836
        %v901 = vadd.f32 %v637, %v837
        %v902 = vadd.f32 %v638, %v838
        %v903 = vadd.f32 %v639, %v839
        %v904 = vadd.f32 %v640, %v840
        %v905 = vadd.f32 %v641, %v841
        %v906 = vadd.f32 %v642, %v842
        %v907 = vadd.f32 %v643, %v843
        %v908 = vadd.f32 %v644, %v844
        %v909 = vadd.f32 %v645, %v845
        %v910 = vlaneseq
        %v911 = vshrl.u32 %v910, 7
        %v912 = vsub.s32 2, %v911
        %v913 = vrot.slane %v339, %v912
        %v914 = vlaneseq
        %v915 = vshrl.u32 %v914, 7
        %v916 = vsub.s32 2, %v915
        %v917 = vrot.slane %v340, %v916
        %vm918 = vcmp.eq.s32.totalorder %v350, %v913
        %vm919 = vcmp.eq.s32.totalorder %v350, %v917
        %vm920 = vcmp.eq.s32.totalorder %v351, %v913
        %vm921 = vcmp.eq.s32.totalorder %v351, %v917
        %vm922 = vcmp.eq.s32.totalorder %v352, %v913
        %vm923 = vcmp.eq.s32.totalorder %v352, %v917
        %vm924 = vcmp.eq.s32.totalorder %v353, %v913
        %vm925 = vcmp.eq.s32.totalorder %v353, %v917
        %vm926 = vcmp.eq.s32.totalorder %v354, %v913
        %vm927 = vcmp.eq.s32.totalorder %v354, %v917
        %vm928 = vcmp.eq.s32.totalorder %v355, %v913
        %vm929 = vcmp.eq.s32.totalorder %v355, %v917
        %vm930 = vcmp.eq.s32.totalorder %v356, %v913
        %vm931 = vcmp.eq.s32.totalorder %v356, %v917
        %vm932 = vcmp.eq.s32.totalorder %v357, %v913
        %vm933 = vcmp.eq.s32.totalorder %v357, %v917
        %vm934 = vcmp.eq.s32.totalorder %v358, %v913
        %vm935 = vcmp.eq.s32.totalorder %v358, %v917
        %vm936 = vcmp.eq.s32.totalorder %v359, %v913
        %vm937 = vcmp.eq.s32.totalorder %v359, %v917
        %vm938 = vcmp.eq.s32.totalorder %v360, %v913
        %vm939 = vcmp.eq.s32.totalorder %v360, %v917
        %vm940 = vcmp.eq.s32.totalorder %v361, %v913
        %vm941 = vcmp.eq.s32.totalorder %v361, %v917
        %vm942 = vcmp.eq.s32.totalorder %v362, %v913
        %vm943 = vcmp.eq.s32.totalorder %v362, %v917
        %vm944 = vcmp.eq.s32.totalorder %v363, %v913
        %vm945 = vcmp.eq.s32.totalorder %v363, %v917
        %vm946 = vcmp.eq.s32.totalorder %v364, %v913
        %vm947 = vcmp.eq.s32.totalorder %v364, %v917
        %vm948 = vcmp.eq.s32.totalorder %v365, %v913
        %vm949 = vcmp.eq.s32.totalorder %v365, %v917
        %vm950 = vcmp.eq.s32.totalorder %v366, %v913
        %vm951 = vcmp.eq.s32.totalorder %v366, %v917
        %vm952 = vcmp.eq.s32.totalorder %v367, %v913
        %vm953 = vcmp.eq.s32.totalorder %v367, %v917
        %vm954 = vcmp.eq.s32.totalorder %v368, %v913
        %vm955 = vcmp.eq.s32.totalorder %v368, %v917
        %vm956 = vcmp.eq.s32.totalorder %v369, %v913
        %vm957 = vcmp.eq.s32.totalorder %v369, %v917
        %vm958 = vcmp.eq.s32.totalorder %v370, %v913
        %vm959 = vcmp.eq.s32.totalorder %v370, %v917
        %vm960 = vcmp.eq.s32.totalorder %v371, %v913
        %vm961 = vcmp.eq.s32.totalorder %v371, %v917
        %vm962 = vcmp.eq.s32.totalorder %v372, %v913
        %vm963 = vcmp.eq.s32.totalorder %v372, %v917
        %vm964 = vcmp.eq.s32.totalorder %v373, %v913
        %vm965 = vcmp.eq.s32.totalorder %v373, %v917
        %vm966 = vcmp.eq.s32.totalorder %v374, %v913
        %vm967 = vcmp.eq.s32.totalorder %v374, %v917
        %vm968 = vcmp.eq.s32.totalorder %v375, %v913
        %vm969 = vcmp.eq.s32.totalorder %v375, %v917
        %vm970 = vcmp.eq.s32.totalorder %v376, %v913
        %vm971 = vcmp.eq.s32.totalorder %v376, %v917
        %vm972 = vcmp.eq.s32.totalorder %v377, %v913
        %vm973 = vcmp.eq.s32.totalorder %v377, %v917
        %vm974 = vcmp.eq.s32.totalorder %v378, %v913
        %vm975 = vcmp.eq.s32.totalorder %v378, %v917
        %vm976 = vcmp.eq.s32.totalorder %v379, %v913
        %vm977 = vcmp.eq.s32.totalorder %v379, %v917
        %vm978 = vcmp.eq.s32.totalorder %v380, %v913
        %vm979 = vcmp.eq.s32.totalorder %v380, %v917
        %vm980 = vcmp.eq.s32.totalorder %v381, %v913
        %vm981 = vcmp.eq.s32.totalorder %v381, %v917
        %v982 = vsel %vm918, 1, 0
        %v983 = vsel %vm919, 1, 0
        %v984 = vsel %vm920, 1, 0
        %v985 = vsel %vm921, 1, 0
        %v986 = vsel %vm922, 1, 0
        %v987 = vsel %vm923, 1, 0
        %v988 = vsel %vm924, 1, 0
        %v989 = vsel %vm925, 1, 0
        %v990 = vsel %vm926, 1, 0
        %v991 = vsel %vm927, 1, 0
        %v992 = vsel %vm928, 1, 0
        %v993 = vsel %vm929, 1, 0
        %v994 = vsel %vm930, 1, 0
        %v995 = vsel %vm931, 1, 0
        %v996 = vsel %vm932, 1, 0
        %v997 = vsel %vm933, 1, 0
        %v998 = vsel %vm934, 1, 0
        %v999 = vsel %vm935, 1, 0
        %v1000 = vsel %vm936, 1, 0
        %v1001 = vsel %vm937, 1, 0
        %v1002 = vsel %vm938, 1, 0
        %v1003 = vsel %vm939, 1, 0
        %v1004 = vsel %vm940, 1, 0
        %v1005 = vsel %vm941, 1, 0
        %v1006 = vsel %vm942, 1, 0
        %v1007 = vsel %vm943, 1, 0
        %v1008 = vsel %vm944, 1, 0
        %v1009 = vsel %vm945, 1, 0
        %v1010 = vsel %vm946, 1, 0
        %v1011 = vsel %vm947, 1, 0
        %v1012 = vsel %vm948, 1, 0
        %v1013 = vsel %vm949, 1, 0
        %v1014 = vsel %vm950, 1, 0
        %v1015 = vsel %vm951, 1, 0
        %v1016 = vsel %vm952, 1, 0
        %v1017 = vsel %vm953, 1, 0
        %v1018 = vsel %vm954, 1, 0
        %v1019 = vsel %vm955, 1, 0
        %v1020 = vsel %vm956, 1, 0
        %v1021 = vsel %vm957, 1, 0
        %v1022 = vsel %vm958, 1, 0
        %v1023 = vsel %vm959, 1, 0
        %v1024 = vsel %vm960, 1, 0
        %v1025 = vsel %vm961, 1, 0
        %v1026 = vsel %vm962, 1, 0
        %v1027 = vsel %vm963, 1, 0
        %v1028 = vsel %vm964, 1, 0
        %v1029 = vsel %vm965, 1, 0
        %v1030 = vsel %vm966, 1, 0
        %v1031 = vsel %vm967, 1, 0
        %v1032 = vsel %vm968, 1, 0
        %v1033 = vsel %vm969, 1, 0
        %v1034 = vsel %vm970, 1, 0
        %v1035 = vsel %vm971, 1, 0
        %v1036 = vsel %vm972, 1, 0
        %v1037 = vsel %vm973, 1, 0
        %v1038 = vsel %vm974, 1, 0
        %v1039 = vsel %vm975, 1, 0
        %v1040 = vsel %vm976, 1, 0
        %v1041 = vsel %vm977, 1, 0
        %v1042 = vsel %vm978, 1, 0
        %v1043 = vsel %vm979, 1, 0
        %v1044 = vsel %vm980, 1, 0
        %v1045 = vsel %vm981, 1, 0
        %v1046 = vcvt.s32.f32 %v982
        %v1047 = vcvt.s32.f32 %v983
        %v1048 = vcvt.s32.f32 %v984
        %v1049 = vcvt.s32.f32 %v985
        %v1050 = vcvt.s32.f32 %v986
        %v1051 = vcvt.s32.f32 %v987
        %v1052 = vcvt.s32.f32 %v988
        %v1053 = vcvt.s32.f32 %v989
        %v1054 = vcvt.s32.f32 %v990
        %v1055 = vcvt.s32.f32 %v991
        %v1056 = vcvt.s32.f32 %v992
        %v1057 = vcvt.s32.f32 %v993
        %v1058 = vcvt.s32.f32 %v994
        %v1059 = vcvt.s32.f32 %v995
        %v1060 = vcvt.s32.f32 %v996
        %v1061 = vcvt.s32.f32 %v997
        %v1062 = vcvt.s32.f32 %v998
        %v1063 = vcvt.s32.f32 %v999
        %v1064 = vcvt.s32.f32 %v1000
        %v1065 = vcvt.s32.f32 %v1001
        %v1066 = vcvt.s32.f32 %v1002
        %v1067 = vcvt.s32.f32 %v1003
        %v1068 = vcvt.s32.f32 %v1004
        %v1069 = vcvt.s32.f32 %v1005
        %v1070 = vcvt.s32.f32 %v1006
        %v1071 = vcvt.s32.f32 %v1007
        %v1072 = vcvt.s32.f32 %v1008
        %v1073 = vcvt.s32.f32 %v1009
        %v1074 = vcvt.s32.f32 %v1010
        %v1075 = vcvt.s32.f32 %v1011
        %v1076 = vcvt.s32.f32 %v1012
        %v1077 = vcvt.s32.f32 %v1013
        %v1078 = vcvt.s32.f32 %v1014
        %v1079 = vcvt.s32.f32 %v1015
        %v1080 = vcvt.s32.f32 %v1016
        %v1081 = vcvt.s32.f32 %v1017
        %v1082 = vcvt.s32.f32 %v1018
        %v1083 = vcvt.s32.f32 %v1019
        %v1084 = vcvt.s32.f32 %v1020
        %v1085 = vcvt.s32.f32 %v1021
        %v1086 = vcvt.s32.f32 %v1022
        %v1087 = vcvt.s32.f32 %v1023
        %v1088 = vcvt.s32.f32 %v1024
        %v1089 = vcvt.s32.f32 %v1025
        %v1090 = vcvt.s32.f32 %v1026
        %v1091 = vcvt.s32.f32 %v1027
        %v1092 = vcvt.s32.f32 %v1028
        %v1093 = vcvt.s32.f32 %v1029
        %v1094 = vcvt.s32.f32 %v1030
        %v1095 = vcvt.s32.f32 %v1031
        %v1096 = vcvt.s32.f32 %v1032
        %v1097 = vcvt.s32.f32 %v1033
        %v1098 = vcvt.s32.f32 %v1034
        %v1099 = vcvt.s32.f32 %v1035
        %v1100 = vcvt.s32.f32 %v1036
        %v1101 = vcvt.s32.f32 %v1037
        %v1102 = vcvt.s32.f32 %v1038
        %v1103 = vcvt.s32.f32 %v1039
        %v1104 = vcvt.s32.f32 %v1040
        %v1105 = vcvt.s32.f32 %v1041
        %v1106 = vcvt.s32.f32 %v1042
        %v1107 = vcvt.s32.f32 %v1043
        %v1108 = vcvt.s32.f32 %v1044
        %v1109 = vcvt.s32.f32 %v1045
        %v1110 = vadd.f32 %v846, %v1046
        %v1111 = vadd.f32 %v847, %v1047
        %v1112 = vadd.f32 %v848, %v1048
        %v1113 = vadd.f32 %v849, %v1049
        %v1114 = vadd.f32 %v850, %v1050
        %v1115 = vadd.f32 %v851, %v1051
        %v1116 = vadd.f32 %v852, %v1052
        %v1117 = vadd.f32 %v853, %v1053
        %v1118 = vadd.f32 %v854, %v1054
        %v1119 = vadd.f32 %v855, %v1055
        %v1120 = vadd.f32 %v856, %v1056
        %v1121 = vadd.f32 %v857, %v1057
        %v1122 = vadd.f32 %v858, %v1058
        %v1123 = vadd.f32 %v859, %v1059
        %v1124 = vadd.f32 %v860, %v1060
        %v1125 = vadd.f32 %v861, %v1061
        %v1126 = vadd.f32 %v862, %v1062
        %v1127 = vadd.f32 %v863, %v1063
        %v1128 = vadd.f32 %v864, %v1064
        %v1129 = vadd.f32 %v865, %v1065
        %v1130 = vadd.f32 %v866, %v1066
        %v1131 = vadd.f32 %v867, %v1067
        %v1132 = vadd.f32 %v868, %v1068
        %v1133 = vadd.f32 %v869, %v1069
        %v1134 = vadd.f32 %v870, %v1070
        %v1135 = vadd.f32 %v871, %v1071
        %v1136 = vadd.f32 %v872, %v1072
        %v1137 = vadd.f32 %v873, %v1073
        %v1138 = vadd.f32 %v874, %v1074
        %v1139 = vadd.f32 %v875, %v1075
        %v1140 = vadd.f32 %v876, %v1076
        %v1141 = vadd.f32 %v877, %v1077
        %v1142 = vadd.f32 %v878, %v1078
        %v1143 = vadd.f32 %v879, %v1079
        %v1144 = vadd.f32 %v880, %v1080
        %v1145 = vadd.f32 %v881, %v1081
        %v1146 = vadd.f32 %v882, %v1082
        %v1147 = vadd.f32 %v883, %v1083
        %v1148 = vadd.f32 %v884, %v1084
        %v1149 = vadd.f32 %v885, %v1085
        %v1150 = vadd.f32 %v886, %v1086
        %v1151 = vadd.f32 %v887, %v1087
        %v1152 = vadd.f32 %v888, %v1088
        %v1153 = vadd.f32 %v889, %v1089
        %v1154 = vadd.f32 %v890, %v1090
        %v1155 = vadd.f32 %v891, %v1091
        %v1156 = vadd.f32 %v892, %v1092
        %v1157 = vadd.f32 %v893, %v1093
        %v1158 = vadd.f32 %v894, %v1094
        %v1159 = vadd.f32 %v895, %v1095
        %v1160 = vadd.f32 %v896, %v1096
        %v1161 = vadd.f32 %v897, %v1097
        %v1162 = vadd.f32 %v898, %v1098
        %v1163 = vadd.f32 %v899, %v1099
        %v1164 = vadd.f32 %v900, %v1100
        %v1165 = vadd.f32 %v901, %v1101
        %v1166 = vadd.f32 %v902, %v1102
        %v1167 = vadd.f32 %v903, %v1103
        %v1168 = vadd.f32 %v904, %v1104
        %v1169 = vadd.f32 %v905, %v1105
        %v1170 = vadd.f32 %v906, %v1106
        %v1171 = vadd.f32 %v907, %v1107
        %v1172 = vadd.f32 %v908, %v1108
        %v1173 = vadd.f32 %v909, %v1109
        %v1174 = vlaneseq
        %v1175 = vshrl.u32 %v1174, 7
        %v1176 = vsub.s32 3, %v1175
        %v1177 = vrot.slane %v339, %v1176
        %v1178 = vlaneseq
        %v1179 = vshrl.u32 %v1178, 7
        %v1180 = vsub.s32 3, %v1179
        %v1181 = vrot.slane %v340, %v1180
        %vm1182 = vcmp.eq.s32.totalorder %v350, %v1177
        %vm1183 = vcmp.eq.s32.totalorder %v350, %v1181
        %vm1184 = vcmp.eq.s32.totalorder %v351, %v1177
        %vm1185 = vcmp.eq.s32.totalorder %v351, %v1181
        %vm1186 = vcmp.eq.s32.totalorder %v352, %v1177
        %vm1187 = vcmp.eq.s32.totalorder %v352, %v1181
        %vm1188 = vcmp.eq.s32.totalorder %v353, %v1177
        %vm1189 = vcmp.eq.s32.totalorder %v353, %v1181
        %vm1190 = vcmp.eq.s32.totalorder %v354, %v1177
        %vm1191 = vcmp.eq.s32.totalorder %v354, %v1181
        %vm1192 = vcmp.eq.s32.totalorder %v355, %v1177
        %vm1193 = vcmp.eq.s32.totalorder %v355, %v1181
        %vm1194 = vcmp.eq.s32.totalorder %v356, %v1177
        %vm1195 = vcmp.eq.s32.totalorder %v356, %v1181
        %vm1196 = vcmp.eq.s32.totalorder %v357, %v1177
        %vm1197 = vcmp.eq.s32.totalorder %v357, %v1181
        %vm1198 = vcmp.eq.s32.totalorder %v358, %v1177
        %vm1199 = vcmp.eq.s32.totalorder %v358, %v1181
        %vm1200 = vcmp.eq.s32.totalorder %v359, %v1177
        %vm1201 = vcmp.eq.s32.totalorder %v359, %v1181
        %vm1202 = vcmp.eq.s32.totalorder %v360, %v1177
        %vm1203 = vcmp.eq.s32.totalorder %v360, %v1181
        %vm1204 = vcmp.eq.s32.totalorder %v361, %v1177
        %vm1205 = vcmp.eq.s32.totalorder %v361, %v1181
        %vm1206 = vcmp.eq.s32.totalorder %v362, %v1177
        %vm1207 = vcmp.eq.s32.totalorder %v362, %v1181
        %vm1208 = vcmp.eq.s32.totalorder %v363, %v1177
        %vm1209 = vcmp.eq.s32.totalorder %v363, %v1181
        %vm1210 = vcmp.eq.s32.totalorder %v364, %v1177
        %vm1211 = vcmp.eq.s32.totalorder %v364, %v1181
        %vm1212 = vcmp.eq.s32.totalorder %v365, %v1177
        %vm1213 = vcmp.eq.s32.totalorder %v365, %v1181
        %vm1214 = vcmp.eq.s32.totalorder %v366, %v1177
        %vm1215 = vcmp.eq.s32.totalorder %v366, %v1181
        %vm1216 = vcmp.eq.s32.totalorder %v367, %v1177
        %vm1217 = vcmp.eq.s32.totalorder %v367, %v1181
        %vm1218 = vcmp.eq.s32.totalorder %v368, %v1177
        %vm1219 = vcmp.eq.s32.totalorder %v368, %v1181
        %vm1220 = vcmp.eq.s32.totalorder %v369, %v1177
        %vm1221 = vcmp.eq.s32.totalorder %v369, %v1181
        %vm1222 = vcmp.eq.s32.totalorder %v370, %v1177
        %vm1223 = vcmp.eq.s32.totalorder %v370, %v1181
        %vm1224 = vcmp.eq.s32.totalorder %v371, %v1177
        %vm1225 = vcmp.eq.s32.totalorder %v371, %v1181
        %vm1226 = vcmp.eq.s32.totalorder %v372, %v1177
        %vm1227 = vcmp.eq.s32.totalorder %v372, %v1181
        %vm1228 = vcmp.eq.s32.totalorder %v373, %v1177
        %vm1229 = vcmp.eq.s32.totalorder %v373, %v1181
        %vm1230 = vcmp.eq.s32.totalorder %v374, %v1177
        %vm1231 = vcmp.eq.s32.totalorder %v374, %v1181
        %vm1232 = vcmp.eq.s32.totalorder %v375, %v1177
        %vm1233 = vcmp.eq.s32.totalorder %v375, %v1181
        %vm1234 = vcmp.eq.s32.totalorder %v376, %v1177
        %vm1235 = vcmp.eq.s32.totalorder %v376, %v1181
        %vm1236 = vcmp.eq.s32.totalorder %v377, %v1177
        %vm1237 = vcmp.eq.s32.totalorder %v377, %v1181
        %vm1238 = vcmp.eq.s32.totalorder %v378, %v1177
        %vm1239 = vcmp.eq.s32.totalorder %v378, %v1181
        %vm1240 = vcmp.eq.s32.totalorder %v379, %v1177
        %vm1241 = vcmp.eq.s32.totalorder %v379, %v1181
        %vm1242 = vcmp.eq.s32.totalorder %v380, %v1177
        %vm1243 = vcmp.eq.s32.totalorder %v380, %v1181
        %vm1244 = vcmp.eq.s32.totalorder %v381, %v1177
        %vm1245 = vcmp.eq.s32.totalorder %v381, %v1181
        %v1246 = vsel %vm1182, 1, 0
        %v1247 = vsel %vm1183, 1, 0
        %v1248 = vsel %vm1184, 1, 0
        %v1249 = vsel %vm1185, 1, 0
        %v1250 = vsel %vm1186, 1, 0
        %v1251 = vsel %vm1187, 1, 0
        %v1252 = vsel %vm1188, 1, 0
        %v1253 = vsel %vm1189, 1, 0
        %v1254 = vsel %vm1190, 1, 0
        %v1255 = vsel %vm1191, 1, 0
        %v1256 = vsel %vm1192, 1, 0
        %v1257 = vsel %vm1193, 1, 0
        %v1258 = vsel %vm1194, 1, 0
        %v1259 = vsel %vm1195, 1, 0
        %v1260 = vsel %vm1196, 1, 0
        %v1261 = vsel %vm1197, 1, 0
        %v1262 = vsel %vm1198, 1, 0
        %v1263 = vsel %vm1199, 1, 0
        %v1264 = vsel %vm1200, 1, 0
        %v1265 = vsel %vm1201, 1, 0
        %v1266 = vsel %vm1202, 1, 0
        %v1267 = vsel %vm1203, 1, 0
        %v1268 = vsel %vm1204, 1, 0
        %v1269 = vsel %vm1205, 1, 0
        %v1270 = vsel %vm1206, 1, 0
        %v1271 = vsel %vm1207, 1, 0
        %v1272 = vsel %vm1208, 1, 0
        %v1273 = vsel %vm1209, 1, 0
        %v1274 = vsel %vm1210, 1, 0
        %v1275 = vsel %vm1211, 1, 0
        %v1276 = vsel %vm1212, 1, 0
        %v1277 = vsel %vm1213, 1, 0
        %v1278 = vsel %vm1214, 1, 0
        %v1279 = vsel %vm1215, 1, 0
        %v1280 = vsel %vm1216, 1, 0
        %v1281 = vsel %vm1217, 1, 0
        %v1282 = vsel %vm1218, 1, 0
        %v1283 = vsel %vm1219, 1, 0
        %v1284 = vsel %vm1220, 1, 0
        %v1285 = vsel %vm1221, 1, 0
        %v1286 = vsel %vm1222, 1, 0
        %v1287 = vsel %vm1223, 1, 0
        %v1288 = vsel %vm1224, 1, 0
        %v1289 = vsel %vm1225, 1, 0
        %v1290 = vsel %vm1226, 1, 0
        %v1291 = vsel %vm1227, 1, 0
        %v1292 = vsel %vm1228, 1, 0
        %v1293 = vsel %vm1229, 1, 0
        %v1294 = vsel %vm1230, 1, 0
        %v1295 = vsel %vm1231, 1, 0
        %v1296 = vsel %vm1232, 1, 0
        %v1297 = vsel %vm1233, 1, 0
        %v1298 = vsel %vm1234, 1, 0
        %v1299 = vsel %vm1235, 1, 0
        %v1300 = vsel %vm1236, 1, 0
        %v1301 = vsel %vm1237, 1, 0
        %v1302 = vsel %vm1238, 1, 0
        %v1303 = vsel %vm1239, 1, 0
        %v1304 = vsel %vm1240, 1, 0
        %v1305 = vsel %vm1241, 1, 0
        %v1306 = vsel %vm1242, 1, 0
        %v1307 = vsel %vm1243, 1, 0
        %v1308 = vsel %vm1244, 1, 0
        %v1309 = vsel %vm1245, 1, 0
        %v1310 = vcvt.s32.f32 %v1246
        %v1311 = vcvt.s32.f32 %v1247
        %v1312 = vcvt.s32.f32 %v1248
        %v1313 = vcvt.s32.f32 %v1249
        %v1314 = vcvt.s32.f32 %v1250
        %v1315 = vcvt.s32.f32 %v1251
        %v1316 = vcvt.s32.f32 %v1252
        %v1317 = vcvt.s32.f32 %v1253
        %v1318 = vcvt.s32.f32 %v1254
        %v1319 = vcvt.s32.f32 %v1255
        %v1320 = vcvt.s32.f32 %v1256
        %v1321 = vcvt.s32.f32 %v1257
        %v1322 = vcvt.s32.f32 %v1258
        %v1323 = vcvt.s32.f32 %v1259
        %v1324 = vcvt.s32.f32 %v1260
        %v1325 = vcvt.s32.f32 %v1261
        %v1326 = vcvt.s32.f32 %v1262
        %v1327 = vcvt.s32.f32 %v1263
        %v1328 = vcvt.s32.f32 %v1264
        %v1329 = vcvt.s32.f32 %v1265
        %v1330 = vcvt.s32.f32 %v1266
        %v1331 = vcvt.s32.f32 %v1267
        %v1332 = vcvt.s32.f32 %v1268
        %v1333 = vcvt.s32.f32 %v1269
        %v1334 = vcvt.s32.f32 %v1270
        %v1335 = vcvt.s32.f32 %v1271
        %v1336 = vcvt.s32.f32 %v1272
        %v1337 = vcvt.s32.f32 %v1273
        %v1338 = vcvt.s32.f32 %v1274
        %v1339 = vcvt.s32.f32 %v1275
        %v1340 = vcvt.s32.f32 %v1276
        %v1341 = vcvt.s32.f32 %v1277
        %v1342 = vcvt.s32.f32 %v1278
        %v1343 = vcvt.s32.f32 %v1279
        %v1344 = vcvt.s32.f32 %v1280
        %v1345 = vcvt.s32.f32 %v1281
        %v1346 = vcvt.s32.f32 %v1282
        %v1347 = vcvt.s32.f32 %v1283
        %v1348 = vcvt.s32.f32 %v1284
        %v1349 = vcvt.s32.f32 %v1285
        %v1350 = vcvt.s32.f32 %v1286
        %v1351 = vcvt.s32.f32 %v1287
        %v1352 = vcvt.s32.f32 %v1288
        %v1353 = vcvt.s32.f32 %v1289
        %v1354 = vcvt.s32.f32 %v1290
        %v1355 = vcvt.s32.f32 %v1291
        %v1356 = vcvt.s32.f32 %v1292
        %v1357 = vcvt.s32.f32 %v1293
        %v1358 = vcvt.s32.f32 %v1294
        %v1359 = vcvt.s32.f32 %v1295
        %v1360 = vcvt.s32.f32 %v1296
        %v1361 = vcvt.s32.f32 %v1297
        %v1362 = vcvt.s32.f32 %v1298
        %v1363 = vcvt.s32.f32 %v1299
        %v1364 = vcvt.s32.f32 %v1300
        %v1365 = vcvt.s32.f32 %v1301
        %v1366 = vcvt.s32.f32 %v1302
        %v1367 = vcvt.s32.f32 %v1303
        %v1368 = vcvt.s32.f32 %v1304
        %v1369 = vcvt.s32.f32 %v1305
        %v1370 = vcvt.s32.f32 %v1306
        %v1371 = vcvt.s32.f32 %v1307
        %v1372 = vcvt.s32.f32 %v1308
        %v1373 = vcvt.s32.f32 %v1309
        %v1374 = vadd.f32 %v1110, %v1310
        %v1375 = vadd.f32 %v1111, %v1311
        %v1376 = vadd.f32 %v1112, %v1312
        %v1377 = vadd.f32 %v1113, %v1313
        %v1378 = vadd.f32 %v1114, %v1314
        %v1379 = vadd.f32 %v1115, %v1315
        %v1380 = vadd.f32 %v1116, %v1316
        %v1381 = vadd.f32 %v1117, %v1317
        %v1382 = vadd.f32 %v1118, %v1318
        %v1383 = vadd.f32 %v1119, %v1319
        %v1384 = vadd.f32 %v1120, %v1320
        %v1385 = vadd.f32 %v1121, %v1321
        %v1386 = vadd.f32 %v1122, %v1322
        %v1387 = vadd.f32 %v1123, %v1323
        %v1388 = vadd.f32 %v1124, %v1324
        %v1389 = vadd.f32 %v1125, %v1325
        %v1390 = vadd.f32 %v1126, %v1326
        %v1391 = vadd.f32 %v1127, %v1327
        %v1392 = vadd.f32 %v1128, %v1328
        %v1393 = vadd.f32 %v1129, %v1329
        %v1394 = vadd.f32 %v1130, %v1330
        %v1395 = vadd.f32 %v1131, %v1331
        %v1396 = vadd.f32 %v1132, %v1332
        %v1397 = vadd.f32 %v1133, %v1333
        %v1398 = vadd.f32 %v1134, %v1334
        %v1399 = vadd.f32 %v1135, %v1335
        %v1400 = vadd.f32 %v1136, %v1336
        %v1401 = vadd.f32 %v1137, %v1337
        %v1402 = vadd.f32 %v1138, %v1338
        %v1403 = vadd.f32 %v1139, %v1339
        %v1404 = vadd.f32 %v1140, %v1340
        %v1405 = vadd.f32 %v1141, %v1341
        %v1406 = vadd.f32 %v1142, %v1342
        %v1407 = vadd.f32 %v1143, %v1343
        %v1408 = vadd.f32 %v1144, %v1344
        %v1409 = vadd.f32 %v1145, %v1345
        %v1410 = vadd.f32 %v1146, %v1346
        %v1411 = vadd.f32 %v1147, %v1347
        %v1412 = vadd.f32 %v1148, %v1348
        %v1413 = vadd.f32 %v1149, %v1349
        %v1414 = vadd.f32 %v1150, %v1350
        %v1415 = vadd.f32 %v1151, %v1351
        %v1416 = vadd.f32 %v1152, %v1352
        %v1417 = vadd.f32 %v1153, %v1353
        %v1418 = vadd.f32 %v1154, %v1354
        %v1419 = vadd.f32 %v1155, %v1355
        %v1420 = vadd.f32 %v1156, %v1356
        %v1421 = vadd.f32 %v1157, %v1357
        %v1422 = vadd.f32 %v1158, %v1358
        %v1423 = vadd.f32 %v1159, %v1359
        %v1424 = vadd.f32 %v1160, %v1360
        %v1425 = vadd.f32 %v1161, %v1361
        %v1426 = vadd.f32 %v1162, %v1362
        %v1427 = vadd.f32 %v1163, %v1363
        %v1428 = vadd.f32 %v1164, %v1364
        %v1429 = vadd.f32 %v1165, %v1365
        %v1430 = vadd.f32 %v1166, %v1366
        %v1431 = vadd.f32 %v1167, %v1367
        %v1432 = vadd.f32 %v1168, %v1368
        %v1433 = vadd.f32 %v1169, %v1369
        %v1434 = vadd.f32 %v1170, %v1370
        %v1435 = vadd.f32 %v1171, %v1371
        %v1436 = vadd.f32 %v1172, %v1372
        %v1437 = vadd.f32 %v1173, %v1373
        %v1438 = vlaneseq
        %v1439 = vshrl.u32 %v1438, 7
        %v1440 = vsub.s32 4, %v1439
        %v1441 = vrot.slane %v339, %v1440
        %v1442 = vlaneseq
        %v1443 = vshrl.u32 %v1442, 7
        %v1444 = vsub.s32 4, %v1443
        %v1445 = vrot.slane %v340, %v1444
        %vm1446 = vcmp.eq.s32.totalorder %v350, %v1441
        %vm1447 = vcmp.eq.s32.totalorder %v350, %v1445
        %vm1448 = vcmp.eq.s32.totalorder %v351, %v1441
        %vm1449 = vcmp.eq.s32.totalorder %v351, %v1445
        %vm1450 = vcmp.eq.s32.totalorder %v352, %v1441
        %vm1451 = vcmp.eq.s32.totalorder %v352, %v1445
        %vm1452 = vcmp.eq.s32.totalorder %v353, %v1441
        %vm1453 = vcmp.eq.s32.totalorder %v353, %v1445
        %vm1454 = vcmp.eq.s32.totalorder %v354, %v1441
        %vm1455 = vcmp.eq.s32.totalorder %v354, %v1445
        %vm1456 = vcmp.eq.s32.totalorder %v355, %v1441
        %vm1457 = vcmp.eq.s32.totalorder %v355, %v1445
        %vm1458 = vcmp.eq.s32.totalorder %v356, %v1441
        %vm1459 = vcmp.eq.s32.totalorder %v356, %v1445
        %vm1460 = vcmp.eq.s32.totalorder %v357, %v1441
        %vm1461 = vcmp.eq.s32.totalorder %v357, %v1445
        %vm1462 = vcmp.eq.s32.totalorder %v358, %v1441
        %vm1463 = vcmp.eq.s32.totalorder %v358, %v1445
        %vm1464 = vcmp.eq.s32.totalorder %v359, %v1441
        %vm1465 = vcmp.eq.s32.totalorder %v359, %v1445
        %vm1466 = vcmp.eq.s32.totalorder %v360, %v1441
        %vm1467 = vcmp.eq.s32.totalorder %v360, %v1445
        %vm1468 = vcmp.eq.s32.totalorder %v361, %v1441
        %vm1469 = vcmp.eq.s32.totalorder %v361, %v1445
        %vm1470 = vcmp.eq.s32.totalorder %v362, %v1441
        %vm1471 = vcmp.eq.s32.totalorder %v362, %v1445
        %vm1472 = vcmp.eq.s32.totalorder %v363, %v1441
        %vm1473 = vcmp.eq.s32.totalorder %v363, %v1445
        %vm1474 = vcmp.eq.s32.totalorder %v364, %v1441
        %vm1475 = vcmp.eq.s32.totalorder %v364, %v1445
        %vm1476 = vcmp.eq.s32.totalorder %v365, %v1441
        %vm1477 = vcmp.eq.s32.totalorder %v365, %v1445
        %vm1478 = vcmp.eq.s32.totalorder %v366, %v1441
        %vm1479 = vcmp.eq.s32.totalorder %v366, %v1445
        %vm1480 = vcmp.eq.s32.totalorder %v367, %v1441
        %vm1481 = vcmp.eq.s32.totalorder %v367, %v1445
        %vm1482 = vcmp.eq.s32.totalorder %v368, %v1441
        %vm1483 = vcmp.eq.s32.totalorder %v368, %v1445
        %vm1484 = vcmp.eq.s32.totalorder %v369, %v1441
        %vm1485 = vcmp.eq.s32.totalorder %v369, %v1445
        %vm1486 = vcmp.eq.s32.totalorder %v370, %v1441
        %vm1487 = vcmp.eq.s32.totalorder %v370, %v1445
        %vm1488 = vcmp.eq.s32.totalorder %v371, %v1441
        %vm1489 = vcmp.eq.s32.totalorder %v371, %v1445
        %vm1490 = vcmp.eq.s32.totalorder %v372, %v1441
        %vm1491 = vcmp.eq.s32.totalorder %v372, %v1445
        %vm1492 = vcmp.eq.s32.totalorder %v373, %v1441
        %vm1493 = vcmp.eq.s32.totalorder %v373, %v1445
        %vm1494 = vcmp.eq.s32.totalorder %v374, %v1441
        %vm1495 = vcmp.eq.s32.totalorder %v374, %v1445
        %vm1496 = vcmp.eq.s32.totalorder %v375, %v1441
        %vm1497 = vcmp.eq.s32.totalorder %v375, %v1445
        %vm1498 = vcmp.eq.s32.totalorder %v376, %v1441
        %vm1499 = vcmp.eq.s32.totalorder %v376, %v1445
        %vm1500 = vcmp.eq.s32.totalorder %v377, %v1441
        %vm1501 = vcmp.eq.s32.totalorder %v377, %v1445
        %vm1502 = vcmp.eq.s32.totalorder %v378, %v1441
        %vm1503 = vcmp.eq.s32.totalorder %v378, %v1445
        %vm1504 = vcmp.eq.s32.totalorder %v379, %v1441
        %vm1505 = vcmp.eq.s32.totalorder %v379, %v1445
        %vm1506 = vcmp.eq.s32.totalorder %v380, %v1441
        %vm1507 = vcmp.eq.s32.totalorder %v380, %v1445
        %vm1508 = vcmp.eq.s32.totalorder %v381, %v1441
        %vm1509 = vcmp.eq.s32.totalorder %v381, %v1445
        %v1510 = vsel %vm1446, 1, 0
        %v1511 = vsel %vm1447, 1, 0
        %v1512 = vsel %vm1448, 1, 0
        %v1513 = vsel %vm1449, 1, 0
        %v1514 = vsel %vm1450, 1, 0
        %v1515 = vsel %vm1451, 1, 0
        %v1516 = vsel %vm1452, 1, 0
        %v1517 = vsel %vm1453, 1, 0
        %v1518 = vsel %vm1454, 1, 0
        %v1519 = vsel %vm1455, 1, 0
        %v1520 = vsel %vm1456, 1, 0
        %v1521 = vsel %vm1457, 1, 0
        %v1522 = vsel %vm1458, 1, 0
        %v1523 = vsel %vm1459, 1, 0
        %v1524 = vsel %vm1460, 1, 0
        %v1525 = vsel %vm1461, 1, 0
        %v1526 = vsel %vm1462, 1, 0
        %v1527 = vsel %vm1463, 1, 0
        %v1528 = vsel %vm1464, 1, 0
        %v1529 = vsel %vm1465, 1, 0
        %v1530 = vsel %vm1466, 1, 0
        %v1531 = vsel %vm1467, 1, 0
        %v1532 = vsel %vm1468, 1, 0
        %v1533 = vsel %vm1469, 1, 0
        %v1534 = vsel %vm1470, 1, 0
        %v1535 = vsel %vm1471, 1, 0
        %v1536 = vsel %vm1472, 1, 0
        %v1537 = vsel %vm1473, 1, 0
        %v1538 = vsel %vm1474, 1, 0
        %v1539 = vsel %vm1475, 1, 0
        %v1540 = vsel %vm1476, 1, 0
        %v1541 = vsel %vm1477, 1, 0
        %v1542 = vsel %vm1478, 1, 0
        %v1543 = vsel %vm1479, 1, 0
        %v1544 = vsel %vm1480, 1, 0
        %v1545 = vsel %vm1481, 1, 0
        %v1546 = vsel %vm1482, 1, 0
        %v1547 = vsel %vm1483, 1, 0
        %v1548 = vsel %vm1484, 1, 0
        %v1549 = vsel %vm1485, 1, 0
        %v1550 = vsel %vm1486, 1, 0
        %v1551 = vsel %vm1487, 1, 0
        %v1552 = vsel %vm1488, 1, 0
        %v1553 = vsel %vm1489, 1, 0
        %v1554 = vsel %vm1490, 1, 0
        %v1555 = vsel %vm1491, 1, 0
        %v1556 = vsel %vm1492, 1, 0
        %v1557 = vsel %vm1493, 1, 0
        %v1558 = vsel %vm1494, 1, 0
        %v1559 = vsel %vm1495, 1, 0
        %v1560 = vsel %vm1496, 1, 0
        %v1561 = vsel %vm1497, 1, 0
        %v1562 = vsel %vm1498, 1, 0
        %v1563 = vsel %vm1499, 1, 0
        %v1564 = vsel %vm1500, 1, 0
        %v1565 = vsel %vm1501, 1, 0
        %v1566 = vsel %vm1502, 1, 0
        %v1567 = vsel %vm1503, 1, 0
        %v1568 = vsel %vm1504, 1, 0
        %v1569 = vsel %vm1505, 1, 0
        %v1570 = vsel %vm1506, 1, 0
        %v1571 = vsel %vm1507, 1, 0
        %v1572 = vsel %vm1508, 1, 0
        %v1573 = vsel %vm1509, 1, 0
        %v1574 = vcvt.s32.f32 %v1510
        %v1575 = vcvt.s32.f32 %v1511
        %v1576 = vcvt.s32.f32 %v1512
        %v1577 = vcvt.s32.f32 %v1513
        %v1578 = vcvt.s32.f32 %v1514
        %v1579 = vcvt.s32.f32 %v1515
        %v1580 = vcvt.s32.f32 %v1516
        %v1581 = vcvt.s32.f32 %v1517
        %v1582 = vcvt.s32.f32 %v1518
        %v1583 = vcvt.s32.f32 %v1519
        %v1584 = vcvt.s32.f32 %v1520
        %v1585 = vcvt.s32.f32 %v1521
        %v1586 = vcvt.s32.f32 %v1522
        %v1587 = vcvt.s32.f32 %v1523
        %v1588 = vcvt.s32.f32 %v1524
        %v1589 = vcvt.s32.f32 %v1525
        %v1590 = vcvt.s32.f32 %v1526
        %v1591 = vcvt.s32.f32 %v1527
        %v1592 = vcvt.s32.f32 %v1528
        %v1593 = vcvt.s32.f32 %v1529
        %v1594 = vcvt.s32.f32 %v1530
        %v1595 = vcvt.s32.f32 %v1531
        %v1596 = vcvt.s32.f32 %v1532
        %v1597 = vcvt.s32.f32 %v1533
        %v1598 = vcvt.s32.f32 %v1534
        %v1599 = vcvt.s32.f32 %v1535
        %v1600 = vcvt.s32.f32 %v1536
        %v1601 = vcvt.s32.f32 %v1537
        %v1602 = vcvt.s32.f32 %v1538
        %v1603 = vcvt.s32.f32 %v1539
        %v1604 = vcvt.s32.f32 %v1540
        %v1605 = vcvt.s32.f32 %v1541
        %v1606 = vcvt.s32.f32 %v1542
        %v1607 = vcvt.s32.f32 %v1543
        %v1608 = vcvt.s32.f32 %v1544
        %v1609 = vcvt.s32.f32 %v1545
        %v1610 = vcvt.s32.f32 %v1546
        %v1611 = vcvt.s32.f32 %v1547
        %v1612 = vcvt.s32.f32 %v1548
        %v1613 = vcvt.s32.f32 %v1549
        %v1614 = vcvt.s32.f32 %v1550
        %v1615 = vcvt.s32.f32 %v1551
        %v1616 = vcvt.s32.f32 %v1552
        %v1617 = vcvt.s32.f32 %v1553
        %v1618 = vcvt.s32.f32 %v1554
        %v1619 = vcvt.s32.f32 %v1555
        %v1620 = vcvt.s32.f32 %v1556
        %v1621 = vcvt.s32.f32 %v1557
        %v1622 = vcvt.s32.f32 %v1558
        %v1623 = vcvt.s32.f32 %v1559
        %v1624 = vcvt.s32.f32 %v1560
        %v1625 = vcvt.s32.f32 %v1561
        %v1626 = vcvt.s32.f32 %v1562
        %v1627 = vcvt.s32.f32 %v1563
        %v1628 = vcvt.s32.f32 %v1564
        %v1629 = vcvt.s32.f32 %v1565
        %v1630 = vcvt.s32.f32 %v1566
        %v1631 = vcvt.s32.f32 %v1567
        %v1632 = vcvt.s32.f32 %v1568
        %v1633 = vcvt.s32.f32 %v1569
        %v1634 = vcvt.s32.f32 %v1570
        %v1635 = vcvt.s32.f32 %v1571
        %v1636 = vcvt.s32.f32 %v1572
        %v1637 = vcvt.s32.f32 %v1573
        %v1638 = vadd.f32 %v1374, %v1574
        %v1639 = vadd.f32 %v1375, %v1575
        %v1640 = vadd.f32 %v1376, %v1576
        %v1641 = vadd.f32 %v1377, %v1577
        %v1642 = vadd.f32 %v1378, %v1578
        %v1643 = vadd.f32 %v1379, %v1579
        %v1644 = vadd.f32 %v1380, %v1580
        %v1645 = vadd.f32 %v1381, %v1581
        %v1646 = vadd.f32 %v1382, %v1582
        %v1647 = vadd.f32 %v1383, %v1583
        %v1648 = vadd.f32 %v1384, %v1584
        %v1649 = vadd.f32 %v1385, %v1585
        %v1650 = vadd.f32 %v1386, %v1586
        %v1651 = vadd.f32 %v1387, %v1587
        %v1652 = vadd.f32 %v1388, %v1588
        %v1653 = vadd.f32 %v1389, %v1589
        %v1654 = vadd.f32 %v1390, %v1590
        %v1655 = vadd.f32 %v1391, %v1591
        %v1656 = vadd.f32 %v1392, %v1592
        %v1657 = vadd.f32 %v1393, %v1593
        %v1658 = vadd.f32 %v1394, %v1594
        %v1659 = vadd.f32 %v1395, %v1595
        %v1660 = vadd.f32 %v1396, %v1596
        %v1661 = vadd.f32 %v1397, %v1597
        %v1662 = vadd.f32 %v1398, %v1598
        %v1663 = vadd.f32 %v1399, %v1599
        %v1664 = vadd.f32 %v1400, %v1600
        %v1665 = vadd.f32 %v1401, %v1601
        %v1666 = vadd.f32 %v1402, %v1602
        %v1667 = vadd.f32 %v1403, %v1603
        %v1668 = vadd.f32 %v1404, %v1604
        %v1669 = vadd.f32 %v1405, %v1605
        %v1670 = vadd.f32 %v1406, %v1606
        %v1671 = vadd.f32 %v1407, %v1607
        %v1672 = vadd.f32 %v1408, %v1608
        %v1673 = vadd.f32 %v1409, %v1609
        %v1674 = vadd.f32 %v1410, %v1610
        %v1675 = vadd.f32 %v1411, %v1611
        %v1676 = vadd.f32 %v1412, %v1612
        %v1677 = vadd.f32 %v1413, %v1613
        %v1678 = vadd.f32 %v1414, %v1614
        %v1679 = vadd.f32 %v1415, %v1615
        %v1680 = vadd.f32 %v1416, %v1616
        %v1681 = vadd.f32 %v1417, %v1617
        %v1682 = vadd.f32 %v1418, %v1618
        %v1683 = vadd.f32 %v1419, %v1619
        %v1684 = vadd.f32 %v1420, %v1620
        %v1685 = vadd.f32 %v1421, %v1621
        %v1686 = vadd.f32 %v1422, %v1622
        %v1687 = vadd.f32 %v1423, %v1623
        %v1688 = vadd.f32 %v1424, %v1624
        %v1689 = vadd.f32 %v1425, %v1625
        %v1690 = vadd.f32 %v1426, %v1626
        %v1691 = vadd.f32 %v1427, %v1627
        %v1692 = vadd.f32 %v1428, %v1628
        %v1693 = vadd.f32 %v1429, %v1629
        %v1694 = vadd.f32 %v1430, %v1630
        %v1695 = vadd.f32 %v1431, %v1631
        %v1696 = vadd.f32 %v1432, %v1632
        %v1697 = vadd.f32 %v1433, %v1633
        %v1698 = vadd.f32 %v1434, %v1634
        %v1699 = vadd.f32 %v1435, %v1635
        %v1700 = vadd.f32 %v1436, %v1636
        %v1701 = vadd.f32 %v1437, %v1637
        %v1702 = vlaneseq
        %v1703 = vshrl.u32 %v1702, 7
        %v1704 = vsub.s32 5, %v1703
        %v1705 = vrot.slane %v339, %v1704
        %v1706 = vlaneseq
        %v1707 = vshrl.u32 %v1706, 7
        %v1708 = vsub.s32 5, %v1707
        %v1709 = vrot.slane %v340, %v1708
        %vm1710 = vcmp.eq.s32.totalorder %v350, %v1705
        %vm1711 = vcmp.eq.s32.totalorder %v350, %v1709
        %vm1712 = vcmp.eq.s32.totalorder %v351, %v1705
        %vm1713 = vcmp.eq.s32.totalorder %v351, %v1709
        %vm1714 = vcmp.eq.s32.totalorder %v352, %v1705
        %vm1715 = vcmp.eq.s32.totalorder %v352, %v1709
        %vm1716 = vcmp.eq.s32.totalorder %v353, %v1705
        %vm1717 = vcmp.eq.s32.totalorder %v353, %v1709
        %vm1718 = vcmp.eq.s32.totalorder %v354, %v1705
        %vm1719 = vcmp.eq.s32.totalorder %v354, %v1709
        %vm1720 = vcmp.eq.s32.totalorder %v355, %v1705
        %vm1721 = vcmp.eq.s32.totalorder %v355, %v1709
        %vm1722 = vcmp.eq.s32.totalorder %v356, %v1705
        %vm1723 = vcmp.eq.s32.totalorder %v356, %v1709
        %vm1724 = vcmp.eq.s32.totalorder %v357, %v1705
        %vm1725 = vcmp.eq.s32.totalorder %v357, %v1709
        %vm1726 = vcmp.eq.s32.totalorder %v358, %v1705
        %vm1727 = vcmp.eq.s32.totalorder %v358, %v1709
        %vm1728 = vcmp.eq.s32.totalorder %v359, %v1705
        %vm1729 = vcmp.eq.s32.totalorder %v359, %v1709
        %vm1730 = vcmp.eq.s32.totalorder %v360, %v1705
        %vm1731 = vcmp.eq.s32.totalorder %v360, %v1709
        %vm1732 = vcmp.eq.s32.totalorder %v361, %v1705
        %vm1733 = vcmp.eq.s32.totalorder %v361, %v1709
        %vm1734 = vcmp.eq.s32.totalorder %v362, %v1705
        %vm1735 = vcmp.eq.s32.totalorder %v362, %v1709
        %vm1736 = vcmp.eq.s32.totalorder %v363, %v1705
        %vm1737 = vcmp.eq.s32.totalorder %v363, %v1709
        %vm1738 = vcmp.eq.s32.totalorder %v364, %v1705
        %vm1739 = vcmp.eq.s32.totalorder %v364, %v1709
        %vm1740 = vcmp.eq.s32.totalorder %v365, %v1705
        %vm1741 = vcmp.eq.s32.totalorder %v365, %v1709
        %vm1742 = vcmp.eq.s32.totalorder %v366, %v1705
        %vm1743 = vcmp.eq.s32.totalorder %v366, %v1709
        %vm1744 = vcmp.eq.s32.totalorder %v367, %v1705
        %vm1745 = vcmp.eq.s32.totalorder %v367, %v1709
        %vm1746 = vcmp.eq.s32.totalorder %v368, %v1705
        %vm1747 = vcmp.eq.s32.totalorder %v368, %v1709
        %vm1748 = vcmp.eq.s32.totalorder %v369, %v1705
        %vm1749 = vcmp.eq.s32.totalorder %v369, %v1709
        %vm1750 = vcmp.eq.s32.totalorder %v370, %v1705
        %vm1751 = vcmp.eq.s32.totalorder %v370, %v1709
        %vm1752 = vcmp.eq.s32.totalorder %v371, %v1705
        %vm1753 = vcmp.eq.s32.totalorder %v371, %v1709
        %vm1754 = vcmp.eq.s32.totalorder %v372, %v1705
        %vm1755 = vcmp.eq.s32.totalorder %v372, %v1709
        %vm1756 = vcmp.eq.s32.totalorder %v373, %v1705
        %vm1757 = vcmp.eq.s32.totalorder %v373, %v1709
        %vm1758 = vcmp.eq.s32.totalorder %v374, %v1705
        %vm1759 = vcmp.eq.s32.totalorder %v374, %v1709
        %vm1760 = vcmp.eq.s32.totalorder %v375, %v1705
        %vm1761 = vcmp.eq.s32.totalorder %v375, %v1709
        %vm1762 = vcmp.eq.s32.totalorder %v376, %v1705
        %vm1763 = vcmp.eq.s32.totalorder %v376, %v1709
        %vm1764 = vcmp.eq.s32.totalorder %v377, %v1705
        %vm1765 = vcmp.eq.s32.totalorder %v377, %v1709
        %vm1766 = vcmp.eq.s32.totalorder %v378, %v1705
        %vm1767 = vcmp.eq.s32.totalorder %v378, %v1709
        %vm1768 = vcmp.eq.s32.totalorder %v379, %v1705
        %vm1769 = vcmp.eq.s32.totalorder %v379, %v1709
        %vm1770 = vcmp.eq.s32.totalorder %v380, %v1705
        %vm1771 = vcmp.eq.s32.totalorder %v380, %v1709
        %vm1772 = vcmp.eq.s32.totalorder %v381, %v1705
        %vm1773 = vcmp.eq.s32.totalorder %v381, %v1709
        %v1774 = vsel %vm1710, 1, 0
        %v1775 = vsel %vm1711, 1, 0
        %v1776 = vsel %vm1712, 1, 0
        %v1777 = vsel %vm1713, 1, 0
        %v1778 = vsel %vm1714, 1, 0
        %v1779 = vsel %vm1715, 1, 0
        %v1780 = vsel %vm1716, 1, 0
        %v1781 = vsel %vm1717, 1, 0
        %v1782 = vsel %vm1718, 1, 0
        %v1783 = vsel %vm1719, 1, 0
        %v1784 = vsel %vm1720, 1, 0
        %v1785 = vsel %vm1721, 1, 0
        %v1786 = vsel %vm1722, 1, 0
        %v1787 = vsel %vm1723, 1, 0
        %v1788 = vsel %vm1724, 1, 0
        %v1789 = vsel %vm1725, 1, 0
        %v1790 = vsel %vm1726, 1, 0
        %v1791 = vsel %vm1727, 1, 0
        %v1792 = vsel %vm1728, 1, 0
        %v1793 = vsel %vm1729, 1, 0
        %v1794 = vsel %vm1730, 1, 0
        %v1795 = vsel %vm1731, 1, 0
        %v1796 = vsel %vm1732, 1, 0
        %v1797 = vsel %vm1733, 1, 0
        %v1798 = vsel %vm1734, 1, 0
        %v1799 = vsel %vm1735, 1, 0
        %v1800 = vsel %vm1736, 1, 0
        %v1801 = vsel %vm1737, 1, 0
        %v1802 = vsel %vm1738, 1, 0
        %v1803 = vsel %vm1739, 1, 0
        %v1804 = vsel %vm1740, 1, 0
        %v1805 = vsel %vm1741, 1, 0
        %v1806 = vsel %vm1742, 1, 0
        %v1807 = vsel %vm1743, 1, 0
        %v1808 = vsel %vm1744, 1, 0
        %v1809 = vsel %vm1745, 1, 0
        %v1810 = vsel %vm1746, 1, 0
        %v1811 = vsel %vm1747, 1, 0
        %v1812 = vsel %vm1748, 1, 0
        %v1813 = vsel %vm1749, 1, 0
        %v1814 = vsel %vm1750, 1, 0
        %v1815 = vsel %vm1751, 1, 0
        %v1816 = vsel %vm1752, 1, 0
        %v1817 = vsel %vm1753, 1, 0
        %v1818 = vsel %vm1754, 1, 0
        %v1819 = vsel %vm1755, 1, 0
        %v1820 = vsel %vm1756, 1, 0
        %v1821 = vsel %vm1757, 1, 0
        %v1822 = vsel %vm1758, 1, 0
        %v1823 = vsel %vm1759, 1, 0
        %v1824 = vsel %vm1760, 1, 0
        %v1825 = vsel %vm1761, 1, 0
        %v1826 = vsel %vm1762, 1, 0
        %v1827 = vsel %vm1763, 1, 0
        %v1828 = vsel %vm1764, 1, 0
        %v1829 = vsel %vm1765, 1, 0
        %v1830 = vsel %vm1766, 1, 0
        %v1831 = vsel %vm1767, 1, 0
        %v1832 = vsel %vm1768, 1, 0
        %v1833 = vsel %vm1769, 1, 0
        %v1834 = vsel %vm1770, 1, 0
        %v1835 = vsel %vm1771, 1, 0
        %v1836 = vsel %vm1772, 1, 0
        %v1837 = vsel %vm1773, 1, 0
        %v1838 = vcvt.s32.f32 %v1774
        %v1839 = vcvt.s32.f32 %v1775
        %v1840 = vcvt.s32.f32 %v1776
        %v1841 = vcvt.s32.f32 %v1777
        %v1842 = vcvt.s32.f32 %v1778
        %v1843 = vcvt.s32.f32 %v1779
        %v1844 = vcvt.s32.f32 %v1780
        %v1845 = vcvt.s32.f32 %v1781
        %v1846 = vcvt.s32.f32 %v1782
        %v1847 = vcvt.s32.f32 %v1783
        %v1848 = vcvt.s32.f32 %v1784
        %v1849 = vcvt.s32.f32 %v1785
        %v1850 = vcvt.s32.f32 %v1786
        %v1851 = vcvt.s32.f32 %v1787
        %v1852 = vcvt.s32.f32 %v1788
        %v1853 = vcvt.s32.f32 %v1789
        %v1854 = vcvt.s32.f32 %v1790
        %v1855 = vcvt.s32.f32 %v1791
        %v1856 = vcvt.s32.f32 %v1792
        %v1857 = vcvt.s32.f32 %v1793
        %v1858 = vcvt.s32.f32 %v1794
        %v1859 = vcvt.s32.f32 %v1795
        %v1860 = vcvt.s32.f32 %v1796
        %v1861 = vcvt.s32.f32 %v1797
        %v1862 = vcvt.s32.f32 %v1798
        %v1863 = vcvt.s32.f32 %v1799
        %v1864 = vcvt.s32.f32 %v1800
        %v1865 = vcvt.s32.f32 %v1801
        %v1866 = vcvt.s32.f32 %v1802
        %v1867 = vcvt.s32.f32 %v1803
        %v1868 = vcvt.s32.f32 %v1804
        %v1869 = vcvt.s32.f32 %v1805
        %v1870 = vcvt.s32.f32 %v1806
        %v1871 = vcvt.s32.f32 %v1807
        %v1872 = vcvt.s32.f32 %v1808
        %v1873 = vcvt.s32.f32 %v1809
        %v1874 = vcvt.s32.f32 %v1810
        %v1875 = vcvt.s32.f32 %v1811
        %v1876 = vcvt.s32.f32 %v1812
        %v1877 = vcvt.s32.f32 %v1813
        %v1878 = vcvt.s32.f32 %v1814
        %v1879 = vcvt.s32.f32 %v1815
        %v1880 = vcvt.s32.f32 %v1816
        %v1881 = vcvt.s32.f32 %v1817
        %v1882 = vcvt.s32.f32 %v1818
        %v1883 = vcvt.s32.f32 %v1819
        %v1884 = vcvt.s32.f32 %v1820
        %v1885 = vcvt.s32.f32 %v1821
        %v1886 = vcvt.s32.f32 %v1822
        %v1887 = vcvt.s32.f32 %v1823
        %v1888 = vcvt.s32.f32 %v1824
        %v1889 = vcvt.s32.f32 %v1825
        %v1890 = vcvt.s32.f32 %v1826
        %v1891 = vcvt.s32.f32 %v1827
        %v1892 = vcvt.s32.f32 %v1828
        %v1893 = vcvt.s32.f32 %v1829
        %v1894 = vcvt.s32.f32 %v1830
        %v1895 = vcvt.s32.f32 %v1831
        %v1896 = vcvt.s32.f32 %v1832
        %v1897 = vcvt.s32.f32 %v1833
        %v1898 = vcvt.s32.f32 %v1834
        %v1899 = vcvt.s32.f32 %v1835
        %v1900 = vcvt.s32.f32 %v1836
        %v1901 = vcvt.s32.f32 %v1837
        %v1902 = vadd.f32 %v1638, %v1838
        %v1903 = vadd.f32 %v1639, %v1839
        %v1904 = vadd.f32 %v1640, %v1840
        %v1905 = vadd.f32 %v1641, %v1841
        %v1906 = vadd.f32 %v1642, %v1842
        %v1907 = vadd.f32 %v1643, %v1843
        %v1908 = vadd.f32 %v1644, %v1844
        %v1909 = vadd.f32 %v1645, %v1845
        %v1910 = vadd.f32 %v1646, %v1846
        %v1911 = vadd.f32 %v1647, %v1847
        %v1912 = vadd.f32 %v1648, %v1848
        %v1913 = vadd.f32 %v1649, %v1849
        %v1914 = vadd.f32 %v1650, %v1850
        %v1915 = vadd.f32 %v1651, %v1851
        %v1916 = vadd.f32 %v1652, %v1852
        %v1917 = vadd.f32 %v1653, %v1853
        %v1918 = vadd.f32 %v1654, %v1854
        %v1919 = vadd.f32 %v1655, %v1855
        %v1920 = vadd.f32 %v1656, %v1856
        %v1921 = vadd.f32 %v1657, %v1857
        %v1922 = vadd.f32 %v1658, %v1858
        %v1923 = vadd.f32 %v1659, %v1859
        %v1924 = vadd.f32 %v1660, %v1860
        %v1925 = vadd.f32 %v1661, %v1861
        %v1926 = vadd.f32 %v1662, %v1862
        %v1927 = vadd.f32 %v1663, %v1863
        %v1928 = vadd.f32 %v1664, %v1864
        %v1929 = vadd.f32 %v1665, %v1865
        %v1930 = vadd.f32 %v1666, %v1866
        %v1931 = vadd.f32 %v1667, %v1867
        %v1932 = vadd.f32 %v1668, %v1868
        %v1933 = vadd.f32 %v1669, %v1869
        %v1934 = vadd.f32 %v1670, %v1870
        %v1935 = vadd.f32 %v1671, %v1871
        %v1936 = vadd.f32 %v1672, %v1872
        %v1937 = vadd.f32 %v1673, %v1873
        %v1938 = vadd.f32 %v1674, %v1874
        %v1939 = vadd.f32 %v1675, %v1875
        %v1940 = vadd.f32 %v1676, %v1876
        %v1941 = vadd.f32 %v1677, %v1877
        %v1942 = vadd.f32 %v1678, %v1878
        %v1943 = vadd.f32 %v1679, %v1879
        %v1944 = vadd.f32 %v1680, %v1880
        %v1945 = vadd.f32 %v1681, %v1881
        %v1946 = vadd.f32 %v1682, %v1882
        %v1947 = vadd.f32 %v1683, %v1883
        %v1948 = vadd.f32 %v1684, %v1884
        %v1949 = vadd.f32 %v1685, %v1885
        %v1950 = vadd.f32 %v1686, %v1886
        %v1951 = vadd.f32 %v1687, %v1887
        %v1952 = vadd.f32 %v1688, %v1888
        %v1953 = vadd.f32 %v1689, %v1889
        %v1954 = vadd.f32 %v1690, %v1890
        %v1955 = vadd.f32 %v1691, %v1891
        %v1956 = vadd.f32 %v1692, %v1892
        %v1957 = vadd.f32 %v1693, %v1893
        %v1958 = vadd.f32 %v1694, %v1894
        %v1959 = vadd.f32 %v1695, %v1895
        %v1960 = vadd.f32 %v1696, %v1896
        %v1961 = vadd.f32 %v1697, %v1897
        %v1962 = vadd.f32 %v1698, %v1898
        %v1963 = vadd.f32 %v1699, %v1899
        %v1964 = vadd.f32 %v1700, %v1900
        %v1965 = vadd.f32 %v1701, %v1901
        %v1966 = vlaneseq
        %v1967 = vshrl.u32 %v1966, 7
        %v1968 = vsub.s32 6, %v1967
        %v1969 = vrot.slane %v339, %v1968
        %v1970 = vlaneseq
        %v1971 = vshrl.u32 %v1970, 7
        %v1972 = vsub.s32 6, %v1971
        %v1973 = vrot.slane %v340, %v1972
        %vm1974 = vcmp.eq.s32.totalorder %v350, %v1969
        %vm1975 = vcmp.eq.s32.totalorder %v350, %v1973
        %vm1976 = vcmp.eq.s32.totalorder %v351, %v1969
        %vm1977 = vcmp.eq.s32.totalorder %v351, %v1973
        %vm1978 = vcmp.eq.s32.totalorder %v352, %v1969
        %vm1979 = vcmp.eq.s32.totalorder %v352, %v1973
        %vm1980 = vcmp.eq.s32.totalorder %v353, %v1969
        %vm1981 = vcmp.eq.s32.totalorder %v353, %v1973
        %vm1982 = vcmp.eq.s32.totalorder %v354, %v1969
        %vm1983 = vcmp.eq.s32.totalorder %v354, %v1973
        %vm1984 = vcmp.eq.s32.totalorder %v355, %v1969
        %vm1985 = vcmp.eq.s32.totalorder %v355, %v1973
        %vm1986 = vcmp.eq.s32.totalorder %v356, %v1969
        %vm1987 = vcmp.eq.s32.totalorder %v356, %v1973
        %vm1988 = vcmp.eq.s32.totalorder %v357, %v1969
        %vm1989 = vcmp.eq.s32.totalorder %v357, %v1973
        %vm1990 = vcmp.eq.s32.totalorder %v358, %v1969
        %vm1991 = vcmp.eq.s32.totalorder %v358, %v1973
        %vm1992 = vcmp.eq.s32.totalorder %v359, %v1969
        %vm1993 = vcmp.eq.s32.totalorder %v359, %v1973
        %vm1994 = vcmp.eq.s32.totalorder %v360, %v1969
        %vm1995 = vcmp.eq.s32.totalorder %v360, %v1973
        %vm1996 = vcmp.eq.s32.totalorder %v361, %v1969
        %vm1997 = vcmp.eq.s32.totalorder %v361, %v1973
        %vm1998 = vcmp.eq.s32.totalorder %v362, %v1969
        %vm1999 = vcmp.eq.s32.totalorder %v362, %v1973
        %vm2000 = vcmp.eq.s32.totalorder %v363, %v1969
        %vm2001 = vcmp.eq.s32.totalorder %v363, %v1973
        %vm2002 = vcmp.eq.s32.totalorder %v364, %v1969
        %vm2003 = vcmp.eq.s32.totalorder %v364, %v1973
        %vm2004 = vcmp.eq.s32.totalorder %v365, %v1969
        %vm2005 = vcmp.eq.s32.totalorder %v365, %v1973
        %vm2006 = vcmp.eq.s32.totalorder %v366, %v1969
        %vm2007 = vcmp.eq.s32.totalorder %v366, %v1973
        %vm2008 = vcmp.eq.s32.totalorder %v367, %v1969
        %vm2009 = vcmp.eq.s32.totalorder %v367, %v1973
        %vm2010 = vcmp.eq.s32.totalorder %v368, %v1969
        %vm2011 = vcmp.eq.s32.totalorder %v368, %v1973
        %vm2012 = vcmp.eq.s32.totalorder %v369, %v1969
        %vm2013 = vcmp.eq.s32.totalorder %v369, %v1973
        %vm2014 = vcmp.eq.s32.totalorder %v370, %v1969
        %vm2015 = vcmp.eq.s32.totalorder %v370, %v1973
        %vm2016 = vcmp.eq.s32.totalorder %v371, %v1969
        %vm2017 = vcmp.eq.s32.totalorder %v371, %v1973
        %vm2018 = vcmp.eq.s32.totalorder %v372, %v1969
        %vm2019 = vcmp.eq.s32.totalorder %v372, %v1973
        %vm2020 = vcmp.eq.s32.totalorder %v373, %v1969
        %vm2021 = vcmp.eq.s32.totalorder %v373, %v1973
        %vm2022 = vcmp.eq.s32.totalorder %v374, %v1969
        %vm2023 = vcmp.eq.s32.totalorder %v374, %v1973
        %vm2024 = vcmp.eq.s32.totalorder %v375, %v1969
        %vm2025 = vcmp.eq.s32.totalorder %v375, %v1973
        %vm2026 = vcmp.eq.s32.totalorder %v376, %v1969
        %vm2027 = vcmp.eq.s32.totalorder %v376, %v1973
        %vm2028 = vcmp.eq.s32.totalorder %v377, %v1969
        %vm2029 = vcmp.eq.s32.totalorder %v377, %v1973
        %vm2030 = vcmp.eq.s32.totalorder %v378, %v1969
        %vm2031 = vcmp.eq.s32.totalorder %v378, %v1973
        %vm2032 = vcmp.eq.s32.totalorder %v379, %v1969
        %vm2033 = vcmp.eq.s32.totalorder %v379, %v1973
        %vm2034 = vcmp.eq.s32.totalorder %v380, %v1969
        %vm2035 = vcmp.eq.s32.totalorder %v380, %v1973
        %vm2036 = vcmp.eq.s32.totalorder %v381, %v1969
        %vm2037 = vcmp.eq.s32.totalorder %v381, %v1973
        %v2038 = vsel %vm1974, 1, 0
        %v2039 = vsel %vm1975, 1, 0
        %v2040 = vsel %vm1976, 1, 0
        %v2041 = vsel %vm1977, 1, 0
        %v2042 = vsel %vm1978, 1, 0
        %v2043 = vsel %vm1979, 1, 0
        %v2044 = vsel %vm1980, 1, 0
        %v2045 = vsel %vm1981, 1, 0
        %v2046 = vsel %vm1982, 1, 0
        %v2047 = vsel %vm1983, 1, 0
        %v2048 = vsel %vm1984, 1, 0
        %v2049 = vsel %vm1985, 1, 0
        %v2050 = vsel %vm1986, 1, 0
        %v2051 = vsel %vm1987, 1, 0
        %v2052 = vsel %vm1988, 1, 0
        %v2053 = vsel %vm1989, 1, 0
        %v2054 = vsel %vm1990, 1, 0
        %v2055 = vsel %vm1991, 1, 0
        %v2056 = vsel %vm1992, 1, 0
        %v2057 = vsel %vm1993, 1, 0
        %v2058 = vsel %vm1994, 1, 0
        %v2059 = vsel %vm1995, 1, 0
        %v2060 = vsel %vm1996, 1, 0
        %v2061 = vsel %vm1997, 1, 0
        %v2062 = vsel %vm1998, 1, 0
        %v2063 = vsel %vm1999, 1, 0
        %v2064 = vsel %vm2000, 1, 0
        %v2065 = vsel %vm2001, 1, 0
        %v2066 = vsel %vm2002, 1, 0
        %v2067 = vsel %vm2003, 1, 0
        %v2068 = vsel %vm2004, 1, 0
        %v2069 = vsel %vm2005, 1, 0
        %v2070 = vsel %vm2006, 1, 0
        %v2071 = vsel %vm2007, 1, 0
        %v2072 = vsel %vm2008, 1, 0
        %v2073 = vsel %vm2009, 1, 0
        %v2074 = vsel %vm2010, 1, 0
        %v2075 = vsel %vm2011, 1, 0
        %v2076 = vsel %vm2012, 1, 0
        %v2077 = vsel %vm2013, 1, 0
        %v2078 = vsel %vm2014, 1, 0
        %v2079 = vsel %vm2015, 1, 0
        %v2080 = vsel %vm2016, 1, 0
        %v2081 = vsel %vm2017, 1, 0
        %v2082 = vsel %vm2018, 1, 0
        %v2083 = vsel %vm2019, 1, 0
        %v2084 = vsel %vm2020, 1, 0
        %v2085 = vsel %vm2021, 1, 0
        %v2086 = vsel %vm2022, 1, 0
        %v2087 = vsel %vm2023, 1, 0
        %v2088 = vsel %vm2024, 1, 0
        %v2089 = vsel %vm2025, 1, 0
        %v2090 = vsel %vm2026, 1, 0
        %v2091 = vsel %vm2027, 1, 0
        %v2092 = vsel %vm2028, 1, 0
        %v2093 = vsel %vm2029, 1, 0
        %v2094 = vsel %vm2030, 1, 0
        %v2095 = vsel %vm2031, 1, 0
        %v2096 = vsel %vm2032, 1, 0
        %v2097 = vsel %vm2033, 1, 0
        %v2098 = vsel %vm2034, 1, 0
        %v2099 = vsel %vm2035, 1, 0
        %v2100 = vsel %vm2036, 1, 0
        %v2101 = vsel %vm2037, 1, 0
        %v2102 = vcvt.s32.f32 %v2038
        %v2103 = vcvt.s32.f32 %v2039
        %v2104 = vcvt.s32.f32 %v2040
        %v2105 = vcvt.s32.f32 %v2041
        %v2106 = vcvt.s32.f32 %v2042
        %v2107 = vcvt.s32.f32 %v2043
        %v2108 = vcvt.s32.f32 %v2044
        %v2109 = vcvt.s32.f32 %v2045
        %v2110 = vcvt.s32.f32 %v2046
        %v2111 = vcvt.s32.f32 %v2047
        %v2112 = vcvt.s32.f32 %v2048
        %v2113 = vcvt.s32.f32 %v2049
        %v2114 = vcvt.s32.f32 %v2050
        %v2115 = vcvt.s32.f32 %v2051
        %v2116 = vcvt.s32.f32 %v2052
        %v2117 = vcvt.s32.f32 %v2053
        %v2118 = vcvt.s32.f32 %v2054
        %v2119 = vcvt.s32.f32 %v2055
        %v2120 = vcvt.s32.f32 %v2056
        %v2121 = vcvt.s32.f32 %v2057
        %v2122 = vcvt.s32.f32 %v2058
        %v2123 = vcvt.s32.f32 %v2059
        %v2124 = vcvt.s32.f32 %v2060
        %v2125 = vcvt.s32.f32 %v2061
        %v2126 = vcvt.s32.f32 %v2062
        %v2127 = vcvt.s32.f32 %v2063
        %v2128 = vcvt.s32.f32 %v2064
        %v2129 = vcvt.s32.f32 %v2065
        %v2130 = vcvt.s32.f32 %v2066
        %v2131 = vcvt.s32.f32 %v2067
        %v2132 = vcvt.s32.f32 %v2068
        %v2133 = vcvt.s32.f32 %v2069
        %v2134 = vcvt.s32.f32 %v2070
        %v2135 = vcvt.s32.f32 %v2071
        %v2136 = vcvt.s32.f32 %v2072
        %v2137 = vcvt.s32.f32 %v2073
        %v2138 = vcvt.s32.f32 %v2074
        %v2139 = vcvt.s32.f32 %v2075
        %v2140 = vcvt.s32.f32 %v2076
        %v2141 = vcvt.s32.f32 %v2077
        %v2142 = vcvt.s32.f32 %v2078
        %v2143 = vcvt.s32.f32 %v2079
        %v2144 = vcvt.s32.f32 %v2080
        %v2145 = vcvt.s32.f32 %v2081
        %v2146 = vcvt.s32.f32 %v2082
        %v2147 = vcvt.s32.f32 %v2083
        %v2148 = vcvt.s32.f32 %v2084
        %v2149 = vcvt.s32.f32 %v2085
        %v2150 = vcvt.s32.f32 %v2086
        %v2151 = vcvt.s32.f32 %v2087
        %v2152 = vcvt.s32.f32 %v2088
        %v2153 = vcvt.s32.f32 %v2089
        %v2154 = vcvt.s32.f32 %v2090
        %v2155 = vcvt.s32.f32 %v2091
        %v2156 = vcvt.s32.f32 %v2092
        %v2157 = vcvt.s32.f32 %v2093
        %v2158 = vcvt.s32.f32 %v2094
        %v2159 = vcvt.s32.f32 %v2095
        %v2160 = vcvt.s32.f32 %v2096
        %v2161 = vcvt.s32.f32 %v2097
        %v2162 = vcvt.s32.f32 %v2098
        %v2163 = vcvt.s32.f32 %v2099
        %v2164 = vcvt.s32.f32 %v2100
        %v2165 = vcvt.s32.f32 %v2101
        %v2166 = vadd.f32 %v1902, %v2102
        %v2167 = vadd.f32 %v1903, %v2103
        %v2168 = vadd.f32 %v1904, %v2104
        %v2169 = vadd.f32 %v1905, %v2105
        %v2170 = vadd.f32 %v1906, %v2106
        %v2171 = vadd.f32 %v1907, %v2107
        %v2172 = vadd.f32 %v1908, %v2108
        %v2173 = vadd.f32 %v1909, %v2109
        %v2174 = vadd.f32 %v1910, %v2110
        %v2175 = vadd.f32 %v1911, %v2111
        %v2176 = vadd.f32 %v1912, %v2112
        %v2177 = vadd.f32 %v1913, %v2113
        %v2178 = vadd.f32 %v1914, %v2114
        %v2179 = vadd.f32 %v1915, %v2115
        %v2180 = vadd.f32 %v1916, %v2116
        %v2181 = vadd.f32 %v1917, %v2117
        %v2182 = vadd.f32 %v1918, %v2118
        %v2183 = vadd.f32 %v1919, %v2119
        %v2184 = vadd.f32 %v1920, %v2120
        %v2185 = vadd.f32 %v1921, %v2121
        %v2186 = vadd.f32 %v1922, %v2122
        %v2187 = vadd.f32 %v1923, %v2123
        %v2188 = vadd.f32 %v1924, %v2124
        %v2189 = vadd.f32 %v1925, %v2125
        %v2190 = vadd.f32 %v1926, %v2126
        %v2191 = vadd.f32 %v1927, %v2127
        %v2192 = vadd.f32 %v1928, %v2128
        %v2193 = vadd.f32 %v1929, %v2129
        %v2194 = vadd.f32 %v1930, %v2130
        %v2195 = vadd.f32 %v1931, %v2131
        %v2196 = vadd.f32 %v1932, %v2132
        %v2197 = vadd.f32 %v1933, %v2133
        %v2198 = vadd.f32 %v1934, %v2134
        %v2199 = vadd.f32 %v1935, %v2135
        %v2200 = vadd.f32 %v1936, %v2136
        %v2201 = vadd.f32 %v1937, %v2137
        %v2202 = vadd.f32 %v1938, %v2138
        %v2203 = vadd.f32 %v1939, %v2139
        %v2204 = vadd.f32 %v1940, %v2140
        %v2205 = vadd.f32 %v1941, %v2141
        %v2206 = vadd.f32 %v1942, %v2142
        %v2207 = vadd.f32 %v1943, %v2143
        %v2208 = vadd.f32 %v1944, %v2144
        %v2209 = vadd.f32 %v1945, %v2145
        %v2210 = vadd.f32 %v1946, %v2146
        %v2211 = vadd.f32 %v1947, %v2147
        %v2212 = vadd.f32 %v1948, %v2148
        %v2213 = vadd.f32 %v1949, %v2149
        %v2214 = vadd.f32 %v1950, %v2150
        %v2215 = vadd.f32 %v1951, %v2151
        %v2216 = vadd.f32 %v1952, %v2152
        %v2217 = vadd.f32 %v1953, %v2153
        %v2218 = vadd.f32 %v1954, %v2154
        %v2219 = vadd.f32 %v1955, %v2155
        %v2220 = vadd.f32 %v1956, %v2156
        %v2221 = vadd.f32 %v1957, %v2157
        %v2222 = vadd.f32 %v1958, %v2158
        %v2223 = vadd.f32 %v1959, %v2159
        %v2224 = vadd.f32 %v1960, %v2160
        %v2225 = vadd.f32 %v1961, %v2161
        %v2226 = vadd.f32 %v1962, %v2162
        %v2227 = vadd.f32 %v1963, %v2163
        %v2228 = vadd.f32 %v1964, %v2164
        %v2229 = vadd.f32 %v1965, %v2165
        %v2230 = vlaneseq
        %v2231 = vshrl.u32 %v2230, 7
        %v2232 = vsub.s32 7, %v2231
        %v2233 = vrot.slane %v339, %v2232
        %v2234 = vlaneseq
        %v2235 = vshrl.u32 %v2234, 7
        %v2236 = vsub.s32 7, %v2235
        %v2237 = vrot.slane %v340, %v2236
        %vm2238 = vcmp.eq.s32.totalorder %v350, %v2233
        %vm2239 = vcmp.eq.s32.totalorder %v350, %v2237
        %vm2240 = vcmp.eq.s32.totalorder %v351, %v2233
        %vm2241 = vcmp.eq.s32.totalorder %v351, %v2237
        %vm2242 = vcmp.eq.s32.totalorder %v352, %v2233
        %vm2243 = vcmp.eq.s32.totalorder %v352, %v2237
        %vm2244 = vcmp.eq.s32.totalorder %v353, %v2233
        %vm2245 = vcmp.eq.s32.totalorder %v353, %v2237
        %vm2246 = vcmp.eq.s32.totalorder %v354, %v2233
        %vm2247 = vcmp.eq.s32.totalorder %v354, %v2237
        %vm2248 = vcmp.eq.s32.totalorder %v355, %v2233
        %vm2249 = vcmp.eq.s32.totalorder %v355, %v2237
        %vm2250 = vcmp.eq.s32.totalorder %v356, %v2233
        %vm2251 = vcmp.eq.s32.totalorder %v356, %v2237
        %vm2252 = vcmp.eq.s32.totalorder %v357, %v2233
        %vm2253 = vcmp.eq.s32.totalorder %v357, %v2237
        %vm2254 = vcmp.eq.s32.totalorder %v358, %v2233
        %vm2255 = vcmp.eq.s32.totalorder %v358, %v2237
        %vm2256 = vcmp.eq.s32.totalorder %v359, %v2233
        %vm2257 = vcmp.eq.s32.totalorder %v359, %v2237
        %vm2258 = vcmp.eq.s32.totalorder %v360, %v2233
        %vm2259 = vcmp.eq.s32.totalorder %v360, %v2237
        %vm2260 = vcmp.eq.s32.totalorder %v361, %v2233
        %vm2261 = vcmp.eq.s32.totalorder %v361, %v2237
        %vm2262 = vcmp.eq.s32.totalorder %v362, %v2233
        %vm2263 = vcmp.eq.s32.totalorder %v362, %v2237
        %vm2264 = vcmp.eq.s32.totalorder %v363, %v2233
        %vm2265 = vcmp.eq.s32.totalorder %v363, %v2237
        %vm2266 = vcmp.eq.s32.totalorder %v364, %v2233
        %vm2267 = vcmp.eq.s32.totalorder %v364, %v2237
        %vm2268 = vcmp.eq.s32.totalorder %v365, %v2233
        %vm2269 = vcmp.eq.s32.totalorder %v365, %v2237
        %vm2270 = vcmp.eq.s32.totalorder %v366, %v2233
        %vm2271 = vcmp.eq.s32.totalorder %v366, %v2237
        %vm2272 = vcmp.eq.s32.totalorder %v367, %v2233
        %vm2273 = vcmp.eq.s32.totalorder %v367, %v2237
        %vm2274 = vcmp.eq.s32.totalorder %v368, %v2233
        %vm2275 = vcmp.eq.s32.totalorder %v368, %v2237
        %vm2276 = vcmp.eq.s32.totalorder %v369, %v2233
        %vm2277 = vcmp.eq.s32.totalorder %v369, %v2237
        %vm2278 = vcmp.eq.s32.totalorder %v370, %v2233
        %vm2279 = vcmp.eq.s32.totalorder %v370, %v2237
        %vm2280 = vcmp.eq.s32.totalorder %v371, %v2233
        %vm2281 = vcmp.eq.s32.totalorder %v371, %v2237
        %vm2282 = vcmp.eq.s32.totalorder %v372, %v2233
        %vm2283 = vcmp.eq.s32.totalorder %v372, %v2237
        %vm2284 = vcmp.eq.s32.totalorder %v373, %v2233
        %vm2285 = vcmp.eq.s32.totalorder %v373, %v2237
        %vm2286 = vcmp.eq.s32.totalorder %v374, %v2233
        %vm2287 = vcmp.eq.s32.totalorder %v374, %v2237
        %vm2288 = vcmp.eq.s32.totalorder %v375, %v2233
        %vm2289 = vcmp.eq.s32.totalorder %v375, %v2237
        %vm2290 = vcmp.eq.s32.totalorder %v376, %v2233
        %vm2291 = vcmp.eq.s32.totalorder %v376, %v2237
        %vm2292 = vcmp.eq.s32.totalorder %v377, %v2233
        %vm2293 = vcmp.eq.s32.totalorder %v377, %v2237
        %vm2294 = vcmp.eq.s32.totalorder %v378, %v2233
        %vm2295 = vcmp.eq.s32.totalorder %v378, %v2237
        %vm2296 = vcmp.eq.s32.totalorder %v379, %v2233
        %vm2297 = vcmp.eq.s32.totalorder %v379, %v2237
        %vm2298 = vcmp.eq.s32.totalorder %v380, %v2233
        %vm2299 = vcmp.eq.s32.totalorder %v380, %v2237
        %vm2300 = vcmp.eq.s32.totalorder %v381, %v2233
        %vm2301 = vcmp.eq.s32.totalorder %v381, %v2237
        %v2302 = vsel %vm2238, 1, 0
        %v2303 = vsel %vm2239, 1, 0
        %v2304 = vsel %vm2240, 1, 0
        %v2305 = vsel %vm2241, 1, 0
        %v2306 = vsel %vm2242, 1, 0
        %v2307 = vsel %vm2243, 1, 0
        %v2308 = vsel %vm2244, 1, 0
        %v2309 = vsel %vm2245, 1, 0
        %v2310 = vsel %vm2246, 1, 0
        %v2311 = vsel %vm2247, 1, 0
        %v2312 = vsel %vm2248, 1, 0
        %v2313 = vsel %vm2249, 1, 0
        %v2314 = vsel %vm2250, 1, 0
        %v2315 = vsel %vm2251, 1, 0
        %v2316 = vsel %vm2252, 1, 0
        %v2317 = vsel %vm2253, 1, 0
        %v2318 = vsel %vm2254, 1, 0
        %v2319 = vsel %vm2255, 1, 0
        %v2320 = vsel %vm2256, 1, 0
        %v2321 = vsel %vm2257, 1, 0
        %v2322 = vsel %vm2258, 1, 0
        %v2323 = vsel %vm2259, 1, 0
        %v2324 = vsel %vm2260, 1, 0
        %v2325 = vsel %vm2261, 1, 0
        %v2326 = vsel %vm2262, 1, 0
        %v2327 = vsel %vm2263, 1, 0
        %v2328 = vsel %vm2264, 1, 0
        %v2329 = vsel %vm2265, 1, 0
        %v2330 = vsel %vm2266, 1, 0
        %v2331 = vsel %vm2267, 1, 0
        %v2332 = vsel %vm2268, 1, 0
        %v2333 = vsel %vm2269, 1, 0
        %v2334 = vsel %vm2270, 1, 0
        %v2335 = vsel %vm2271, 1, 0
        %v2336 = vsel %vm2272, 1, 0
        %v2337 = vsel %vm2273, 1, 0
        %v2338 = vsel %vm2274, 1, 0
        %v2339 = vsel %vm2275, 1, 0
        %v2340 = vsel %vm2276, 1, 0
        %v2341 = vsel %vm2277, 1, 0
        %v2342 = vsel %vm2278, 1, 0
        %v2343 = vsel %vm2279, 1, 0
        %v2344 = vsel %vm2280, 1, 0
        %v2345 = vsel %vm2281, 1, 0
        %v2346 = vsel %vm2282, 1, 0
        %v2347 = vsel %vm2283, 1, 0
        %v2348 = vsel %vm2284, 1, 0
        %v2349 = vsel %vm2285, 1, 0
        %v2350 = vsel %vm2286, 1, 0
        %v2351 = vsel %vm2287, 1, 0
        %v2352 = vsel %vm2288, 1, 0
        %v2353 = vsel %vm2289, 1, 0
        %v2354 = vsel %vm2290, 1, 0
        %v2355 = vsel %vm2291, 1, 0
        %v2356 = vsel %vm2292, 1, 0
        %v2357 = vsel %vm2293, 1, 0
        %v2358 = vsel %vm2294, 1, 0
        %v2359 = vsel %vm2295, 1, 0
        %v2360 = vsel %vm2296, 1, 0
        %v2361 = vsel %vm2297, 1, 0
        %v2362 = vsel %vm2298, 1, 0
        %v2363 = vsel %vm2299, 1, 0
        %v2364 = vsel %vm2300, 1, 0
        %v2365 = vsel %vm2301, 1, 0
        %v2366 = vcvt.s32.f32 %v2302
        %v2367 = vcvt.s32.f32 %v2303
        %v2368 = vcvt.s32.f32 %v2304
        %v2369 = vcvt.s32.f32 %v2305
        %v2370 = vcvt.s32.f32 %v2306
        %v2371 = vcvt.s32.f32 %v2307
        %v2372 = vcvt.s32.f32 %v2308
        %v2373 = vcvt.s32.f32 %v2309
        %v2374 = vcvt.s32.f32 %v2310
        %v2375 = vcvt.s32.f32 %v2311
        %v2376 = vcvt.s32.f32 %v2312
        %v2377 = vcvt.s32.f32 %v2313
        %v2378 = vcvt.s32.f32 %v2314
        %v2379 = vcvt.s32.f32 %v2315
        %v2380 = vcvt.s32.f32 %v2316
        %v2381 = vcvt.s32.f32 %v2317
        %v2382 = vcvt.s32.f32 %v2318
        %v2383 = vcvt.s32.f32 %v2319
        %v2384 = vcvt.s32.f32 %v2320
        %v2385 = vcvt.s32.f32 %v2321
        %v2386 = vcvt.s32.f32 %v2322
        %v2387 = vcvt.s32.f32 %v2323
        %v2388 = vcvt.s32.f32 %v2324
        %v2389 = vcvt.s32.f32 %v2325
        %v2390 = vcvt.s32.f32 %v2326
        %v2391 = vcvt.s32.f32 %v2327
        %v2392 = vcvt.s32.f32 %v2328
        %v2393 = vcvt.s32.f32 %v2329
        %v2394 = vcvt.s32.f32 %v2330
        %v2395 = vcvt.s32.f32 %v2331
        %v2396 = vcvt.s32.f32 %v2332
        %v2397 = vcvt.s32.f32 %v2333
        %v2398 = vcvt.s32.f32 %v2334
        %v2399 = vcvt.s32.f32 %v2335
        %v2400 = vcvt.s32.f32 %v2336
        %v2401 = vcvt.s32.f32 %v2337
        %v2402 = vcvt.s32.f32 %v2338
        %v2403 = vcvt.s32.f32 %v2339
        %v2404 = vcvt.s32.f32 %v2340
        %v2405 = vcvt.s32.f32 %v2341
        %v2406 = vcvt.s32.f32 %v2342
        %v2407 = vcvt.s32.f32 %v2343
        %v2408 = vcvt.s32.f32 %v2344
        %v2409 = vcvt.s32.f32 %v2345
        %v2410 = vcvt.s32.f32 %v2346
        %v2411 = vcvt.s32.f32 %v2347
        %v2412 = vcvt.s32.f32 %v2348
        %v2413 = vcvt.s32.f32 %v2349
        %v2414 = vcvt.s32.f32 %v2350
        %v2415 = vcvt.s32.f32 %v2351
        %v2416 = vcvt.s32.f32 %v2352
        %v2417 = vcvt.s32.f32 %v2353
        %v2418 = vcvt.s32.f32 %v2354
        %v2419 = vcvt.s32.f32 %v2355
        %v2420 = vcvt.s32.f32 %v2356
        %v2421 = vcvt.s32.f32 %v2357
        %v2422 = vcvt.s32.f32 %v2358
        %v2423 = vcvt.s32.f32 %v2359
        %v2424 = vcvt.s32.f32 %v2360
        %v2425 = vcvt.s32.f32 %v2361
        %v2426 = vcvt.s32.f32 %v2362
        %v2427 = vcvt.s32.f32 %v2363
        %v2428 = vcvt.s32.f32 %v2364
        %v2429 = vcvt.s32.f32 %v2365
        %v2430 = vadd.f32 %v2166, %v2366
        %v2431 = vadd.f32 %v2167, %v2367
        %v2432 = vadd.f32 %v2168, %v2368
        %v2433 = vadd.f32 %v2169, %v2369
        %v2434 = vadd.f32 %v2170, %v2370
        %v2435 = vadd.f32 %v2171, %v2371
        %v2436 = vadd.f32 %v2172, %v2372
        %v2437 = vadd.f32 %v2173, %v2373
        %v2438 = vadd.f32 %v2174, %v2374
        %v2439 = vadd.f32 %v2175, %v2375
        %v2440 = vadd.f32 %v2176, %v2376
        %v2441 = vadd.f32 %v2177, %v2377
        %v2442 = vadd.f32 %v2178, %v2378
        %v2443 = vadd.f32 %v2179, %v2379
        %v2444 = vadd.f32 %v2180, %v2380
        %v2445 = vadd.f32 %v2181, %v2381
        %v2446 = vadd.f32 %v2182, %v2382
        %v2447 = vadd.f32 %v2183, %v2383
        %v2448 = vadd.f32 %v2184, %v2384
        %v2449 = vadd.f32 %v2185, %v2385
        %v2450 = vadd.f32 %v2186, %v2386
        %v2451 = vadd.f32 %v2187, %v2387
        %v2452 = vadd.f32 %v2188, %v2388
        %v2453 = vadd.f32 %v2189, %v2389
        %v2454 = vadd.f32 %v2190, %v2390
        %v2455 = vadd.f32 %v2191, %v2391
        %v2456 = vadd.f32 %v2192, %v2392
        %v2457 = vadd.f32 %v2193, %v2393
        %v2458 = vadd.f32 %v2194, %v2394
        %v2459 = vadd.f32 %v2195, %v2395
        %v2460 = vadd.f32 %v2196, %v2396
        %v2461 = vadd.f32 %v2197, %v2397
        %v2462 = vadd.f32 %v2198, %v2398
        %v2463 = vadd.f32 %v2199, %v2399
        %v2464 = vadd.f32 %v2200, %v2400
        %v2465 = vadd.f32 %v2201, %v2401
        %v2466 = vadd.f32 %v2202, %v2402
        %v2467 = vadd.f32 %v2203, %v2403
        %v2468 = vadd.f32 %v2204, %v2404
        %v2469 = vadd.f32 %v2205, %v2405
        %v2470 = vadd.f32 %v2206, %v2406
        %v2471 = vadd.f32 %v2207, %v2407
        %v2472 = vadd.f32 %v2208, %v2408
        %v2473 = vadd.f32 %v2209, %v2409
        %v2474 = vadd.f32 %v2210, %v2410
        %v2475 = vadd.f32 %v2211, %v2411
        %v2476 = vadd.f32 %v2212, %v2412
        %v2477 = vadd.f32 %v2213, %v2413
        %v2478 = vadd.f32 %v2214, %v2414
        %v2479 = vadd.f32 %v2215, %v2415
        %v2480 = vadd.f32 %v2216, %v2416
        %v2481 = vadd.f32 %v2217, %v2417
        %v2482 = vadd.f32 %v2218, %v2418
        %v2483 = vadd.f32 %v2219, %v2419
        %v2484 = vadd.f32 %v2220, %v2420
        %v2485 = vadd.f32 %v2221, %v2421
        %v2486 = vadd.f32 %v2222, %v2422
        %v2487 = vadd.f32 %v2223, %v2423
        %v2488 = vadd.f32 %v2224, %v2424
        %v2489 = vadd.f32 %v2225, %v2425
        %v2490 = vadd.f32 %v2226, %v2426
        %v2491 = vadd.f32 %v2227, %v2427
        %v2492 = vadd.f32 %v2228, %v2428
        %v2493 = vadd.f32 %v2229, %v2429
        %v2494 = vlaneseq
        %v2495 = vshrl.u32 %v2494, 7
        %v2496 = vsub.s32 0, %v2495
        %v2497 = vrot.slane %v341, %v2496
        %v2498 = vlaneseq
        %v2499 = vshrl.u32 %v2498, 7
        %v2500 = vsub.s32 0, %v2499
        %v2501 = vrot.slane %v342, %v2500
        %vm2502 = vcmp.eq.s32.totalorder %v350, %v2497
        %vm2503 = vcmp.eq.s32.totalorder %v350, %v2501
        %vm2504 = vcmp.eq.s32.totalorder %v351, %v2497
        %vm2505 = vcmp.eq.s32.totalorder %v351, %v2501
        %vm2506 = vcmp.eq.s32.totalorder %v352, %v2497
        %vm2507 = vcmp.eq.s32.totalorder %v352, %v2501
        %vm2508 = vcmp.eq.s32.totalorder %v353, %v2497
        %vm2509 = vcmp.eq.s32.totalorder %v353, %v2501
        %vm2510 = vcmp.eq.s32.totalorder %v354, %v2497
        %vm2511 = vcmp.eq.s32.totalorder %v354, %v2501
        %vm2512 = vcmp.eq.s32.totalorder %v355, %v2497
        %vm2513 = vcmp.eq.s32.totalorder %v355, %v2501
        %vm2514 = vcmp.eq.s32.totalorder %v356, %v2497
        %vm2515 = vcmp.eq.s32.totalorder %v356, %v2501
        %vm2516 = vcmp.eq.s32.totalorder %v357, %v2497
        %vm2517 = vcmp.eq.s32.totalorder %v357, %v2501
        %vm2518 = vcmp.eq.s32.totalorder %v358, %v2497
        %vm2519 = vcmp.eq.s32.totalorder %v358, %v2501
        %vm2520 = vcmp.eq.s32.totalorder %v359, %v2497
        %vm2521 = vcmp.eq.s32.totalorder %v359, %v2501
        %vm2522 = vcmp.eq.s32.totalorder %v360, %v2497
        %vm2523 = vcmp.eq.s32.totalorder %v360, %v2501
        %vm2524 = vcmp.eq.s32.totalorder %v361, %v2497
        %vm2525 = vcmp.eq.s32.totalorder %v361, %v2501
        %vm2526 = vcmp.eq.s32.totalorder %v362, %v2497
        %vm2527 = vcmp.eq.s32.totalorder %v362, %v2501
        %vm2528 = vcmp.eq.s32.totalorder %v363, %v2497
        %vm2529 = vcmp.eq.s32.totalorder %v363, %v2501
        %vm2530 = vcmp.eq.s32.totalorder %v364, %v2497
        %vm2531 = vcmp.eq.s32.totalorder %v364, %v2501
        %vm2532 = vcmp.eq.s32.totalorder %v365, %v2497
        %vm2533 = vcmp.eq.s32.totalorder %v365, %v2501
        %vm2534 = vcmp.eq.s32.totalorder %v366, %v2497
        %vm2535 = vcmp.eq.s32.totalorder %v366, %v2501
        %vm2536 = vcmp.eq.s32.totalorder %v367, %v2497
        %vm2537 = vcmp.eq.s32.totalorder %v367, %v2501
        %vm2538 = vcmp.eq.s32.totalorder %v368, %v2497
        %vm2539 = vcmp.eq.s32.totalorder %v368, %v2501
        %vm2540 = vcmp.eq.s32.totalorder %v369, %v2497
        %vm2541 = vcmp.eq.s32.totalorder %v369, %v2501
        %vm2542 = vcmp.eq.s32.totalorder %v370, %v2497
        %vm2543 = vcmp.eq.s32.totalorder %v370, %v2501
        %vm2544 = vcmp.eq.s32.totalorder %v371, %v2497
        %vm2545 = vcmp.eq.s32.totalorder %v371, %v2501
        %vm2546 = vcmp.eq.s32.totalorder %v372, %v2497
        %vm2547 = vcmp.eq.s32.totalorder %v372, %v2501
        %vm2548 = vcmp.eq.s32.totalorder %v373, %v2497
        %vm2549 = vcmp.eq.s32.totalorder %v373, %v2501
        %vm2550 = vcmp.eq.s32.totalorder %v374, %v2497
        %vm2551 = vcmp.eq.s32.totalorder %v374, %v2501
        %vm2552 = vcmp.eq.s32.totalorder %v375, %v2497
        %vm2553 = vcmp.eq.s32.totalorder %v375, %v2501
        %vm2554 = vcmp.eq.s32.totalorder %v376, %v2497
        %vm2555 = vcmp.eq.s32.totalorder %v376, %v2501
        %vm2556 = vcmp.eq.s32.totalorder %v377, %v2497
        %vm2557 = vcmp.eq.s32.totalorder %v377, %v2501
        %vm2558 = vcmp.eq.s32.totalorder %v378, %v2497
        %vm2559 = vcmp.eq.s32.totalorder %v378, %v2501
        %vm2560 = vcmp.eq.s32.totalorder %v379, %v2497
        %vm2561 = vcmp.eq.s32.totalorder %v379, %v2501
        %vm2562 = vcmp.eq.s32.totalorder %v380, %v2497
        %vm2563 = vcmp.eq.s32.totalorder %v380, %v2501
        %vm2564 = vcmp.eq.s32.totalorder %v381, %v2497
        %vm2565 = vcmp.eq.s32.totalorder %v381, %v2501
        %v2566 = vsel %vm2502, 1, 0
        %v2567 = vsel %vm2503, 1, 0
        %v2568 = vsel %vm2504, 1, 0
        %v2569 = vsel %vm2505, 1, 0
        %v2570 = vsel %vm2506, 1, 0
        %v2571 = vsel %vm2507, 1, 0
        %v2572 = vsel %vm2508, 1, 0
        %v2573 = vsel %vm2509, 1, 0
        %v2574 = vsel %vm2510, 1, 0
        %v2575 = vsel %vm2511, 1, 0
        %v2576 = vsel %vm2512, 1, 0
        %v2577 = vsel %vm2513, 1, 0
        %v2578 = vsel %vm2514, 1, 0
        %v2579 = vsel %vm2515, 1, 0
        %v2580 = vsel %vm2516, 1, 0
        %v2581 = vsel %vm2517, 1, 0
        %v2582 = vsel %vm2518, 1, 0
        %v2583 = vsel %vm2519, 1, 0
        %v2584 = vsel %vm2520, 1, 0
        %v2585 = vsel %vm2521, 1, 0
        %v2586 = vsel %vm2522, 1, 0
        %v2587 = vsel %vm2523, 1, 0
        %v2588 = vsel %vm2524, 1, 0
        %v2589 = vsel %vm2525, 1, 0
        %v2590 = vsel %vm2526, 1, 0
        %v2591 = vsel %vm2527, 1, 0
        %v2592 = vsel %vm2528, 1, 0
        %v2593 = vsel %vm2529, 1, 0
        %v2594 = vsel %vm2530, 1, 0
        %v2595 = vsel %vm2531, 1, 0
        %v2596 = vsel %vm2532, 1, 0
        %v2597 = vsel %vm2533, 1, 0
        %v2598 = vsel %vm2534, 1, 0
        %v2599 = vsel %vm2535, 1, 0
        %v2600 = vsel %vm2536, 1, 0
        %v2601 = vsel %vm2537, 1, 0
        %v2602 = vsel %vm2538, 1, 0
        %v2603 = vsel %vm2539, 1, 0
        %v2604 = vsel %vm2540, 1, 0
        %v2605 = vsel %vm2541, 1, 0
        %v2606 = vsel %vm2542, 1, 0
        %v2607 = vsel %vm2543, 1, 0
        %v2608 = vsel %vm2544, 1, 0
        %v2609 = vsel %vm2545, 1, 0
        %v2610 = vsel %vm2546, 1, 0
        %v2611 = vsel %vm2547, 1, 0
        %v2612 = vsel %vm2548, 1, 0
        %v2613 = vsel %vm2549, 1, 0
        %v2614 = vsel %vm2550, 1, 0
        %v2615 = vsel %vm2551, 1, 0
        %v2616 = vsel %vm2552, 1, 0
        %v2617 = vsel %vm2553, 1, 0
        %v2618 = vsel %vm2554, 1, 0
        %v2619 = vsel %vm2555, 1, 0
        %v2620 = vsel %vm2556, 1, 0
        %v2621 = vsel %vm2557, 1, 0
        %v2622 = vsel %vm2558, 1, 0
        %v2623 = vsel %vm2559, 1, 0
        %v2624 = vsel %vm2560, 1, 0
        %v2625 = vsel %vm2561, 1, 0
        %v2626 = vsel %vm2562, 1, 0
        %v2627 = vsel %vm2563, 1, 0
        %v2628 = vsel %vm2564, 1, 0
        %v2629 = vsel %vm2565, 1, 0
        %v2630 = vcvt.s32.f32 %v2566
        %v2631 = vcvt.s32.f32 %v2567
        %v2632 = vcvt.s32.f32 %v2568
        %v2633 = vcvt.s32.f32 %v2569
        %v2634 = vcvt.s32.f32 %v2570
        %v2635 = vcvt.s32.f32 %v2571
        %v2636 = vcvt.s32.f32 %v2572
        %v2637 = vcvt.s32.f32 %v2573
        %v2638 = vcvt.s32.f32 %v2574
        %v2639 = vcvt.s32.f32 %v2575
        %v2640 = vcvt.s32.f32 %v2576
        %v2641 = vcvt.s32.f32 %v2577
        %v2642 = vcvt.s32.f32 %v2578
        %v2643 = vcvt.s32.f32 %v2579
        %v2644 = vcvt.s32.f32 %v2580
        %v2645 = vcvt.s32.f32 %v2581
        %v2646 = vcvt.s32.f32 %v2582
        %v2647 = vcvt.s32.f32 %v2583
        %v2648 = vcvt.s32.f32 %v2584
        %v2649 = vcvt.s32.f32 %v2585
        %v2650 = vcvt.s32.f32 %v2586
        %v2651 = vcvt.s32.f32 %v2587
        %v2652 = vcvt.s32.f32 %v2588
        %v2653 = vcvt.s32.f32 %v2589
        %v2654 = vcvt.s32.f32 %v2590
        %v2655 = vcvt.s32.f32 %v2591
        %v2656 = vcvt.s32.f32 %v2592
        %v2657 = vcvt.s32.f32 %v2593
        %v2658 = vcvt.s32.f32 %v2594
        %v2659 = vcvt.s32.f32 %v2595
        %v2660 = vcvt.s32.f32 %v2596
        %v2661 = vcvt.s32.f32 %v2597
        %v2662 = vcvt.s32.f32 %v2598
        %v2663 = vcvt.s32.f32 %v2599
        %v2664 = vcvt.s32.f32 %v2600
        %v2665 = vcvt.s32.f32 %v2601
        %v2666 = vcvt.s32.f32 %v2602
        %v2667 = vcvt.s32.f32 %v2603
        %v2668 = vcvt.s32.f32 %v2604
        %v2669 = vcvt.s32.f32 %v2605
        %v2670 = vcvt.s32.f32 %v2606
        %v2671 = vcvt.s32.f32 %v2607
        %v2672 = vcvt.s32.f32 %v2608
        %v2673 = vcvt.s32.f32 %v2609
        %v2674 = vcvt.s32.f32 %v2610
        %v2675 = vcvt.s32.f32 %v2611
        %v2676 = vcvt.s32.f32 %v2612
        %v2677 = vcvt.s32.f32 %v2613
        %v2678 = vcvt.s32.f32 %v2614
        %v2679 = vcvt.s32.f32 %v2615
        %v2680 = vcvt.s32.f32 %v2616
        %v2681 = vcvt.s32.f32 %v2617
        %v2682 = vcvt.s32.f32 %v2618
        %v2683 = vcvt.s32.f32 %v2619
        %v2684 = vcvt.s32.f32 %v2620
        %v2685 = vcvt.s32.f32 %v2621
        %v2686 = vcvt.s32.f32 %v2622
        %v2687 = vcvt.s32.f32 %v2623
        %v2688 = vcvt.s32.f32 %v2624
        %v2689 = vcvt.s32.f32 %v2625
        %v2690 = vcvt.s32.f32 %v2626
        %v2691 = vcvt.s32.f32 %v2627
        %v2692 = vcvt.s32.f32 %v2628
        %v2693 = vcvt.s32.f32 %v2629
        %v2694 = vadd.f32 %v2430, %v2630
        %v2695 = vadd.f32 %v2431, %v2631
        %v2696 = vadd.f32 %v2432, %v2632
        %v2697 = vadd.f32 %v2433, %v2633
        %v2698 = vadd.f32 %v2434, %v2634
        %v2699 = vadd.f32 %v2435, %v2635
        %v2700 = vadd.f32 %v2436, %v2636
        %v2701 = vadd.f32 %v2437, %v2637
        %v2702 = vadd.f32 %v2438, %v2638
        %v2703 = vadd.f32 %v2439, %v2639
        %v2704 = vadd.f32 %v2440, %v2640
        %v2705 = vadd.f32 %v2441, %v2641
        %v2706 = vadd.f32 %v2442, %v2642
        %v2707 = vadd.f32 %v2443, %v2643
        %v2708 = vadd.f32 %v2444, %v2644
        %v2709 = vadd.f32 %v2445, %v2645
        %v2710 = vadd.f32 %v2446, %v2646
        %v2711 = vadd.f32 %v2447, %v2647
        %v2712 = vadd.f32 %v2448, %v2648
        %v2713 = vadd.f32 %v2449, %v2649
        %v2714 = vadd.f32 %v2450, %v2650
        %v2715 = vadd.f32 %v2451, %v2651
        %v2716 = vadd.f32 %v2452, %v2652
        %v2717 = vadd.f32 %v2453, %v2653
        %v2718 = vadd.f32 %v2454, %v2654
        %v2719 = vadd.f32 %v2455, %v2655
        %v2720 = vadd.f32 %v2456, %v2656
        %v2721 = vadd.f32 %v2457, %v2657
        %v2722 = vadd.f32 %v2458, %v2658
        %v2723 = vadd.f32 %v2459, %v2659
        %v2724 = vadd.f32 %v2460, %v2660
        %v2725 = vadd.f32 %v2461, %v2661
        %v2726 = vadd.f32 %v2462, %v2662
        %v2727 = vadd.f32 %v2463, %v2663
        %v2728 = vadd.f32 %v2464, %v2664
        %v2729 = vadd.f32 %v2465, %v2665
        %v2730 = vadd.f32 %v2466, %v2666
        %v2731 = vadd.f32 %v2467, %v2667
        %v2732 = vadd.f32 %v2468, %v2668
        %v2733 = vadd.f32 %v2469, %v2669
        %v2734 = vadd.f32 %v2470, %v2670
        %v2735 = vadd.f32 %v2471, %v2671
        %v2736 = vadd.f32 %v2472, %v2672
        %v2737 = vadd.f32 %v2473, %v2673
        %v2738 = vadd.f32 %v2474, %v2674
        %v2739 = vadd.f32 %v2475, %v2675
        %v2740 = vadd.f32 %v2476, %v2676
        %v2741 = vadd.f32 %v2477, %v2677
        %v2742 = vadd.f32 %v2478, %v2678
        %v2743 = vadd.f32 %v2479, %v2679
        %v2744 = vadd.f32 %v2480, %v2680
        %v2745 = vadd.f32 %v2481, %v2681
        %v2746 = vadd.f32 %v2482, %v2682
        %v2747 = vadd.f32 %v2483, %v2683
        %v2748 = vadd.f32 %v2484, %v2684
        %v2749 = vadd.f32 %v2485, %v2685
        %v2750 = vadd.f32 %v2486, %v2686
        %v2751 = vadd.f32 %v2487, %v2687
        %v2752 = vadd.f32 %v2488, %v2688
        %v2753 = vadd.f32 %v2489, %v2689
        %v2754 = vadd.f32 %v2490, %v2690
        %v2755 = vadd.f32 %v2491, %v2691
        %v2756 = vadd.f32 %v2492, %v2692
        %v2757 = vadd.f32 %v2493, %v2693
        %v2758 = vld [vmem:[%s326] sm:$0xff]
        %v2759 = vld [vmem:[#allocation2] sm:$0xff]
        %v2761 = vcombine.high %v2758, %v2758
        %2763 = vmatprep.subr.mxu0 %v2695
        %2764 = vmatpush1.msra.mxu0 %v2694
        %2765 = vmatprep.subr.mxu0 %v2697
        %2766 = vmatpush1.msra.mxu0 %v2696
        %2767 = vmatprep.subr.mxu0 %v2699
        %2768 = vmatpush1.msra.mxu0 %v2698
        %2769 = vmatprep.subr.mxu0 %v2701
        %2770 = vmatpush1.msra.mxu0 %v2700
        %2771 = vmatprep.subr.mxu0 %v2703
        %2772 = vmatpush1.msra.mxu0 %v2702
        %2773 = vmatprep.subr.mxu0 %v2705
        %2774 = vmatpush1.msra.mxu0 %v2704
        %2775 = vmatprep.subr.mxu0 %v2707
        %2776 = vmatpush1.msra.mxu0 %v2706
        %2777 = vmatprep.subr.mxu0 %v2709
        %2778 = vmatpush1.msra.mxu0 %v2708
        %2779 = vmatprep.subr.mxu0 %v2711
        %2780 = vmatpush1.msra.mxu0 %v2710
        %2781 = vmatprep.subr.mxu0 %v2713
        %2782 = vmatpush1.msra.mxu0 %v2712
        %2783 = vmatprep.subr.mxu0 %v2715
        %2784 = vmatpush1.msra.mxu0 %v2714
        %2785 = vmatprep.subr.mxu0 %v2717
        %2786 = vmatpush1.msra.mxu0 %v2716
        %2787 = vmatprep.subr.mxu0 %v2719
        %2788 = vmatpush1.msra.mxu0 %v2718
        %2789 = vmatprep.subr.mxu0 %v2721
        %2790 = vmatpush1.msra.mxu0 %v2720
        %2791 = vmatprep.subr.mxu0 %v2723
        %2792 = vmatpush1.msra.mxu0 %v2722
        %2793 = vmatprep.subr.mxu0 %v2725
        %2794 = vmatpush1.msra.mxu0 %v2724
        %2795 = vmatprep.subr.mxu0 %v2727
        %2796 = vmatpush1.msra.mxu0 %v2726
        %2797 = vmatprep.subr.mxu0 %v2729
        %2798 = vmatpush1.msra.mxu0 %v2728
        %2799 = vmatprep.subr.mxu0 %v2731
        %2800 = vmatpush1.msra.mxu0 %v2730
        %2801 = vmatprep.subr.mxu0 %v2733
        %2802 = vmatpush1.msra.mxu0 %v2732
        %2803 = vmatprep.subr.mxu0 %v2735
        %2804 = vmatpush1.msra.mxu0 %v2734
        %2805 = vmatprep.subr.mxu0 %v2737
        %2806 = vmatpush1.msra.mxu0 %v2736
        %2807 = vmatprep.subr.mxu0 %v2739
        %2808 = vmatpush1.msra.mxu0 %v2738
        %2809 = vmatprep.subr.mxu0 %v2741
        %2810 = vmatpush1.msra.mxu0 %v2740
        %2811 = vmatprep.subr.mxu0 %v2743
        %2812 = vmatpush1.msra.mxu0 %v2742
        %2813 = vmatprep.subr.mxu0 %v2745
        %2814 = vmatpush1.msra.mxu0 %v2744
        %2815 = vmatprep.subr.mxu0 %v2747
        %2816 = vmatpush1.msra.mxu0 %v2746
        %2817 = vmatprep.subr.mxu0 %v2749
        %2818 = vmatpush1.msra.mxu0 %v2748
        %2819 = vmatprep.subr.mxu0 %v2751
        %2820 = vmatpush1.msra.mxu0 %v2750
        %2821 = vmatprep.subr.mxu0 %v2753
        %2822 = vmatpush1.msra.mxu0 %v2752
        %2823 = vmatprep.subr.mxu0 %v2755
        %2824 = vmatpush1.msra.mxu0 %v2754
        %2825 = vmatprep.subr.mxu0 %v2757
        %2826 = vmatpush1.msra.mxu0 %v2756
        %2827 = vmatprep.mubr.f32.mxu0 %v2761
        %2828 = vmatmul.mubr.f32.gmra.mrb[0].mxu0 %v2758
        %v2829 = vpop.f32.mrb[0].mxu0
        %v2830 = vadd.f32 0.0, %v2829
        %v2831 = vpop.f32.mrb[0].mxu0
        %v2832 = vadd.f32 0.0, %v2831
        %2833 = vdwg.mxu0
        %v2836 = vcombine.low %v2830, %v2832
        %v2838 = vadd.f32 %v2759, %v2836
        %2839 = vst [vmem:[#allocation2] sm:$0xff] %v2838
        %v2840 = vld [vmem:[#allocation2] sm:$0xff]
        %v2841 = vld [vmem:[%s4] sm:$0xff]
        %2843 = vset.pattern.permute.xlu0 0
        %2844 = vperm.xlu0 %2843, %v2841
        %v2845 = vpop.permute.xlu0 %2844
        %v2848 = vcombine.high %v2840, %v2840
        %vm2849 = vcmask 31744
        %v2851 = vsel %vm2849, %v343, 0
        %vm2853 = vcmask 1043456
        %v2854 = vsel %vm2853, %v2840, 0
        %v2856 = vsel %vm2853, %v2848, 0
        %2858 = vmatprep.subr.mxu0 %v2856
        %2859 = vmatpush1.msra.mxu0 %v2854
        %2860 = vmatprep.subr.mxu0 0.0
        %2861 = vmatpush1.msra.mxu0 0.0
        %2862 = vmatprep.subr.mxu0 0.0
        %2863 = vmatpush1.msra.mxu0 0.0
        %2864 = vmatprep.subr.mxu0 0.0
        %2865 = vmatpush1.msra.mxu0 0.0
        %2866 = vmatprep.subr.mxu0 0.0
        %2867 = vmatpush1.msra.mxu0 0.0
        %2868 = vmatprep.subr.mxu0 0.0
        %2869 = vmatpush1.msra.mxu0 0.0
        %2870 = vmatprep.subr.mxu0 0.0
        %2871 = vmatpush1.msra.mxu0 0.0
        %2872 = vmatprep.subr.mxu0 0.0
        %2873 = vmatpush1.msra.mxu0 0.0
        %2874 = vmatprep.subr.mxu0 0.0
        %2875 = vmatpush1.msra.mxu0 0.0
        %2876 = vmatprep.subr.mxu0 0.0
        %2877 = vmatpush1.msra.mxu0 0.0
        %2878 = vmatprep.subr.mxu0 0.0
        %2879 = vmatpush1.msra.mxu0 0.0
        %2880 = vmatprep.subr.mxu0 0.0
        %2881 = vmatpush1.msra.mxu0 0.0
        %2882 = vmatprep.subr.mxu0 0.0
        %2883 = vmatpush1.msra.mxu0 0.0
        %2884 = vmatprep.subr.mxu0 0.0
        %2885 = vmatpush1.msra.mxu0 0.0
        %2886 = vmatprep.subr.mxu0 0.0
        %2887 = vmatpush1.msra.mxu0 0.0
        %2888 = vmatprep.subr.mxu0 0.0
        %2889 = vmatpush1.msra.mxu0 0.0
        %2890 = vmatprep.subr.mxu0 0.0
        %2891 = vmatpush1.msra.mxu0 0.0
        %2892 = vmatprep.subr.mxu0 0.0
        %2893 = vmatpush1.msra.mxu0 0.0
        %2894 = vmatprep.subr.mxu0 0.0
        %2895 = vmatpush1.msra.mxu0 0.0
        %2896 = vmatprep.subr.mxu0 0.0
        %2897 = vmatpush1.msra.mxu0 0.0
        %2898 = vmatprep.subr.mxu0 0.0
        %2899 = vmatpush1.msra.mxu0 0.0
        %2900 = vmatprep.subr.mxu0 0.0
        %2901 = vmatpush1.msra.mxu0 0.0
        %2902 = vmatprep.subr.mxu0 0.0
        %2903 = vmatpush1.msra.mxu0 0.0
        %2904 = vmatprep.subr.mxu0 0.0
        %2905 = vmatpush1.msra.mxu0 0.0
        %2906 = vmatprep.subr.mxu0 0.0
        %2907 = vmatpush1.msra.mxu0 0.0
        %2908 = vmatprep.subr.mxu0 0.0
        %2909 = vmatpush1.msra.mxu0 0.0
        %2910 = vmatprep.subr.mxu0 0.0
        %2911 = vmatpush1.msra.mxu0 0.0
        %2912 = vmatprep.subr.mxu0 0.0
        %2913 = vmatpush1.msra.mxu0 0.0
        %2914 = vmatprep.subr.mxu0 0.0
        %2915 = vmatpush1.msra.mxu0 0.0
        %2916 = vmatprep.subr.mxu0 0.0
        %2917 = vmatpush1.msra.mxu0 0.0
        %2918 = vmatprep.subr.mxu0 0.0
        %2919 = vmatpush1.msra.mxu0 0.0
        %2920 = vmatprep.subr.mxu0 0.0
        %2921 = vmatpush1.msra.mxu0 0.0
        %2922 = vmatprep.mubr.f32.mxu0 0.0
        %2923 = vmatmul.mubr.f32.gmra.mrb[0].mxu0 %v2851
        %v2924 = vpop.f32.mrb[0].mxu0
        %v2925 = vadd.f32 %v2845, %v2924
        %v2926 = vpop.f32.mrb[0].mxu0
        %v2927 = vadd.f32 %v2845, %v2926
        %2928 = vdwg.mxu0
        %v2929 = vmax.f32 %v2925, 0.0
        %v2930 = vmax.f32 %v2927, 0.0
        %2931 = vst [vmem:[%s311] sm:$0xff] %v2929
        %2932 = vst [vmem:[%s311 + $0x8] sm:$0xff] %v2930
        %s2933 = sand.u32 %s188, 1
        %s2934 = scalar_lea.sflag [#allocation5], %s2933
        %s2935 = sand.u32 %s188, 1
        %s2936 = smul.addr %s2935, 16
        %s2937 = scalar_lea.vmem [#allocation4], %s2936
        // Predicated region
        $region45: #{tpu_custom_call.1} parent=43 // pred_check
          %p2938 = pneg %p198
        $region46: #{tpu_custom_call.1} parent=43 // pred_check_branch
          %2940 = sbr.rel (%p2938) target = $region48
        $region47: #{tpu_custom_call.1} parent=43 // pred_region
          %s2941 = smul.u32 2, %s26
          %s2943 = ssub.s32 256, 256
          %2944 = vsyncadd %s2934, %s2943
          %s2945 = smul.addr %s25, 2
          %s2946 = sadd.s32 %s2941, %s2945
          %s2947 = smul.addr %s2946, 128
          %s2948 = scalar_lea.hbm %s6, %s2947
          %s2950 = sshll.u32 %s2937, 4
          %s2951 = int_to_ptr.vmem [resolvable:$true] %s2950
          %2953 = dma.vmem_to_hbm [thread:$0]  %s2951, 256, %s2948, %s2934
        $region48: #{tpu_custom_call.1} parent=43 // pred_fallthru
          _
      $region44: #{tpu_custom_call.1} parent=5 // pred_fallthru
        _
      %p2954 = scmp.le.s32.totalorder 2, %s16
      // Predicated region
      $region49: #{tpu_custom_call.1} parent=5 // pred_check
        %p2955 = pneg %p2954
      $region50: #{tpu_custom_call.1} parent=5 // pred_check_branch
        %2957 = sbr.rel (%p2955) target = $region52
      $region51: #{tpu_custom_call.1} parent=5 // pred_region
        %s2958 = ssub.s32 %s16, 2
        // Predicated region
        $region53: #{tpu_custom_call.1} parent=51 // pred_check
          %p2959 = pneg %p204
        $region54: #{tpu_custom_call.1} parent=51 // pred_check_branch
          %2961 = sbr.rel (%p2959) target = $region56
        $region55: #{tpu_custom_call.1} parent=51 // pred_region
          %s2962 = sand.u32 %s189, 1
          %s2963 = scalar_lea.sflag [#allocation5], %s2962
          %s2964 = sand.u32 %s189, 1
          %s2965 = smul.addr %s2964, 16
          %s2966 = scalar_lea.vmem [#allocation4], %s2965
          %2967 = dma.done %s2963, 256
        $region56: #{tpu_custom_call.1} parent=51 // pred_fallthru
          _
      $region52: #{tpu_custom_call.1} parent=5 // pred_fallthru
        _
    $region6: #{tpu_custom_call.1} parent=1 // loop_footer
      %s20 = sadd.s32 1, %s16
    $region7: #{tpu_custom_call.1} parent=1 // loop_footer_branch
      %15 = sbr.rel target = $region3
    $region8: #{tpu_custom_call.1} parent=1 // loop_exit
      _
    %2968 = vsyncpa [#allocation5], 1
    %s2969 = scalar_lea.sflag [#allocation5], 1
    %2970 = vsyncpa %s2969, 1

</llo_original>
